<compile_context>
chip_gen: v7x
topology: tpu7x:2x2x1
jax: 0.10.0
libtpu: 0.0.40
codegen_flags: <defaults>
</compile_context>

<pallas_src>
import functools

import jax
import jax.numpy as jnp
import numpy as np
from jax import lax
from jax.experimental import pallas as pl
from jax.experimental.pallas import tpu as pltpu

HIDDEN = 128   # hiddensize
INPUT = 7      # inputsize
NLAYER = 2     # nlayer (hard-coded as two explicit layers below)


def _lstm_regressor_kernel(x_ref,                       # (T*BP, I)
                           wi0_ref, wh0_ref, b0_ref,    # (I,4H), (H,4H), (1,4H)
                           wh1_hbm, wi1_hbm,            # (H,4H), (H,4H)  [ANY/HBM]
                           b1_ref,                      # (1,4H)
                           wo_ref, bo_ref,              # (H,1), (1,1)
                           out_ref,                     # (T*BP, 1)
                           pre0_ref, h1s_ref,           # VMEM scratch
                           wh1_vmem, wi1_vmem,          # VMEM scratch for manual DMA
                           dma_sem,                     # DMA semaphores (2,)
                           *, T, BP):
    H = wh0_ref.shape[0]
    f32 = jnp.float32

    # --- (A) Start the big layer-1 weight DMAs immediately; they are hidden
    #         behind the bulk projection + step-0 layer-0 compute below. ------
    cp_wh1 = pltpu.make_async_copy(wh1_hbm, wh1_vmem, dma_sem.at[0])
    cp_wi1 = pltpu.make_async_copy(wi1_hbm, wi1_vmem, dma_sem.at[1])
    cp_wh1.start()
    cp_wi1.start()

    # --- (B) Layer-0 input projection hoisted out of the recurrence ---------
    # One bulk matmul (off the serial chain) + layer-0 bias folded in once.
    pre0_ref[...] = (
        jnp.dot(x_ref[...], wi0_ref[...], preferred_element_type=f32)
        + b0_ref[...])

    # --- Loop-invariant loads / broadcasts hoisted out of the loop ----------
    wh0 = wh0_ref[...]                                   # (H, 4H)
    b1b = jnp.broadcast_to(b1_ref[...], (BP, 4 * H))     # hoisted broadcast

    def sig(v):
        # sigmoid(x) = 0.5*tanh(x/2) + 0.5 : single EUP tanh + VPU FMA.
        return 0.5 * jnp.tanh(0.5 * v) + 0.5

    def gates_to_hc(gates, c):
        # PyTorch gate order [i, f, g, o]; lane-aligned 128-wide slices.
        i_g = sig(gates[:, 0 * H:1 * H])
        f_g = sig(gates[:, 1 * H:2 * H])
        g_g = jnp.tanh(gates[:, 2 * H:3 * H])
        o_g = sig(gates[:, 3 * H:4 * H])
        c_new = f_g * c + i_g * g_g
        h_new = o_g * jnp.tanh(c_new)
        return h_new, c_new

    zeros = jnp.zeros((BP, H), f32)

    # --- (C) Peeled step 0: initial h/c are zero, so both recurrent matmuls
    #         vanish and the weight-DMA wait sits after layer-0 compute. ------
    h0, c0 = gates_to_hc(pre0_ref[pl.ds(0, BP), :], zeros)
    cp_wh1.wait()
    cp_wi1.wait()
    wh1 = wh1_vmem[...]                                  # (H, 4H)
    wi1 = wi1_vmem[...]                                  # (H, 4H)
    g1 = jnp.dot(h0, wi1, preferred_element_type=f32) + b1b   # h1(-1)=0
    h1, c1 = gates_to_hc(g1, zeros)
    h1s_ref[pl.ds(0, BP), :] = h1

    # --- (D) Steps 1..T-1, fully unrolled, de-fused layer-1 matmuls ---------
    def step(t, carry):
        h0, c0, h1, c1 = carry
        off = pl.multiple_of(t * BP, BP)                 # tile-aligned offset
        # Layer-1 recurrent half: depends only on step t-1, can issue early.
        rec1 = jnp.dot(h1, wh1, preferred_element_type=f32)
        # Layer 0: only the recurrent matmul is on the serial chain.
        g0 = pre0_ref[pl.ds(off, BP), :] + jnp.dot(
            h0, wh0, preferred_element_type=f32)
        h0, c0 = gates_to_hc(g0, c0)
        # Layer 1: input half waits on h0(t); recurrent half already issued.
        g1 = rec1 + jnp.dot(h0, wi1, preferred_element_type=f32) + b1b
        h1, c1 = gates_to_hc(g1, c1)
        # Stash h1 for the hoisted output head (aligned full-tile store).
        h1s_ref[pl.ds(off, BP), :] = h1
        return (h0, c0, h1, c1)

    # Fully unroll the short static time loop (live state per step is a few
    # vregs at BP=8, so no spill pressure from the cross-step overlap).
    lax.fori_loop(1, T, step, (h0, c0, h1, c1), unroll=True)

    # --- (E) Linear(H, 1) head hoisted out of the loop ----------------------
    out_ref[...] = (
        jnp.dot(h1s_ref[...], wo_ref[...], preferred_element_type=f32)
        + bo_ref[...]).astype(out_ref.dtype)


def regressor_forward(x, params):
    """x: (T, B, INPUT) float32 -> (T, B, 1) float32."""
    T, B, I = x.shape
    wi0, wh0, b0, wi1, wh1, b1, wo, bo = params
    H = wh0.shape[0]

    # Pad the batch to the 8-sublane tile; per-step hardware cost is identical.
    BP = ((B + 7) // 8) * 8
    x_pad = jnp.zeros((T, BP, I), x.dtype).at[:, :B, :].set(x)
    x2 = x_pad.reshape(T * BP, I)

    kernel = functools.partial(_lstm_regressor_kernel, T=T, BP=BP)
    vmem = pl.BlockSpec(memory_space=pltpu.MemorySpace.VMEM)
    any_space = pl.BlockSpec(memory_space=pl.ANY)   # manual DMA inside kernel

    out2 = pl.pallas_call(
        kernel,
        out_shape=jax.ShapeDtypeStruct((T * BP, 1), jnp.float32),
        in_specs=[vmem,                # x2
                  vmem, vmem, vmem,    # wi0, wh0, b0
                  any_space, any_space,  # wh1, wi1 (DMA hidden behind compute)
                  vmem,                # b1
                  vmem, vmem],         # wo, bo
        out_specs=vmem,
        scratch_shapes=[
            pltpu.VMEM((T * BP, 4 * H), jnp.float32),   # hoisted input proj
            pltpu.VMEM((T * BP, H), jnp.float32),       # per-step h1 buffer
            pltpu.VMEM((H, 4 * H), jnp.float32),        # wh1 landing buffer
            pltpu.VMEM((H, 4 * H), jnp.float32),        # wi1 landing buffer
            pltpu.SemaphoreType.DMA((2,)),              # weight-copy sems
        ],
    )(x2, wi0, wh0, b0, wh1, wi1, b1, wo, bo)

    return out2.reshape(T, BP, 1)[:, :B, :]


def init_params(key, hidden=HIDDEN, inp=INPUT):
    """Deterministic init matching PyTorch shapes (weights stored transposed
    so the kernel can do x @ W).  PyTorch default: U(-1/sqrt(H), 1/sqrt(H))."""
    bound = 1.0 / np.sqrt(hidden)
    keys = jax.random.split(key, 12)

    def u(k, shape):
        return jax.random.uniform(k, shape, jnp.float32, -bound, bound)

    # Layer 0: W_ih (4H, I), W_hh (4H, H), b_ih (4H), b_hh (4H) -> transposed
    wi0 = u(keys[0], (inp, 4 * hidden))
    wh0 = u(keys[1], (hidden, 4 * hidden))
    b0 = (u(keys[2], (4 * hidden,)) + u(keys[3], (4 * hidden,))).reshape(1, -1)
    # Layer 1
    wi1 = u(keys[4], (hidden, 4 * hidden))
    wh1 = u(keys[5], (hidden, 4 * hidden))
    b1 = (u(keys[6], (4 * hidden,)) + u(keys[7], (4 * hidden,))).reshape(1, -1)
    # Linear(hidden, 1)
    wo = u(keys[8], (hidden, 1))
    bo = u(keys[9], (1,)).reshape(1, 1)
    return (wi0, wh0, b0, wi1, wh1, b1, wo, bo)


def reference_forward(x, params):
    """Pure-JAX reference of the same forward pass (for verification)."""
    wi0, wh0, b0, wi1, wh1, b1, wo, bo = params
    T, B, _ = x.shape
    H = wh0.shape[0]

    def cell(inp, h, c, wi, wh, b):
        g = inp @ wi + h @ wh + b
        i_g = jax.nn.sigmoid(g[:, :H])
        f_g = jax.nn.sigmoid(g[:, H:2 * H])
        g_g = jnp.tanh(g[:, 2 * H:3 * H])
        o_g = jax.nn.sigmoid(g[:, 3 * H:])
        c = f_g * c + i_g * g_g
        h = o_g * jnp.tanh(c)
        return h, c

    h0 = c0 = h1 = c1 = jnp.zeros((B, H), jnp.float32)
    outs = []
    for t in range(T):
        h0, c0 = cell(x[t], h0, c0, wi0, wh0, b0)
        h1, c1 = cell(h0, h1, c1, wi1, wh1, b1)
        outs.append(h1 @ wo + bo)
    return jnp.stack(outs, axis=0)


if __name__ == "__main__":
    key = jax.random.PRNGKey(0)
    k_x, k_p = jax.random.split(key)

    T, B = 8, 2                              # seq_len=8, batch=2
    x = jax.random.normal(k_x, (T, B, INPUT), jnp.float32)
    params = init_params(k_p)

    out = regressor_forward(x, params)
    out = jax.block_until_ready(out)

    ref = jax.block_until_ready(reference_forward(x, params))
    assert out.shape == (T, B, 1)
    np.testing.assert_allclose(np.asarray(out), np.asarray(ref),
                               rtol=1e-5, atol=1e-5)
    print("KERNEL_OK")
</pallas_src>

<mosaic_0001>
module attributes {stable_mosaic.version = 11 : i64} {
  func.func @_lstm_regressor_kernel(%arg0: memref<64x7xf32, #tpu.memory_space<vmem>>, %arg1: memref<7x512xf32, #tpu.memory_space<vmem>>, %arg2: memref<128x512xf32, #tpu.memory_space<vmem>>, %arg3: memref<1x512xf32, #tpu.memory_space<vmem>>, %arg4: memref<128x512xf32, #tpu.memory_space<any>>, %arg5: memref<128x512xf32, #tpu.memory_space<any>>, %arg6: memref<1x512xf32, #tpu.memory_space<vmem>>, %arg7: memref<128x1xf32, #tpu.memory_space<vmem>>, %arg8: memref<1x1xf32, #tpu.memory_space<vmem>>, %arg9: memref<64x1xf32, #tpu.memory_space<vmem>>, %arg10: memref<64x512xf32, #tpu.memory_space<vmem>>, %arg11: memref<64x128xf32, #tpu.memory_space<vmem>>, %arg12: memref<128x512xf32, #tpu.memory_space<vmem>>, %arg13: memref<128x512xf32, #tpu.memory_space<vmem>>, %arg14: memref<2x!tpu.dma_semaphore, #tpu.memory_space<semaphore_mem>>) attributes {dimension_semantics = [], scalar_prefetch = 0 : i64, scratch_operands = 5 : i64, tpu.core_type = #tpu.core_type<tc>} {
    %c0_i32 = arith.constant 0 : i32
    %0 = tpu.memref_slice %arg14[%c0_i32] : memref<2x!tpu.dma_semaphore, #tpu.memory_space<semaphore_mem>> -> memref<1x!tpu.dma_semaphore, #tpu.memory_space<semaphore_mem>>
    %1 = tpu.memref_squeeze %0 : memref<1x!tpu.dma_semaphore, #tpu.memory_space<semaphore_mem>> -> memref<!tpu.dma_semaphore, #tpu.memory_space<semaphore_mem>>
    tpu.enqueue_dma source(%arg4 : memref<128x512xf32, #tpu.memory_space<any>>) target(%arg12 : memref<128x512xf32, #tpu.memory_space<vmem>>) target_semaphore(%1 : memref<!tpu.dma_semaphore, #tpu.memory_space<semaphore_mem>>)
    %c1_i32 = arith.constant 1 : i32
    %2 = tpu.memref_slice %arg14[%c1_i32] : memref<2x!tpu.dma_semaphore, #tpu.memory_space<semaphore_mem>> -> memref<1x!tpu.dma_semaphore, #tpu.memory_space<semaphore_mem>>
    %3 = tpu.memref_squeeze %2 : memref<1x!tpu.dma_semaphore, #tpu.memory_space<semaphore_mem>> -> memref<!tpu.dma_semaphore, #tpu.memory_space<semaphore_mem>>
    tpu.enqueue_dma source(%arg5 : memref<128x512xf32, #tpu.memory_space<any>>) target(%arg13 : memref<128x512xf32, #tpu.memory_space<vmem>>) target_semaphore(%3 : memref<!tpu.dma_semaphore, #tpu.memory_space<semaphore_mem>>)
    %c0 = arith.constant 0 : index
    %c0_0 = arith.constant 0 : index
    %4 = vector.load %arg0[%c0, %c0_0] : memref<64x7xf32, #tpu.memory_space<vmem>>, vector<64x7xf32>
    %c0_1 = arith.constant 0 : index
    %c0_2 = arith.constant 0 : index
    %5 = vector.load %arg1[%c0_1, %c0_2] : memref<7x512xf32, #tpu.memory_space<vmem>>, vector<7x512xf32>
    %cst = arith.constant dense<0.000000e+00> : vector<64x512xf32>
    %6 = tpu.matmul %4, %5, %cst {dimension_numbers = #tpu.dot_dimension_numbers<[1], [0], [0], [1], [0, 0, 1, 1], [], []>} : vector<64x7xf32>, vector<7x512xf32>, vector<64x512xf32> -> vector<64x512xf32>
    %c0_3 = arith.constant 0 : index
    %c0_4 = arith.constant 0 : index
    %7 = vector.load %arg3[%c0_3, %c0_4] : memref<1x512xf32, #tpu.memory_space<vmem>>, vector<1x512xf32>
    %8 = vector.broadcast %7 : vector<1x512xf32> to vector<64x512xf32>
    %9 = arith.addf %6, %8 : vector<64x512xf32>
    %c0_5 = arith.constant 0 : index
    %c0_6 = arith.constant 0 : index
    %10 = vector.load %arg10[%c0_5, %c0_6] : memref<64x512xf32, #tpu.memory_space<vmem>>, vector<64x512xf32>
    tpu.vector_store %arg10[%c0_5, %c0_6], %9 {strides = array<i32>} : memref<64x512xf32, #tpu.memory_space<vmem>>, vector<64x512xf32>,
    %c0_7 = arith.constant 0 : index
    %c0_8 = arith.constant 0 : index
    %11 = vector.load %arg2[%c0_7, %c0_8] : memref<128x512xf32, #tpu.memory_space<vmem>>, vector<128x512xf32>
    %c0_9 = arith.constant 0 : index
    %c0_10 = arith.constant 0 : index
    %12 = vector.load %arg6[%c0_9, %c0_10] : memref<1x512xf32, #tpu.memory_space<vmem>>, vector<1x512xf32>
    %13 = vector.shape_cast %12 : vector<1x512xf32> to vector<1x512xf32>
    %14 = vector.broadcast %13 : vector<1x512xf32> to vector<8x512xf32>
    %cst_11 = arith.constant 0.000000e+00 : f32
    %15 = vector.broadcast %cst_11 : f32 to vector<8x128xf32>
    %c0_12 = arith.constant 0 : index
    %c0_13 = arith.constant 0 : index
    %16 = vector.load %arg10[%c0_12, %c0_13] : memref<64x512xf32, #tpu.memory_space<vmem>>, vector<8x512xf32>
    %17 = vector.extract_strided_slice %16 {offsets = [0, 0], sizes = [8, 128], strides = [1, 1]} : vector<8x512xf32> to vector<8x128xf32>
    %cst_14 = arith.constant 5.000000e-01 : f32
    %18 = vector.broadcast %cst_14 : f32 to vector<8x128xf32>
    %19 = arith.mulf %18, %17 : vector<8x128xf32>
    %20 = math.tanh %19 : vector<8x128xf32>
    %cst_15 = arith.constant 5.000000e-01 : f32
    %21 = vector.broadcast %cst_15 : f32 to vector<8x128xf32>
    %22 = arith.mulf %21, %20 : vector<8x128xf32>
    %cst_16 = arith.constant 5.000000e-01 : f32
    %23 = vector.broadcast %cst_16 : f32 to vector<8x128xf32>
    %24 = arith.addf %22, %23 : vector<8x128xf32>
    %25 = vector.extract_strided_slice %16 {offsets = [0, 128], sizes = [8, 128], strides = [1, 1]} : vector<8x512xf32> to vector<8x128xf32>
    %cst_17 = arith.constant 5.000000e-01 : f32
    %26 = vector.broadcast %cst_17 : f32 to vector<8x128xf32>
    %27 = arith.mulf %26, %25 : vector<8x128xf32>
    %28 = math.tanh %27 : vector<8x128xf32>
    %cst_18 = arith.constant 5.000000e-01 : f32
    %29 = vector.broadcast %cst_18 : f32 to vector<8x128xf32>
    %30 = arith.mulf %29, %28 : vector<8x128xf32>
    %cst_19 = arith.constant 5.000000e-01 : f32
    %31 = vector.broadcast %cst_19 : f32 to vector<8x128xf32>
    %32 = arith.addf %30, %31 : vector<8x128xf32>
    %33 = vector.extract_strided_slice %16 {offsets = [0, 256], sizes = [8, 128], strides = [1, 1]} : vector<8x512xf32> to vector<8x128xf32>
    %34 = math.tanh %33 : vector<8x128xf32>
    %35 = vector.extract_strided_slice %16 {offsets = [0, 384], sizes = [8, 128], strides = [1, 1]} : vector<8x512xf32> to vector<8x128xf32>
    %cst_20 = arith.constant 5.000000e-01 : f32
    %36 = vector.broadcast %cst_20 : f32 to vector<8x128xf32>
    %37 = arith.mulf %36, %35 : vector<8x128xf32>
    %38 = math.tanh %37 : vector<8x128xf32>
    %cst_21 = arith.constant 5.000000e-01 : f32
    %39 = vector.broadcast %cst_21 : f32 to vector<8x128xf32>
    %40 = arith.mulf %39, %38 : vector<8x128xf32>
    %cst_22 = arith.constant 5.000000e-01 : f32
    %41 = vector.broadcast %cst_22 : f32 to vector<8x128xf32>
    %42 = arith.addf %40, %41 : vector<8x128xf32>
    %43 = arith.mulf %32, %15 : vector<8x128xf32>
    %44 = arith.mulf %24, %34 : vector<8x128xf32>
    %45 = arith.addf %43, %44 : vector<8x128xf32>
    %46 = math.tanh %45 : vector<8x128xf32>
    %47 = arith.mulf %42, %46 : vector<8x128xf32>
    %c0_i32_23 = arith.constant 0 : i32
    %48 = tpu.memref_slice %arg14[%c0_i32_23] : memref<2x!tpu.dma_semaphore, #tpu.memory_space<semaphore_mem>> -> memref<1x!tpu.dma_semaphore, #tpu.memory_space<semaphore_mem>>
    %49 = tpu.memref_squeeze %48 : memref<1x!tpu.dma_semaphore, #tpu.memory_space<semaphore_mem>> -> memref<!tpu.dma_semaphore, #tpu.memory_space<semaphore_mem>>
    tpu.wait_dma2 semaphore(%49 : memref<!tpu.dma_semaphore, #tpu.memory_space<semaphore_mem>>) src(%arg4 : memref<128x512xf32, #tpu.memory_space<any>>) dst(%arg12 : memref<128x512xf32, #tpu.memory_space<vmem>>)
    %c1_i32_24 = arith.constant 1 : i32
    %50 = tpu.memref_slice %arg14[%c1_i32_24] : memref<2x!tpu.dma_semaphore, #tpu.memory_space<semaphore_mem>> -> memref<1x!tpu.dma_semaphore, #tpu.memory_space<semaphore_mem>>
    %51 = tpu.memref_squeeze %50 : memref<1x!tpu.dma_semaphore, #tpu.memory_space<semaphore_mem>> -> memref<!tpu.dma_semaphore, #tpu.memory_space<semaphore_mem>>
    tpu.wait_dma2 semaphore(%51 : memref<!tpu.dma_semaphore, #tpu.memory_space<semaphore_mem>>) src(%arg5 : memref<128x512xf32, #tpu.memory_space<any>>) dst(%arg13 : memref<128x512xf32, #tpu.memory_space<vmem>>)
    %c0_25 = arith.constant 0 : index
    %c0_26 = arith.constant 0 : index
    %52 = vector.load %arg12[%c0_25, %c0_26] : memref<128x512xf32, #tpu.memory_space<vmem>>, vector<128x512xf32>
    %c0_27 = arith.constant 0 : index
    %c0_28 = arith.constant 0 : index
    %53 = vector.load %arg13[%c0_27, %c0_28] : memref<128x512xf32, #tpu.memory_space<vmem>>, vector<128x512xf32>
    %cst_29 = arith.constant dense<0.000000e+00> : vector<8x512xf32>
    %54 = tpu.matmul %47, %53, %cst_29 {dimension_numbers = #tpu.dot_dimension_numbers<[1], [0], [0], [1], [0, 0, 1, 1], [], []>} : vector<8x128xf32>, vector<128x512xf32>, vector<8x512xf32> -> vector<8x512xf32>
    %55 = arith.addf %54, %14 : vector<8x512xf32>
    %56 = vector.extract_strided_slice %55 {offsets = [0, 0], sizes = [8, 128], strides = [1, 1]} : vector<8x512xf32> to vector<8x128xf32>
    %cst_30 = arith.constant 5.000000e-01 : f32
    %57 = vector.broadcast %cst_30 : f32 to vector<8x128xf32>
    %58 = arith.mulf %57, %56 : vector<8x128xf32>
    %59 = math.tanh %58 : vector<8x128xf32>
    %cst_31 = arith.constant 5.000000e-01 : f32
    %60 = vector.broadcast %cst_31 : f32 to vector<8x128xf32>
    %61 = arith.mulf %60, %59 : vector<8x128xf32>
    %cst_32 = arith.constant 5.000000e-01 : f32
    %62 = vector.broadcast %cst_32 : f32 to vector<8x128xf32>
    %63 = arith.addf %61, %62 : vector<8x128xf32>
    %64 = vector.extract_strided_slice %55 {offsets = [0, 128], sizes = [8, 128], strides = [1, 1]} : vector<8x512xf32> to vector<8x128xf32>
    %cst_33 = arith.constant 5.000000e-01 : f32
    %65 = vector.broadcast %cst_33 : f32 to vector<8x128xf32>
    %66 = arith.mulf %65, %64 : vector<8x128xf32>
    %67 = math.tanh %66 : vector<8x128xf32>
    %cst_34 = arith.constant 5.000000e-01 : f32
    %68 = vector.broadcast %cst_34 : f32 to vector<8x128xf32>
    %69 = arith.mulf %68, %67 : vector<8x128xf32>
    %cst_35 = arith.constant 5.000000e-01 : f32
    %70 = vector.broadcast %cst_35 : f32 to vector<8x128xf32>
    %71 = arith.addf %69, %70 : vector<8x128xf32>
    %72 = vector.extract_strided_slice %55 {offsets = [0, 256], sizes = [8, 128], strides = [1, 1]} : vector<8x512xf32> to vector<8x128xf32>
    %73 = math.tanh %72 : vector<8x128xf32>
    %74 = vector.extract_strided_slice %55 {offsets = [0, 384], sizes = [8, 128], strides = [1, 1]} : vector<8x512xf32> to vector<8x128xf32>
    %cst_36 = arith.constant 5.000000e-01 : f32
    %75 = vector.broadcast %cst_36 : f32 to vector<8x128xf32>
    %76 = arith.mulf %75, %74 : vector<8x128xf32>
    %77 = math.tanh %76 : vector<8x128xf32>
    %cst_37 = arith.constant 5.000000e-01 : f32
    %78 = vector.broadcast %cst_37 : f32 to vector<8x128xf32>
    %79 = arith.mulf %78, %77 : vector<8x128xf32>
    %cst_38 = arith.constant 5.000000e-01 : f32
    %80 = vector.broadcast %cst_38 : f32 to vector<8x128xf32>
    %81 = arith.addf %79, %80 : vector<8x128xf32>
    %82 = arith.mulf %71, %15 : vector<8x128xf32>
    %83 = arith.mulf %63, %73 : vector<8x128xf32>
    %84 = arith.addf %82, %83 : vector<8x128xf32>
    %85 = math.tanh %84 : vector<8x128xf32>
    %86 = arith.mulf %81, %85 : vector<8x128xf32>
    %c0_39 = arith.constant 0 : index
    %c0_40 = arith.constant 0 : index
    %87 = vector.load %arg11[%c0_39, %c0_40] : memref<64x128xf32, #tpu.memory_space<vmem>>, vector<8x128xf32>
    tpu.vector_store %arg11[%c0_39, %c0_40], %86 {strides = array<i32>} : memref<64x128xf32, #tpu.memory_space<vmem>>, vector<8x128xf32>,
    %c1_i32_41 = arith.constant 1 : i32
    %c8_i32 = arith.constant 8 : i32
    %88 = arith.muli %c1_i32_41, %c8_i32 : i32
    %89 = tpu.assume_multiple %88, 8 : i32
    %cst_42 = arith.constant dense<0.000000e+00> : vector<8x512xf32>
    %90 = tpu.matmul %86, %52, %cst_42 {dimension_numbers = #tpu.dot_dimension_numbers<[1], [0], [0], [1], [0, 0, 1, 1], [], []>} : vector<8x128xf32>, vector<128x512xf32>, vector<8x512xf32> -> vector<8x512xf32>
    %91 = arith.index_cast %89 : i32 to index
    %c0_43 = arith.constant 0 : index
    %92 = vector.load %arg10[%91, %c0_43] : memref<64x512xf32, #tpu.memory_space<vmem>>, vector<8x512xf32>
    %cst_44 = arith.constant dense<0.000000e+00> : vector<8x512xf32>
    %93 = tpu.matmul %47, %11, %cst_44 {dimension_numbers = #tpu.dot_dimension_numbers<[1], [0], [0], [1], [0, 0, 1, 1], [], []>} : vector<8x128xf32>, vector<128x512xf32>, vector<8x512xf32> -> vector<8x512xf32>
    %94 = arith.addf %92, %93 : vector<8x512xf32>
    %95 = vector.extract_strided_slice %94 {offsets = [0, 0], sizes = [8, 128], strides = [1, 1]} : vector<8x512xf32> to vector<8x128xf32>
    %cst_45 = arith.constant 5.000000e-01 : f32
    %96 = vector.broadcast %cst_45 : f32 to vector<8x128xf32>
    %97 = arith.mulf %96, %95 : vector<8x128xf32>
    %98 = math.tanh %97 : vector<8x128xf32>
    %cst_46 = arith.constant 5.000000e-01 : f32
    %99 = vector.broadcast %cst_46 : f32 to vector<8x128xf32>
    %100 = arith.mulf %99, %98 : vector<8x128xf32>
    %cst_47 = arith.constant 5.000000e-01 : f32
    %101 = vector.broadcast %cst_47 : f32 to vector<8x128xf32>
    %102 = arith.addf %100, %101 : vector<8x128xf32>
    %103 = vector.extract_strided_slice %94 {offsets = [0, 128], sizes = [8, 128], strides = [1, 1]} : vector<8x512xf32> to vector<8x128xf32>
    %cst_48 = arith.constant 5.000000e-01 : f32
    %104 = vector.broadcast %cst_48 : f32 to vector<8x128xf32>
    %105 = arith.mulf %104, %103 : vector<8x128xf32>
    %106 = math.tanh %105 : vector<8x128xf32>
    %cst_49 = arith.constant 5.000000e-01 : f32
    %107 = vector.broadcast %cst_49 : f32 to vector<8x128xf32>
    %108 = arith.mulf %107, %106 : vector<8x128xf32>
    %cst_50 = arith.constant 5.000000e-01 : f32
    %109 = vector.broadcast %cst_50 : f32 to vector<8x128xf32>
    %110 = arith.addf %108, %109 : vector<8x128xf32>
    %111 = vector.extract_strided_slice %94 {offsets = [0, 256], sizes = [8, 128], strides = [1, 1]} : vector<8x512xf32> to vector<8x128xf32>
    %112 = math.tanh %111 : vector<8x128xf32>
    %113 = vector.extract_strided_slice %94 {offsets = [0, 384], sizes = [8, 128], strides = [1, 1]} : vector<8x512xf32> to vector<8x128xf32>
    %cst_51 = arith.constant 5.000000e-01 : f32
    %114 = vector.broadcast %cst_51 : f32 to vector<8x128xf32>
    %115 = arith.mulf %114, %113 : vector<8x128xf32>
    %116 = math.tanh %115 : vector<8x128xf32>
    %cst_52 = arith.constant 5.000000e-01 : f32
    %117 = vector.broadcast %cst_52 : f32 to vector<8x128xf32>
    %118 = arith.mulf %117, %116 : vector<8x128xf32>
    %cst_53 = arith.constant 5.000000e-01 : f32
    %119 = vector.broadcast %cst_53 : f32 to vector<8x128xf32>
    %120 = arith.addf %118, %119 : vector<8x128xf32>
    %121 = arith.mulf %110, %45 : vector<8x128xf32>
    %122 = arith.mulf %102, %112 : vector<8x128xf32>
    %123 = arith.addf %121, %122 : vector<8x128xf32>
    %124 = math.tanh %123 : vector<8x128xf32>
    %125 = arith.mulf %120, %124 : vector<8x128xf32>
    %cst_54 = arith.constant dense<0.000000e+00> : vector<8x512xf32>
    %126 = tpu.matmul %125, %53, %cst_54 {dimension_numbers = #tpu.dot_dimension_numbers<[1], [0], [0], [1], [0, 0, 1, 1], [], []>} : vector<8x128xf32>, vector<128x512xf32>, vector<8x512xf32> -> vector<8x512xf32>
    %127 = arith.addf %90, %126 : vector<8x512xf32>
    %128 = arith.addf %127, %14 : vector<8x512xf32>
    %129 = vector.extract_strided_slice %128 {offsets = [0, 0], sizes = [8, 128], strides = [1, 1]} : vector<8x512xf32> to vector<8x128xf32>
    %cst_55 = arith.constant 5.000000e-01 : f32
    %130 = vector.broadcast %cst_55 : f32 to vector<8x128xf32>
    %131 = arith.mulf %130, %129 : vector<8x128xf32>
    %132 = math.tanh %131 : vector<8x128xf32>
    %cst_56 = arith.constant 5.000000e-01 : f32
    %133 = vector.broadcast %cst_56 : f32 to vector<8x128xf32>
    %134 = arith.mulf %133, %132 : vector<8x128xf32>
    %cst_57 = arith.constant 5.000000e-01 : f32
    %135 = vector.broadcast %cst_57 : f32 to vector<8x128xf32>
    %136 = arith.addf %134, %135 : vector<8x128xf32>
    %137 = vector.extract_strided_slice %128 {offsets = [0, 128], sizes = [8, 128], strides = [1, 1]} : vector<8x512xf32> to vector<8x128xf32>
    %cst_58 = arith.constant 5.000000e-01 : f32
    %138 = vector.broadcast %cst_58 : f32 to vector<8x128xf32>
    %139 = arith.mulf %138, %137 : vector<8x128xf32>
    %140 = math.tanh %139 : vector<8x128xf32>
    %cst_59 = arith.constant 5.000000e-01 : f32
    %141 = vector.broadcast %cst_59 : f32 to vector<8x128xf32>
    %142 = arith.mulf %141, %140 : vector<8x128xf32>
    %cst_60 = arith.constant 5.000000e-01 : f32
    %143 = vector.broadcast %cst_60 : f32 to vector<8x128xf32>
    %144 = arith.addf %142, %143 : vector<8x128xf32>
    %145 = vector.extract_strided_slice %128 {offsets = [0, 256], sizes = [8, 128], strides = [1, 1]} : vector<8x512xf32> to vector<8x128xf32>
    %146 = math.tanh %145 : vector<8x128xf32>
    %147 = vector.extract_strided_slice %128 {offsets = [0, 384], sizes = [8, 128], strides = [1, 1]} : vector<8x512xf32> to vector<8x128xf32>
    %cst_61 = arith.constant 5.000000e-01 : f32
    %148 = vector.broadcast %cst_61 : f32 to vector<8x128xf32>
    %149 = arith.mulf %148, %147 : vector<8x128xf32>
    %150 = math.tanh %149 : vector<8x128xf32>
    %cst_62 = arith.constant 5.000000e-01 : f32
    %151 = vector.broadcast %cst_62 : f32 to vector<8x128xf32>
    %152 = arith.mulf %151, %150 : vector<8x128xf32>
    %cst_63 = arith.constant 5.000000e-01 : f32
    %153 = vector.broadcast %cst_63 : f32 to vector<8x128xf32>
    %154 = arith.addf %152, %153 : vector<8x128xf32>
    %155 = arith.mulf %144, %84 : vector<8x128xf32>
    %156 = arith.mulf %136, %146 : vector<8x128xf32>
    %157 = arith.addf %155, %156 : vector<8x128xf32>
    %158 = math.tanh %157 : vector<8x128xf32>
    %159 = arith.mulf %154, %158 : vector<8x128xf32>
    %160 = arith.index_cast %89 : i32 to index
    %c0_64 = arith.constant 0 : index
    %161 = vector.load %arg11[%160, %c0_64] : memref<64x128xf32, #tpu.memory_space<vmem>>, vector<8x128xf32>
    tpu.vector_store %arg11[%160, %c0_64], %159 {strides = array<i32>} : memref<64x128xf32, #tpu.memory_space<vmem>>, vector<8x128xf32>,
    %c2_i32 = arith.constant 2 : i32
    %c8_i32_65 = arith.constant 8 : i32
    %162 = arith.muli %c2_i32, %c8_i32_65 : i32
    %163 = tpu.assume_multiple %162, 8 : i32
    %cst_66 = arith.constant dense<0.000000e+00> : vector<8x512xf32>
    %164 = tpu.matmul %159, %52, %cst_66 {dimension_numbers = #tpu.dot_dimension_numbers<[1], [0], [0], [1], [0, 0, 1, 1], [], []>} : vector<8x128xf32>, vector<128x512xf32>, vector<8x512xf32> -> vector<8x512xf32>
    %165 = arith.index_cast %163 : i32 to index
    %c0_67 = arith.constant 0 : index
    %166 = vector.load %arg10[%165, %c0_67] : memref<64x512xf32, #tpu.memory_space<vmem>>, vector<8x512xf32>
    %cst_68 = arith.constant dense<0.000000e+00> : vector<8x512xf32>
    %167 = tpu.matmul %125, %11, %cst_68 {dimension_numbers = #tpu.dot_dimension_numbers<[1], [0], [0], [1], [0, 0, 1, 1], [], []>} : vector<8x128xf32>, vector<128x512xf32>, vector<8x512xf32> -> vector<8x512xf32>
    %168 = arith.addf %166, %167 : vector<8x512xf32>
    %169 = vector.extract_strided_slice %168 {offsets = [0, 0], sizes = [8, 128], strides = [1, 1]} : vector<8x512xf32> to vector<8x128xf32>
    %cst_69 = arith.constant 5.000000e-01 : f32
    %170 = vector.broadcast %cst_69 : f32 to vector<8x128xf32>
    %171 = arith.mulf %170, %169 : vector<8x128xf32>
    %172 = math.tanh %171 : vector<8x128xf32>
    %cst_70 = arith.constant 5.000000e-01 : f32
    %173 = vector.broadcast %cst_70 : f32 to vector<8x128xf32>
    %174 = arith.mulf %173, %172 : vector<8x128xf32>
    %cst_71 = arith.constant 5.000000e-01 : f32
    %175 = vector.broadcast %cst_71 : f32 to vector<8x128xf32>
    %176 = arith.addf %174, %175 : vector<8x128xf32>
    %177 = vector.extract_strided_slice %168 {offsets = [0, 128], sizes = [8, 128], strides = [1, 1]} : vector<8x512xf32> to vector<8x128xf32>
    %cst_72 = arith.constant 5.000000e-01 : f32
    %178 = vector.broadcast %cst_72 : f32 to vector<8x128xf32>
    %179 = arith.mulf %178, %177 : vector<8x128xf32>
    %180 = math.tanh %179 : vector<8x128xf32>
    %cst_73 = arith.constant 5.000000e-01 : f32
    %181 = vector.broadcast %cst_73 : f32 to vector<8x128xf32>
    %182 = arith.mulf %181, %180 : vector<8x128xf32>
    %cst_74 = arith.constant 5.000000e-01 : f32
    %183 = vector.broadcast %cst_74 : f32 to vector<8x128xf32>
    %184 = arith.addf %182, %183 : vector<8x128xf32>
    %185 = vector.extract_strided_slice %168 {offsets = [0, 256], sizes = [8, 128], strides = [1, 1]} : vector<8x512xf32> to vector<8x128xf32>
    %186 = math.tanh %185 : vector<8x128xf32>
    %187 = vector.extract_strided_slice %168 {offsets = [0, 384], sizes = [8, 128], strides = [1, 1]} : vector<8x512xf32> to vector<8x128xf32>
    %cst_75 = arith.constant 5.000000e-01 : f32
    %188 = vector.broadcast %cst_75 : f32 to vector<8x128xf32>
    %189 = arith.mulf %188, %187 : vector<8x128xf32>
    %190 = math.tanh %189 : vector<8x128xf32>
    %cst_76 = arith.constant 5.000000e-01 : f32
    %191 = vector.broadcast %cst_76 : f32 to vector<8x128xf32>
    %192 = arith.mulf %191, %190 : vector<8x128xf32>
    %cst_77 = arith.constant 5.000000e-01 : f32
    %193 = vector.broadcast %cst_77 : f32 to vector<8x128xf32>
    %194 = arith.addf %192, %193 : vector<8x128xf32>
    %195 = arith.mulf %184, %123 : vector<8x128xf32>
    %196 = arith.mulf %176, %186 : vector<8x128xf32>
    %197 = arith.addf %195, %196 : vector<8x128xf32>
    %198 = math.tanh %197 : vector<8x128xf32>
    %199 = arith.mulf %194, %198 : vector<8x128xf32>
    %cst_78 = arith.constant dense<0.000000e+00> : vector<8x512xf32>
    %200 = tpu.matmul %199, %53, %cst_78 {dimension_numbers = #tpu.dot_dimension_numbers<[1], [0], [0], [1], [0, 0, 1, 1], [], []>} : vector<8x128xf32>, vector<128x512xf32>, vector<8x512xf32> -> vector<8x512xf32>
    %201 = arith.addf %164, %200 : vector<8x512xf32>
    %202 = arith.addf %201, %14 : vector<8x512xf32>
    %203 = vector.extract_strided_slice %202 {offsets = [0, 0], sizes = [8, 128], strides = [1, 1]} : vector<8x512xf32> to vector<8x128xf32>
    %cst_79 = arith.constant 5.000000e-01 : f32
    %204 = vector.broadcast %cst_79 : f32 to vector<8x128xf32>
    %205 = arith.mulf %204, %203 : vector<8x128xf32>
    %206 = math.tanh %205 : vector<8x128xf32>
    %cst_80 = arith.constant 5.000000e-01 : f32
    %207 = vector.broadcast %cst_80 : f32 to vector<8x128xf32>
    %208 = arith.mulf %207, %206 : vector<8x128xf32>
    %cst_81 = arith.constant 5.000000e-01 : f32
    %209 = vector.broadcast %cst_81 : f32 to vector<8x128xf32>
    %210 = arith.addf %208, %209 : vector<8x128xf32>
    %211 = vector.extract_strided_slice %202 {offsets = [0, 128], sizes = [8, 128], strides = [1, 1]} : vector<8x512xf32> to vector<8x128xf32>
    %cst_82 = arith.constant 5.000000e-01 : f32
    %212 = vector.broadcast %cst_82 : f32 to vector<8x128xf32>
    %213 = arith.mulf %212, %211 : vector<8x128xf32>
    %214 = math.tanh %213 : vector<8x128xf32>
    %cst_83 = arith.constant 5.000000e-01 : f32
    %215 = vector.broadcast %cst_83 : f32 to vector<8x128xf32>
    %216 = arith.mulf %215, %214 : vector<8x128xf32>
    %cst_84 = arith.constant 5.000000e-01 : f32
    %217 = vector.broadcast %cst_84 : f32 to vector<8x128xf32>
    %218 = arith.addf %216, %217 : vector<8x128xf32>
    %219 = vector.extract_strided_slice %202 {offsets = [0, 256], sizes = [8, 128], strides = [1, 1]} : vector<8x512xf32> to vector<8x128xf32>
    %220 = math.tanh %219 : vector<8x128xf32>
    %221 = vector.extract_strided_slice %202 {offsets = [0, 384], sizes = [8, 128], strides = [1, 1]} : vector<8x512xf32> to vector<8x128xf32>
    %cst_85 = arith.constant 5.000000e-01 : f32
    %222 = vector.broadcast %cst_85 : f32 to vector<8x128xf32>
    %223 = arith.mulf %222, %221 : vector<8x128xf32>
    %224 = math.tanh %223 : vector<8x128xf32>
    %cst_86 = arith.constant 5.000000e-01 : f32
    %225 = vector.broadcast %cst_86 : f32 to vector<8x128xf32>
    %226 = arith.mulf %225, %224 : vector<8x128xf32>
    %cst_87 = arith.constant 5.000000e-01 : f32
    %227 = vector.broadcast %cst_87 : f32 to vector<8x128xf32>
    %228 = arith.addf %226, %227 : vector<8x128xf32>
    %229 = arith.mulf %218, %157 : vector<8x128xf32>
    %230 = arith.mulf %210, %220 : vector<8x128xf32>
    %231 = arith.addf %229, %230 : vector<8x128xf32>
    %232 = math.tanh %231 : vector<8x128xf32>
    %233 = arith.mulf %228, %232 : vector<8x128xf32>
    %234 = arith.index_cast %163 : i32 to index
    %c0_88 = arith.constant 0 : index
    %235 = vector.load %arg11[%234, %c0_88] : memref<64x128xf32, #tpu.memory_space<vmem>>, vector<8x128xf32>
    tpu.vector_store %arg11[%234, %c0_88], %233 {strides = array<i32>} : memref<64x128xf32, #tpu.memory_space<vmem>>, vector<8x128xf32>,
    %c3_i32 = arith.constant 3 : i32
    %c8_i32_89 = arith.constant 8 : i32
    %236 = arith.muli %c3_i32, %c8_i32_89 : i32
    %237 = tpu.assume_multiple %236, 8 : i32
    %cst_90 = arith.constant dense<0.000000e+00> : vector<8x512xf32>
    %238 = tpu.matmul %233, %52, %cst_90 {dimension_numbers = #tpu.dot_dimension_numbers<[1], [0], [0], [1], [0, 0, 1, 1], [], []>} : vector<8x128xf32>, vector<128x512xf32>, vector<8x512xf32> -> vector<8x512xf32>
    %239 = arith.index_cast %237 : i32 to index
    %c0_91 = arith.constant 0 : index
    %240 = vector.load %arg10[%239, %c0_91] : memref<64x512xf32, #tpu.memory_space<vmem>>, vector<8x512xf32>
    %cst_92 = arith.constant dense<0.000000e+00> : vector<8x512xf32>
    %241 = tpu.matmul %199, %11, %cst_92 {dimension_numbers = #tpu.dot_dimension_numbers<[1], [0], [0], [1], [0, 0, 1, 1], [], []>} : vector<8x128xf32>, vector<128x512xf32>, vector<8x512xf32> -> vector<8x512xf32>
    %242 = arith.addf %240, %241 : vector<8x512xf32>
    %243 = vector.extract_strided_slice %242 {offsets = [0, 0], sizes = [8, 128], strides = [1, 1]} : vector<8x512xf32> to vector<8x128xf32>
    %cst_93 = arith.constant 5.000000e-01 : f32
    %244 = vector.broadcast %cst_93 : f32 to vector<8x128xf32>
    %245 = arith.mulf %244, %243 : vector<8x128xf32>
    %246 = math.tanh %245 : vector<8x128xf32>
    %cst_94 = arith.constant 5.000000e-01 : f32
    %247 = vector.broadcast %cst_94 : f32 to vector<8x128xf32>
    %248 = arith.mulf %247, %246 : vector<8x128xf32>
    %cst_95 = arith.constant 5.000000e-01 : f32
    %249 = vector.broadcast %cst_95 : f32 to vector<8x128xf32>
    %250 = arith.addf %248, %249 : vector<8x128xf32>
    %251 = vector.extract_strided_slice %242 {offsets = [0, 128], sizes = [8, 128], strides = [1, 1]} : vector<8x512xf32> to vector<8x128xf32>
    %cst_96 = arith.constant 5.000000e-01 : f32
    %252 = vector.broadcast %cst_96 : f32 to vector<8x128xf32>
    %253 = arith.mulf %252, %251 : vector<8x128xf32>
    %254 = math.tanh %253 : vector<8x128xf32>
    %cst_97 = arith.constant 5.000000e-01 : f32
    %255 = vector.broadcast %cst_97 : f32 to vector<8x128xf32>
    %256 = arith.mulf %255, %254 : vector<8x128xf32>
    %cst_98 = arith.constant 5.000000e-01 : f32
    %257 = vector.broadcast %cst_98 : f32 to vector<8x128xf32>
    %258 = arith.addf %256, %257 : vector<8x128xf32>
    %259 = vector.extract_strided_slice %242 {offsets = [0, 256], sizes = [8, 128], strides = [1, 1]} : vector<8x512xf32> to vector<8x128xf32>
    %260 = math.tanh %259 : vector<8x128xf32>
    %261 = vector.extract_strided_slice %242 {offsets = [0, 384], sizes = [8, 128], strides = [1, 1]} : vector<8x512xf32> to vector<8x128xf32>
    %cst_99 = arith.constant 5.000000e-01 : f32
    %262 = vector.broadcast %cst_99 : f32 to vector<8x128xf32>
    %263 = arith.mulf %262, %261 : vector<8x128xf32>
    %264 = math.tanh %263 : vector<8x128xf32>
    %cst_100 = arith.constant 5.000000e-01 : f32
    %265 = vector.broadcast %cst_100 : f32 to vector<8x128xf32>
    %266 = arith.mulf %265, %264 : vector<8x128xf32>
    %cst_101 = arith.constant 5.000000e-01 : f32
    %267 = vector.broadcast %cst_101 : f32 to vector<8x128xf32>
    %268 = arith.addf %266, %267 : vector<8x128xf32>
    %269 = arith.mulf %258, %197 : vector<8x128xf32>
    %270 = arith.mulf %250, %260 : vector<8x128xf32>
    %271 = arith.addf %269, %270 : vector<8x128xf32>
    %272 = math.tanh %271 : vector<8x128xf32>
    %273 = arith.mulf %268, %272 : vector<8x128xf32>
    %cst_102 = arith.constant dense<0.000000e+00> : vector<8x512xf32>
    %274 = tpu.matmul %273, %53, %cst_102 {dimension_numbers = #tpu.dot_dimension_numbers<[1], [0], [0], [1], [0, 0, 1, 1], [], []>} : vector<8x128xf32>, vector<128x512xf32>, vector<8x512xf32> -> vector<8x512xf32>
    %275 = arith.addf %238, %274 : vector<8x512xf32>
    %276 = arith.addf %275, %14 : vector<8x512xf32>
    %277 = vector.extract_strided_slice %276 {offsets = [0, 0], sizes = [8, 128], strides = [1, 1]} : vector<8x512xf32> to vector<8x128xf32>
    %cst_103 = arith.constant 5.000000e-01 : f32
    %278 = vector.broadcast %cst_103 : f32 to vector<8x128xf32>
    %279 = arith.mulf %278, %277 : vector<8x128xf32>
    %280 = math.tanh %279 : vector<8x128xf32>
    %cst_104 = arith.constant 5.000000e-01 : f32
    %281 = vector.broadcast %cst_104 : f32 to vector<8x128xf32>
    %282 = arith.mulf %281, %280 : vector<8x128xf32>
    %cst_105 = arith.constant 5.000000e-01 : f32
    %283 = vector.broadcast %cst_105 : f32 to vector<8x128xf32>
    %284 = arith.addf %282, %283 : vector<8x128xf32>
    %285 = vector.extract_strided_slice %276 {offsets = [0, 128], sizes = [8, 128], strides = [1, 1]} : vector<8x512xf32> to vector<8x128xf32>
    %cst_106 = arith.constant 5.000000e-01 : f32
    %286 = vector.broadcast %cst_106 : f32 to vector<8x128xf32>
    %287 = arith.mulf %286, %285 : vector<8x128xf32>
    %288 = math.tanh %287 : vector<8x128xf32>
    %cst_107 = arith.constant 5.000000e-01 : f32
    %289 = vector.broadcast %cst_107 : f32 to vector<8x128xf32>
    %290 = arith.mulf %289, %288 : vector<8x128xf32>
    %cst_108 = arith.constant 5.000000e-01 : f32
    %291 = vector.broadcast %cst_108 : f32 to vector<8x128xf32>
    %292 = arith.addf %290, %291 : vector<8x128xf32>
    %293 = vector.extract_strided_slice %276 {offsets = [0, 256], sizes = [8, 128], strides = [1, 1]} : vector<8x512xf32> to vector<8x128xf32>
    %294 = math.tanh %293 : vector<8x128xf32>
    %295 = vector.extract_strided_slice %276 {offsets = [0, 384], sizes = [8, 128], strides = [1, 1]} : vector<8x512xf32> to vector<8x128xf32>
    %cst_109 = arith.constant 5.000000e-01 : f32
    %296 = vector.broadcast %cst_109 : f32 to vector<8x128xf32>
    %297 = arith.mulf %296, %295 : vector<8x128xf32>
    %298 = math.tanh %297 : vector<8x128xf32>
    %cst_110 = arith.constant 5.000000e-01 : f32
    %299 = vector.broadcast %cst_110 : f32 to vector<8x128xf32>
    %300 = arith.mulf %299, %298 : vector<8x128xf32>
    %cst_111 = arith.constant 5.000000e-01 : f32
    %301 = vector.broadcast %cst_111 : f32 to vector<8x128xf32>
    %302 = arith.addf %300, %301 : vector<8x128xf32>
    %303 = arith.mulf %292, %231 : vector<8x128xf32>
    %304 = arith.mulf %284, %294 : vector<8x128xf32>
    %305 = arith.addf %303, %304 : vector<8x128xf32>
    %306 = math.tanh %305 : vector<8x128xf32>
    %307 = arith.mulf %302, %306 : vector<8x128xf32>
    %308 = arith.index_cast %237 : i32 to index
    %c0_112 = arith.constant 0 : index
    %309 = vector.load %arg11[%308, %c0_112] : memref<64x128xf32, #tpu.memory_space<vmem>>, vector<8x128xf32>
    tpu.vector_store %arg11[%308, %c0_112], %307 {strides = array<i32>} : memref<64x128xf32, #tpu.memory_space<vmem>>, vector<8x128xf32>,
    %c4_i32 = arith.constant 4 : i32
    %c8_i32_113 = arith.constant 8 : i32
    %310 = arith.muli %c4_i32, %c8_i32_113 : i32
    %311 = tpu.assume_multiple %310, 8 : i32
    %cst_114 = arith.constant dense<0.000000e+00> : vector<8x512xf32>
    %312 = tpu.matmul %307, %52, %cst_114 {dimension_numbers = #tpu.dot_dimension_numbers<[1], [0], [0], [1], [0, 0, 1, 1], [], []>} : vector<8x128xf32>, vector<128x512xf32>, vector<8x512xf32> -> vector<8x512xf32>
    %313 = arith.index_cast %311 : i32 to index
    %c0_115 = arith.constant 0 : index
    %314 = vector.load %arg10[%313, %c0_115] : memref<64x512xf32, #tpu.memory_space<vmem>>, vector<8x512xf32>
    %cst_116 = arith.constant dense<0.000000e+00> : vector<8x512xf32>
    %315 = tpu.matmul %273, %11, %cst_116 {dimension_numbers = #tpu.dot_dimension_numbers<[1], [0], [0], [1], [0, 0, 1, 1], [], []>} : vector<8x128xf32>, vector<128x512xf32>, vector<8x512xf32> -> vector<8x512xf32>
    %316 = arith.addf %314, %315 : vector<8x512xf32>
    %317 = vector.extract_strided_slice %316 {offsets = [0, 0], sizes = [8, 128], strides = [1, 1]} : vector<8x512xf32> to vector<8x128xf32>
    %cst_117 = arith.constant 5.000000e-01 : f32
    %318 = vector.broadcast %cst_117 : f32 to vector<8x128xf32>
    %319 = arith.mulf %318, %317 : vector<8x128xf32>
    %320 = math.tanh %319 : vector<8x128xf32>
    %cst_118 = arith.constant 5.000000e-01 : f32
    %321 = vector.broadcast %cst_118 : f32 to vector<8x128xf32>
    %322 = arith.mulf %321, %320 : vector<8x128xf32>
    %cst_119 = arith.constant 5.000000e-01 : f32
    %323 = vector.broadcast %cst_119 : f32 to vector<8x128xf32>
    %324 = arith.addf %322, %323 : vector<8x128xf32>
    %325 = vector.extract_strided_slice %316 {offsets = [0, 128], sizes = [8, 128], strides = [1, 1]} : vector<8x512xf32> to vector<8x128xf32>
    %cst_120 = arith.constant 5.000000e-01 : f32
    %326 = vector.broadcast %cst_120 : f32 to vector<8x128xf32>
    %327 = arith.mulf %326, %325 : vector<8x128xf32>
    %328 = math.tanh %327 : vector<8x128xf32>
    %cst_121 = arith.constant 5.000000e-01 : f32
    %329 = vector.broadcast %cst_121 : f32 to vector<8x128xf32>
    %330 = arith.mulf %329, %328 : vector<8x128xf32>
    %cst_122 = arith.constant 5.000000e-01 : f32
    %331 = vector.broadcast %cst_122 : f32 to vector<8x128xf32>
    %332 = arith.addf %330, %331 : vector<8x128xf32>
    %333 = vector.extract_strided_slice %316 {offsets = [0, 256], sizes = [8, 128], strides = [1, 1]} : vector<8x512xf32> to vector<8x128xf32>
    %334 = math.tanh %333 : vector<8x128xf32>
    %335 = vector.extract_strided_slice %316 {offsets = [0, 384], sizes = [8, 128], strides = [1, 1]} : vector<8x512xf32> to vector<8x128xf32>
    %cst_123 = arith.constant 5.000000e-01 : f32
    %336 = vector.broadcast %cst_123 : f32 to vector<8x128xf32>
    %337 = arith.mulf %336, %335 : vector<8x128xf32>
    %338 = math.tanh %337 : vector<8x128xf32>
    %cst_124 = arith.constant 5.000000e-01 : f32
    %339 = vector.broadcast %cst_124 : f32 to vector<8x128xf32>
    %340 = arith.mulf %339, %338 : vector<8x128xf32>
    %cst_125 = arith.constant 5.000000e-01 : f32
    %341 = vector.broadcast %cst_125 : f32 to vector<8x128xf32>
    %342 = arith.addf %340, %341 : vector<8x128xf32>
    %343 = arith.mulf %332, %271 : vector<8x128xf32>
    %344 = arith.mulf %324, %334 : vector<8x128xf32>
    %345 = arith.addf %343, %344 : vector<8x128xf32>
    %346 = math.tanh %345 : vector<8x128xf32>
    %347 = arith.mulf %342, %346 : vector<8x128xf32>
    %cst_126 = arith.constant dense<0.000000e+00> : vector<8x512xf32>
    %348 = tpu.matmul %347, %53, %cst_126 {dimension_numbers = #tpu.dot_dimension_numbers<[1], [0], [0], [1], [0, 0, 1, 1], [], []>} : vector<8x128xf32>, vector<128x512xf32>, vector<8x512xf32> -> vector<8x512xf32>
    %349 = arith.addf %312, %348 : vector<8x512xf32>
    %350 = arith.addf %349, %14 : vector<8x512xf32>
    %351 = vector.extract_strided_slice %350 {offsets = [0, 0], sizes = [8, 128], strides = [1, 1]} : vector<8x512xf32> to vector<8x128xf32>
    %cst_127 = arith.constant 5.000000e-01 : f32
    %352 = vector.broadcast %cst_127 : f32 to vector<8x128xf32>
    %353 = arith.mulf %352, %351 : vector<8x128xf32>
    %354 = math.tanh %353 : vector<8x128xf32>
    %cst_128 = arith.constant 5.000000e-01 : f32
    %355 = vector.broadcast %cst_128 : f32 to vector<8x128xf32>
    %356 = arith.mulf %355, %354 : vector<8x128xf32>
    %cst_129 = arith.constant 5.000000e-01 : f32
    %357 = vector.broadcast %cst_129 : f32 to vector<8x128xf32>
    %358 = arith.addf %356, %357 : vector<8x128xf32>
    %359 = vector.extract_strided_slice %350 {offsets = [0, 128], sizes = [8, 128], strides = [1, 1]} : vector<8x512xf32> to vector<8x128xf32>
    %cst_130 = arith.constant 5.000000e-01 : f32
    %360 = vector.broadcast %cst_130 : f32 to vector<8x128xf32>
    %361 = arith.mulf %360, %359 : vector<8x128xf32>
    %362 = math.tanh %361 : vector<8x128xf32>
    %cst_131 = arith.constant 5.000000e-01 : f32
    %363 = vector.broadcast %cst_131 : f32 to vector<8x128xf32>
    %364 = arith.mulf %363, %362 : vector<8x128xf32>
    %cst_132 = arith.constant 5.000000e-01 : f32
    %365 = vector.broadcast %cst_132 : f32 to vector<8x128xf32>
    %366 = arith.addf %364, %365 : vector<8x128xf32>
    %367 = vector.extract_strided_slice %350 {offsets = [0, 256], sizes = [8, 128], strides = [1, 1]} : vector<8x512xf32> to vector<8x128xf32>
    %368 = math.tanh %367 : vector<8x128xf32>
    %369 = vector.extract_strided_slice %350 {offsets = [0, 384], sizes = [8, 128], strides = [1, 1]} : vector<8x512xf32> to vector<8x128xf32>
    %cst_133 = arith.constant 5.000000e-01 : f32
    %370 = vector.broadcast %cst_133 : f32 to vector<8x128xf32>
    %371 = arith.mulf %370, %369 : vector<8x128xf32>
    %372 = math.tanh %371 : vector<8x128xf32>
    %cst_134 = arith.constant 5.000000e-01 : f32
    %373 = vector.broadcast %cst_134 : f32 to vector<8x128xf32>
    %374 = arith.mulf %373, %372 : vector<8x128xf32>
    %cst_135 = arith.constant 5.000000e-01 : f32
    %375 = vector.broadcast %cst_135 : f32 to vector<8x128xf32>
    %376 = arith.addf %374, %375 : vector<8x128xf32>
    %377 = arith.mulf %366, %305 : vector<8x128xf32>
    %378 = arith.mulf %358, %368 : vector<8x128xf32>
    %379 = arith.addf %377, %378 : vector<8x128xf32>
    %380 = math.tanh %379 : vector<8x128xf32>
    %381 = arith.mulf %376, %380 : vector<8x128xf32>
    %382 = arith.index_cast %311 : i32 to index
    %c0_136 = arith.constant 0 : index
    %383 = vector.load %arg11[%382, %c0_136] : memref<64x128xf32, #tpu.memory_space<vmem>>, vector<8x128xf32>
    tpu.vector_store %arg11[%382, %c0_136], %381 {strides = array<i32>} : memref<64x128xf32, #tpu.memory_space<vmem>>, vector<8x128xf32>,
    %c5_i32 = arith.constant 5 : i32
    %c8_i32_137 = arith.constant 8 : i32
    %384 = arith.muli %c5_i32, %c8_i32_137 : i32
    %385 = tpu.assume_multiple %384, 8 : i32
    %cst_138 = arith.constant dense<0.000000e+00> : vector<8x512xf32>
    %386 = tpu.matmul %381, %52, %cst_138 {dimension_numbers = #tpu.dot_dimension_numbers<[1], [0], [0], [1], [0, 0, 1, 1], [], []>} : vector<8x128xf32>, vector<128x512xf32>, vector<8x512xf32> -> vector<8x512xf32>
    %387 = arith.index_cast %385 : i32 to index
    %c0_139 = arith.constant 0 : index
    %388 = vector.load %arg10[%387, %c0_139] : memref<64x512xf32, #tpu.memory_space<vmem>>, vector<8x512xf32>
    %cst_140 = arith.constant dense<0.000000e+00> : vector<8x512xf32>
    %389 = tpu.matmul %347, %11, %cst_140 {dimension_numbers = #tpu.dot_dimension_numbers<[1], [0], [0], [1], [0, 0, 1, 1], [], []>} : vector<8x128xf32>, vector<128x512xf32>, vector<8x512xf32> -> vector<8x512xf32>
    %390 = arith.addf %388, %389 : vector<8x512xf32>
    %391 = vector.extract_strided_slice %390 {offsets = [0, 0], sizes = [8, 128], strides = [1, 1]} : vector<8x512xf32> to vector<8x128xf32>
    %cst_141 = arith.constant 5.000000e-01 : f32
    %392 = vector.broadcast %cst_141 : f32 to vector<8x128xf32>
    %393 = arith.mulf %392, %391 : vector<8x128xf32>
    %394 = math.tanh %393 : vector<8x128xf32>
    %cst_142 = arith.constant 5.000000e-01 : f32
    %395 = vector.broadcast %cst_142 : f32 to vector<8x128xf32>
    %396 = arith.mulf %395, %394 : vector<8x128xf32>
    %cst_143 = arith.constant 5.000000e-01 : f32
    %397 = vector.broadcast %cst_143 : f32 to vector<8x128xf32>
    %398 = arith.addf %396, %397 : vector<8x128xf32>
    %399 = vector.extract_strided_slice %390 {offsets = [0, 128], sizes = [8, 128], strides = [1, 1]} : vector<8x512xf32> to vector<8x128xf32>
    %cst_144 = arith.constant 5.000000e-01 : f32
    %400 = vector.broadcast %cst_144 : f32 to vector<8x128xf32>
    %401 = arith.mulf %400, %399 : vector<8x128xf32>
    %402 = math.tanh %401 : vector<8x128xf32>
    %cst_145 = arith.constant 5.000000e-01 : f32
    %403 = vector.broadcast %cst_145 : f32 to vector<8x128xf32>
    %404 = arith.mulf %403, %402 : vector<8x128xf32>
    %cst_146 = arith.constant 5.000000e-01 : f32
    %405 = vector.broadcast %cst_146 : f32 to vector<8x128xf32>
    %406 = arith.addf %404, %405 : vector<8x128xf32>
    %407 = vector.extract_strided_slice %390 {offsets = [0, 256], sizes = [8, 128], strides = [1, 1]} : vector<8x512xf32> to vector<8x128xf32>
    %408 = math.tanh %407 : vector<8x128xf32>
    %409 = vector.extract_strided_slice %390 {offsets = [0, 384], sizes = [8, 128], strides = [1, 1]} : vector<8x512xf32> to vector<8x128xf32>
    %cst_147 = arith.constant 5.000000e-01 : f32
    %410 = vector.broadcast %cst_147 : f32 to vector<8x128xf32>
    %411 = arith.mulf %410, %409 : vector<8x128xf32>
    %412 = math.tanh %411 : vector<8x128xf32>
    %cst_148 = arith.constant 5.000000e-01 : f32
    %413 = vector.broadcast %cst_148 : f32 to vector<8x128xf32>
    %414 = arith.mulf %413, %412 : vector<8x128xf32>
    %cst_149 = arith.constant 5.000000e-01 : f32
    %415 = vector.broadcast %cst_149 : f32 to vector<8x128xf32>
    %416 = arith.addf %414, %415 : vector<8x128xf32>
    %417 = arith.mulf %406, %345 : vector<8x128xf32>
    %418 = arith.mulf %398, %408 : vector<8x128xf32>
    %419 = arith.addf %417, %418 : vector<8x128xf32>
    %420 = math.tanh %419 : vector<8x128xf32>
    %421 = arith.mulf %416, %420 : vector<8x128xf32>
    %cst_150 = arith.constant dense<0.000000e+00> : vector<8x512xf32>
    %422 = tpu.matmul %421, %53, %cst_150 {dimension_numbers = #tpu.dot_dimension_numbers<[1], [0], [0], [1], [0, 0, 1, 1], [], []>} : vector<8x128xf32>, vector<128x512xf32>, vector<8x512xf32> -> vector<8x512xf32>
    %423 = arith.addf %386, %422 : vector<8x512xf32>
    %424 = arith.addf %423, %14 : vector<8x512xf32>
    %425 = vector.extract_strided_slice %424 {offsets = [0, 0], sizes = [8, 128], strides = [1, 1]} : vector<8x512xf32> to vector<8x128xf32>
    %cst_151 = arith.constant 5.000000e-01 : f32
    %426 = vector.broadcast %cst_151 : f32 to vector<8x128xf32>
    %427 = arith.mulf %426, %425 : vector<8x128xf32>
    %428 = math.tanh %427 : vector<8x128xf32>
    %cst_152 = arith.constant 5.000000e-01 : f32
    %429 = vector.broadcast %cst_152 : f32 to vector<8x128xf32>
    %430 = arith.mulf %429, %428 : vector<8x128xf32>
    %cst_153 = arith.constant 5.000000e-01 : f32
    %431 = vector.broadcast %cst_153 : f32 to vector<8x128xf32>
    %432 = arith.addf %430, %431 : vector<8x128xf32>
    %433 = vector.extract_strided_slice %424 {offsets = [0, 128], sizes = [8, 128], strides = [1, 1]} : vector<8x512xf32> to vector<8x128xf32>
    %cst_154 = arith.constant 5.000000e-01 : f32
    %434 = vector.broadcast %cst_154 : f32 to vector<8x128xf32>
    %435 = arith.mulf %434, %433 : vector<8x128xf32>
    %436 = math.tanh %435 : vector<8x128xf32>
    %cst_155 = arith.constant 5.000000e-01 : f32
    %437 = vector.broadcast %cst_155 : f32 to vector<8x128xf32>
    %438 = arith.mulf %437, %436 : vector<8x128xf32>
    %cst_156 = arith.constant 5.000000e-01 : f32
    %439 = vector.broadcast %cst_156 : f32 to vector<8x128xf32>
    %440 = arith.addf %438, %439 : vector<8x128xf32>
    %441 = vector.extract_strided_slice %424 {offsets = [0, 256], sizes = [8, 128], strides = [1, 1]} : vector<8x512xf32> to vector<8x128xf32>
    %442 = math.tanh %441 : vector<8x128xf32>
    %443 = vector.extract_strided_slice %424 {offsets = [0, 384], sizes = [8, 128], strides = [1, 1]} : vector<8x512xf32> to vector<8x128xf32>
    %cst_157 = arith.constant 5.000000e-01 : f32
    %444 = vector.broadcast %cst_157 : f32 to vector<8x128xf32>
    %445 = arith.mulf %444, %443 : vector<8x128xf32>
    %446 = math.tanh %445 : vector<8x128xf32>
    %cst_158 = arith.constant 5.000000e-01 : f32
    %447 = vector.broadcast %cst_158 : f32 to vector<8x128xf32>
    %448 = arith.mulf %447, %446 : vector<8x128xf32>
    %cst_159 = arith.constant 5.000000e-01 : f32
    %449 = vector.broadcast %cst_159 : f32 to vector<8x128xf32>
    %450 = arith.addf %448, %449 : vector<8x128xf32>
    %451 = arith.mulf %440, %379 : vector<8x128xf32>
    %452 = arith.mulf %432, %442 : vector<8x128xf32>
    %453 = arith.addf %451, %452 : vector<8x128xf32>
    %454 = math.tanh %453 : vector<8x128xf32>
    %455 = arith.mulf %450, %454 : vector<8x128xf32>
    %456 = arith.index_cast %385 : i32 to index
    %c0_160 = arith.constant 0 : index
    %457 = vector.load %arg11[%456, %c0_160] : memref<64x128xf32, #tpu.memory_space<vmem>>, vector<8x128xf32>
    tpu.vector_store %arg11[%456, %c0_160], %455 {strides = array<i32>} : memref<64x128xf32, #tpu.memory_space<vmem>>, vector<8x128xf32>,
    %c6_i32 = arith.constant 6 : i32
    %c8_i32_161 = arith.constant 8 : i32
    %458 = arith.muli %c6_i32, %c8_i32_161 : i32
    %459 = tpu.assume_multiple %458, 8 : i32
    %cst_162 = arith.constant dense<0.000000e+00> : vector<8x512xf32>
    %460 = tpu.matmul %455, %52, %cst_162 {dimension_numbers = #tpu.dot_dimension_numbers<[1], [0], [0], [1], [0, 0, 1, 1], [], []>} : vector<8x128xf32>, vector<128x512xf32>, vector<8x512xf32> -> vector<8x512xf32>
    %461 = arith.index_cast %459 : i32 to index
    %c0_163 = arith.constant 0 : index
    %462 = vector.load %arg10[%461, %c0_163] : memref<64x512xf32, #tpu.memory_space<vmem>>, vector<8x512xf32>
    %cst_164 = arith.constant dense<0.000000e+00> : vector<8x512xf32>
    %463 = tpu.matmul %421, %11, %cst_164 {dimension_numbers = #tpu.dot_dimension_numbers<[1], [0], [0], [1], [0, 0, 1, 1], [], []>} : vector<8x128xf32>, vector<128x512xf32>, vector<8x512xf32> -> vector<8x512xf32>
    %464 = arith.addf %462, %463 : vector<8x512xf32>
    %465 = vector.extract_strided_slice %464 {offsets = [0, 0], sizes = [8, 128], strides = [1, 1]} : vector<8x512xf32> to vector<8x128xf32>
    %cst_165 = arith.constant 5.000000e-01 : f32
    %466 = vector.broadcast %cst_165 : f32 to vector<8x128xf32>
    %467 = arith.mulf %466, %465 : vector<8x128xf32>
    %468 = math.tanh %467 : vector<8x128xf32>
    %cst_166 = arith.constant 5.000000e-01 : f32
    %469 = vector.broadcast %cst_166 : f32 to vector<8x128xf32>
    %470 = arith.mulf %469, %468 : vector<8x128xf32>
    %cst_167 = arith.constant 5.000000e-01 : f32
    %471 = vector.broadcast %cst_167 : f32 to vector<8x128xf32>
    %472 = arith.addf %470, %471 : vector<8x128xf32>
    %473 = vector.extract_strided_slice %464 {offsets = [0, 128], sizes = [8, 128], strides = [1, 1]} : vector<8x512xf32> to vector<8x128xf32>
    %cst_168 = arith.constant 5.000000e-01 : f32
    %474 = vector.broadcast %cst_168 : f32 to vector<8x128xf32>
    %475 = arith.mulf %474, %473 : vector<8x128xf32>
    %476 = math.tanh %475 : vector<8x128xf32>
    %cst_169 = arith.constant 5.000000e-01 : f32
    %477 = vector.broadcast %cst_169 : f32 to vector<8x128xf32>
    %478 = arith.mulf %477, %476 : vector<8x128xf32>
    %cst_170 = arith.constant 5.000000e-01 : f32
    %479 = vector.broadcast %cst_170 : f32 to vector<8x128xf32>
    %480 = arith.addf %478, %479 : vector<8x128xf32>
    %481 = vector.extract_strided_slice %464 {offsets = [0, 256], sizes = [8, 128], strides = [1, 1]} : vector<8x512xf32> to vector<8x128xf32>
    %482 = math.tanh %481 : vector<8x128xf32>
    %483 = vector.extract_strided_slice %464 {offsets = [0, 384], sizes = [8, 128], strides = [1, 1]} : vector<8x512xf32> to vector<8x128xf32>
    %cst_171 = arith.constant 5.000000e-01 : f32
    %484 = vector.broadcast %cst_171 : f32 to vector<8x128xf32>
    %485 = arith.mulf %484, %483 : vector<8x128xf32>
    %486 = math.tanh %485 : vector<8x128xf32>
    %cst_172 = arith.constant 5.000000e-01 : f32
    %487 = vector.broadcast %cst_172 : f32 to vector<8x128xf32>
    %488 = arith.mulf %487, %486 : vector<8x128xf32>
    %cst_173 = arith.constant 5.000000e-01 : f32
    %489 = vector.broadcast %cst_173 : f32 to vector<8x128xf32>
    %490 = arith.addf %488, %489 : vector<8x128xf32>
    %491 = arith.mulf %480, %419 : vector<8x128xf32>
    %492 = arith.mulf %472, %482 : vector<8x128xf32>
    %493 = arith.addf %491, %492 : vector<8x128xf32>
    %494 = math.tanh %493 : vector<8x128xf32>
    %495 = arith.mulf %490, %494 : vector<8x128xf32>
    %cst_174 = arith.constant dense<0.000000e+00> : vector<8x512xf32>
    %496 = tpu.matmul %495, %53, %cst_174 {dimension_numbers = #tpu.dot_dimension_numbers<[1], [0], [0], [1], [0, 0, 1, 1], [], []>} : vector<8x128xf32>, vector<128x512xf32>, vector<8x512xf32> -> vector<8x512xf32>
    %497 = arith.addf %460, %496 : vector<8x512xf32>
    %498 = arith.addf %497, %14 : vector<8x512xf32>
    %499 = vector.extract_strided_slice %498 {offsets = [0, 0], sizes = [8, 128], strides = [1, 1]} : vector<8x512xf32> to vector<8x128xf32>
    %cst_175 = arith.constant 5.000000e-01 : f32
    %500 = vector.broadcast %cst_175 : f32 to vector<8x128xf32>
    %501 = arith.mulf %500, %499 : vector<8x128xf32>
    %502 = math.tanh %501 : vector<8x128xf32>
    %cst_176 = arith.constant 5.000000e-01 : f32
    %503 = vector.broadcast %cst_176 : f32 to vector<8x128xf32>
    %504 = arith.mulf %503, %502 : vector<8x128xf32>
    %cst_177 = arith.constant 5.000000e-01 : f32
    %505 = vector.broadcast %cst_177 : f32 to vector<8x128xf32>
    %506 = arith.addf %504, %505 : vector<8x128xf32>
    %507 = vector.extract_strided_slice %498 {offsets = [0, 128], sizes = [8, 128], strides = [1, 1]} : vector<8x512xf32> to vector<8x128xf32>
    %cst_178 = arith.constant 5.000000e-01 : f32
    %508 = vector.broadcast %cst_178 : f32 to vector<8x128xf32>
    %509 = arith.mulf %508, %507 : vector<8x128xf32>
    %510 = math.tanh %509 : vector<8x128xf32>
    %cst_179 = arith.constant 5.000000e-01 : f32
    %511 = vector.broadcast %cst_179 : f32 to vector<8x128xf32>
    %512 = arith.mulf %511, %510 : vector<8x128xf32>
    %cst_180 = arith.constant 5.000000e-01 : f32
    %513 = vector.broadcast %cst_180 : f32 to vector<8x128xf32>
    %514 = arith.addf %512, %513 : vector<8x128xf32>
    %515 = vector.extract_strided_slice %498 {offsets = [0, 256], sizes = [8, 128], strides = [1, 1]} : vector<8x512xf32> to vector<8x128xf32>
    %516 = math.tanh %515 : vector<8x128xf32>
    %517 = vector.extract_strided_slice %498 {offsets = [0, 384], sizes = [8, 128], strides = [1, 1]} : vector<8x512xf32> to vector<8x128xf32>
    %cst_181 = arith.constant 5.000000e-01 : f32
    %518 = vector.broadcast %cst_181 : f32 to vector<8x128xf32>
    %519 = arith.mulf %518, %517 : vector<8x128xf32>
    %520 = math.tanh %519 : vector<8x128xf32>
    %cst_182 = arith.constant 5.000000e-01 : f32
    %521 = vector.broadcast %cst_182 : f32 to vector<8x128xf32>
    %522 = arith.mulf %521, %520 : vector<8x128xf32>
    %cst_183 = arith.constant 5.000000e-01 : f32
    %523 = vector.broadcast %cst_183 : f32 to vector<8x128xf32>
    %524 = arith.addf %522, %523 : vector<8x128xf32>
    %525 = arith.mulf %514, %453 : vector<8x128xf32>
    %526 = arith.mulf %506, %516 : vector<8x128xf32>
    %527 = arith.addf %525, %526 : vector<8x128xf32>
    %528 = math.tanh %527 : vector<8x128xf32>
    %529 = arith.mulf %524, %528 : vector<8x128xf32>
    %530 = arith.index_cast %459 : i32 to index
    %c0_184 = arith.constant 0 : index
    %531 = vector.load %arg11[%530, %c0_184] : memref<64x128xf32, #tpu.memory_space<vmem>>, vector<8x128xf32>
    tpu.vector_store %arg11[%530, %c0_184], %529 {strides = array<i32>} : memref<64x128xf32, #tpu.memory_space<vmem>>, vector<8x128xf32>,
    %c7_i32 = arith.constant 7 : i32
    %c8_i32_185 = arith.constant 8 : i32
    %532 = arith.muli %c7_i32, %c8_i32_185 : i32
    %533 = tpu.assume_multiple %532, 8 : i32
    %cst_186 = arith.constant dense<0.000000e+00> : vector<8x512xf32>
    %534 = tpu.matmul %529, %52, %cst_186 {dimension_numbers = #tpu.dot_dimension_numbers<[1], [0], [0], [1], [0, 0, 1, 1], [], []>} : vector<8x128xf32>, vector<128x512xf32>, vector<8x512xf32> -> vector<8x512xf32>
    %535 = arith.index_cast %533 : i32 to index
    %c0_187 = arith.constant 0 : index
    %536 = vector.load %arg10[%535, %c0_187] : memref<64x512xf32, #tpu.memory_space<vmem>>, vector<8x512xf32>
    %cst_188 = arith.constant dense<0.000000e+00> : vector<8x512xf32>
    %537 = tpu.matmul %495, %11, %cst_188 {dimension_numbers = #tpu.dot_dimension_numbers<[1], [0], [0], [1], [0, 0, 1, 1], [], []>} : vector<8x128xf32>, vector<128x512xf32>, vector<8x512xf32> -> vector<8x512xf32>
    %538 = arith.addf %536, %537 : vector<8x512xf32>
    %539 = vector.extract_strided_slice %538 {offsets = [0, 0], sizes = [8, 128], strides = [1, 1]} : vector<8x512xf32> to vector<8x128xf32>
    %cst_189 = arith.constant 5.000000e-01 : f32
    %540 = vector.broadcast %cst_189 : f32 to vector<8x128xf32>
    %541 = arith.mulf %540, %539 : vector<8x128xf32>
    %542 = math.tanh %541 : vector<8x128xf32>
    %cst_190 = arith.constant 5.000000e-01 : f32
    %543 = vector.broadcast %cst_190 : f32 to vector<8x128xf32>
    %544 = arith.mulf %543, %542 : vector<8x128xf32>
    %cst_191 = arith.constant 5.000000e-01 : f32
    %545 = vector.broadcast %cst_191 : f32 to vector<8x128xf32>
    %546 = arith.addf %544, %545 : vector<8x128xf32>
    %547 = vector.extract_strided_slice %538 {offsets = [0, 128], sizes = [8, 128], strides = [1, 1]} : vector<8x512xf32> to vector<8x128xf32>
    %cst_192 = arith.constant 5.000000e-01 : f32
    %548 = vector.broadcast %cst_192 : f32 to vector<8x128xf32>
    %549 = arith.mulf %548, %547 : vector<8x128xf32>
    %550 = math.tanh %549 : vector<8x128xf32>
    %cst_193 = arith.constant 5.000000e-01 : f32
    %551 = vector.broadcast %cst_193 : f32 to vector<8x128xf32>
    %552 = arith.mulf %551, %550 : vector<8x128xf32>
    %cst_194 = arith.constant 5.000000e-01 : f32
    %553 = vector.broadcast %cst_194 : f32 to vector<8x128xf32>
    %554 = arith.addf %552, %553 : vector<8x128xf32>
    %555 = vector.extract_strided_slice %538 {offsets = [0, 256], sizes = [8, 128], strides = [1, 1]} : vector<8x512xf32> to vector<8x128xf32>
    %556 = math.tanh %555 : vector<8x128xf32>
    %557 = vector.extract_strided_slice %538 {offsets = [0, 384], sizes = [8, 128], strides = [1, 1]} : vector<8x512xf32> to vector<8x128xf32>
    %cst_195 = arith.constant 5.000000e-01 : f32
    %558 = vector.broadcast %cst_195 : f32 to vector<8x128xf32>
    %559 = arith.mulf %558, %557 : vector<8x128xf32>
    %560 = math.tanh %559 : vector<8x128xf32>
    %cst_196 = arith.constant 5.000000e-01 : f32
    %561 = vector.broadcast %cst_196 : f32 to vector<8x128xf32>
    %562 = arith.mulf %561, %560 : vector<8x128xf32>
    %cst_197 = arith.constant 5.000000e-01 : f32
    %563 = vector.broadcast %cst_197 : f32 to vector<8x128xf32>
    %564 = arith.addf %562, %563 : vector<8x128xf32>
    %565 = arith.mulf %554, %493 : vector<8x128xf32>
    %566 = arith.mulf %546, %556 : vector<8x128xf32>
    %567 = arith.addf %565, %566 : vector<8x128xf32>
    %568 = math.tanh %567 : vector<8x128xf32>
    %569 = arith.mulf %564, %568 : vector<8x128xf32>
    %cst_198 = arith.constant dense<0.000000e+00> : vector<8x512xf32>
    %570 = tpu.matmul %569, %53, %cst_198 {dimension_numbers = #tpu.dot_dimension_numbers<[1], [0], [0], [1], [0, 0, 1, 1], [], []>} : vector<8x128xf32>, vector<128x512xf32>, vector<8x512xf32> -> vector<8x512xf32>
    %571 = arith.addf %534, %570 : vector<8x512xf32>
    %572 = arith.addf %571, %14 : vector<8x512xf32>
    %573 = vector.extract_strided_slice %572 {offsets = [0, 0], sizes = [8, 128], strides = [1, 1]} : vector<8x512xf32> to vector<8x128xf32>
    %cst_199 = arith.constant 5.000000e-01 : f32
    %574 = vector.broadcast %cst_199 : f32 to vector<8x128xf32>
    %575 = arith.mulf %574, %573 : vector<8x128xf32>
    %576 = math.tanh %575 : vector<8x128xf32>
    %cst_200 = arith.constant 5.000000e-01 : f32
    %577 = vector.broadcast %cst_200 : f32 to vector<8x128xf32>
    %578 = arith.mulf %577, %576 : vector<8x128xf32>
    %cst_201 = arith.constant 5.000000e-01 : f32
    %579 = vector.broadcast %cst_201 : f32 to vector<8x128xf32>
    %580 = arith.addf %578, %579 : vector<8x128xf32>
    %581 = vector.extract_strided_slice %572 {offsets = [0, 128], sizes = [8, 128], strides = [1, 1]} : vector<8x512xf32> to vector<8x128xf32>
    %cst_202 = arith.constant 5.000000e-01 : f32
    %582 = vector.broadcast %cst_202 : f32 to vector<8x128xf32>
    %583 = arith.mulf %582, %581 : vector<8x128xf32>
    %584 = math.tanh %583 : vector<8x128xf32>
    %cst_203 = arith.constant 5.000000e-01 : f32
    %585 = vector.broadcast %cst_203 : f32 to vector<8x128xf32>
    %586 = arith.mulf %585, %584 : vector<8x128xf32>
    %cst_204 = arith.constant 5.000000e-01 : f32
    %587 = vector.broadcast %cst_204 : f32 to vector<8x128xf32>
    %588 = arith.addf %586, %587 : vector<8x128xf32>
    %589 = vector.extract_strided_slice %572 {offsets = [0, 256], sizes = [8, 128], strides = [1, 1]} : vector<8x512xf32> to vector<8x128xf32>
    %590 = math.tanh %589 : vector<8x128xf32>
    %591 = vector.extract_strided_slice %572 {offsets = [0, 384], sizes = [8, 128], strides = [1, 1]} : vector<8x512xf32> to vector<8x128xf32>
    %cst_205 = arith.constant 5.000000e-01 : f32
    %592 = vector.broadcast %cst_205 : f32 to vector<8x128xf32>
    %593 = arith.mulf %592, %591 : vector<8x128xf32>
    %594 = math.tanh %593 : vector<8x128xf32>
    %cst_206 = arith.constant 5.000000e-01 : f32
    %595 = vector.broadcast %cst_206 : f32 to vector<8x128xf32>
    %596 = arith.mulf %595, %594 : vector<8x128xf32>
    %cst_207 = arith.constant 5.000000e-01 : f32
    %597 = vector.broadcast %cst_207 : f32 to vector<8x128xf32>
    %598 = arith.addf %596, %597 : vector<8x128xf32>
    %599 = arith.mulf %588, %527 : vector<8x128xf32>
    %600 = arith.mulf %580, %590 : vector<8x128xf32>
    %601 = arith.addf %599, %600 : vector<8x128xf32>
    %602 = math.tanh %601 : vector<8x128xf32>
    %603 = arith.mulf %598, %602 : vector<8x128xf32>
    %604 = arith.index_cast %533 : i32 to index
    %c0_208 = arith.constant 0 : index
    %605 = vector.load %arg11[%604, %c0_208] : memref<64x128xf32, #tpu.memory_space<vmem>>, vector<8x128xf32>
    tpu.vector_store %arg11[%604, %c0_208], %603 {strides = array<i32>} : memref<64x128xf32, #tpu.memory_space<vmem>>, vector<8x128xf32>,
    %c7_i32_209 = arith.constant 7 : i32
    %c0_210 = arith.constant 0 : index
    %c0_211 = arith.constant 0 : index
    %606 = vector.load %arg11[%c0_210, %c0_211] : memref<64x128xf32, #tpu.memory_space<vmem>>, vector<64x128xf32>
    %c0_212 = arith.constant 0 : index
    %c0_213 = arith.constant 0 : index
    %607 = vector.load %arg7[%c0_212, %c0_213] : memref<128x1xf32, #tpu.memory_space<vmem>>, vector<128x1xf32>
    %cst_214 = arith.constant dense<0.000000e+00> : vector<64x1xf32>
    %608 = tpu.matmul %606, %607, %cst_214 {dimension_numbers = #tpu.dot_dimension_numbers<[1], [0], [0], [1], [0, 0, 1, 1], [], []>} : vector<64x128xf32>, vector<128x1xf32>, vector<64x1xf32> -> vector<64x1xf32>
    %c0_215 = arith.constant 0 : index
    %c0_216 = arith.constant 0 : index
    %609 = vector.load %arg8[%c0_215, %c0_216] : memref<1x1xf32, #tpu.memory_space<vmem>>, vector<1x1xf32>
    %610 = vector.broadcast %609 : vector<1x1xf32> to vector<64x1xf32>
    %611 = arith.addf %608, %610 : vector<64x1xf32>
    %c0_217 = arith.constant 0 : index
    %c0_218 = arith.constant 0 : index
    %612 = vector.load %arg9[%c0_217, %c0_218] : memref<64x1xf32, #tpu.memory_space<vmem>>, vector<64x1xf32>
    tpu.vector_store %arg9[%c0_217, %c0_218], %611 {strides = array<i32>} : memref<64x1xf32, #tpu.memory_space<vmem>>, vector<64x1xf32>,
    return
  }
}

</mosaic_0001>

<llo_original>
// kernel: tpu_custom_call.1
$region0: #{tpu_custom_call.1}
  #allocation0 [shape = 'u32[]', space=smem, size = 0x4, offset = 0x4, fixed_abs, tag = 'smem constant byte address 0x4 - core index']
  #allocation1 [shape = 'u32[144,128]{1,0:T(1,128)}', space=vmem, size = 0x12000, scoped, tag = 'internal scratch']
  #allocation2 [shape = 'f32[64,512]{1,0:T(8,128)}', space=vmem, size = 0x20000, scoped, tag = 'scratch operand']
  #allocation3 [shape = 'f32[64,128]{1,0:T(8,128)}', space=vmem, size = 0x8000, scoped, tag = 'scratch operand']
  #allocation4 [shape = 'f32[128,512]{1,0:T(8,128)}', space=vmem, size = 0x40000, scoped, tag = 'scratch operand']
  #allocation5 [shape = 'f32[128,512]{1,0:T(8,128)}', space=vmem, size = 0x40000, scoped, tag = 'scratch operand']
  #allocation6 [shape = 's32[2]{0}', space=sflag, size = 0x8, scoped, tag = 'scratch operand']
  #allocation7 [shape = 'f32[1,1]{1,0:T(1,128)S(1)}', space=vmem, size = 0x200, scoped, tag = 'scoped memory for tpu_custom_call.1']
  #allocation10 [shape = 's32[]', space=sflag, size = 0x4, offset = 0, fixed_abs, tag = 'sflag constant byte address 0x0 - dummy sync flag']
  #allocation11 [shape = 's32[]', space=sflag, size = 0x4, offset = 0, fixed_abs, tag = 'sflag constant byte address 0x0 - dummy sync flag']
  #allocation12 [shape = 'u32[]', space=smem, size = 0x4, offset = 0x44, fixed_abs, tag = 'smem constant byte address 0x44 - assertion arg 0']
  #allocation13 [shape = 'u32[]', space=smem, size = 0x4, offset = 0x48, fixed_abs, tag = 'smem constant byte address 0x48 - assertion arg 1']
  #allocation14 [shape = 's32[]', space=sflag, size = 0x4, offset = 0, fixed_abs, tag = 'sflag constant byte address 0x0 - dummy sync flag']
  #allocation15 [shape = 's32[]', space=sflag, size = 0x4, offset = 0, fixed_abs, tag = 'sflag constant byte address 0x0 - dummy sync flag']
  %s0 = inlined_call_operand.vmem [shape: f32[64,7], index: 0, kind: input, shape index: {}]
  %s1 = inlined_call_operand.vmem [shape: f32[7,512], index: 1, kind: input, shape index: {}]
  %s2 = inlined_call_operand.hbm [shape: f32[128,512], index: 2, kind: input, shape index: {}]
  %s3 = inlined_call_operand.vmem [shape: f32[1,512], index: 3, kind: input, shape index: {}]
  %s4 = inlined_call_operand.hbm [shape: f32[128,512], index: 4, kind: input, shape index: {}]
  %s5 = inlined_call_operand.hbm [shape: f32[128,512], index: 5, kind: input, shape index: {}]
  %s6 = inlined_call_operand.vmem [shape: f32[1,512], index: 6, kind: input, shape index: {}]
  %s7 = inlined_call_operand.vmem [shape: f32[128,1], index: 7, kind: input, shape index: {}]
  %s8 = inlined_call_operand.<no memory space> [shape: f32[1,1], index: 8, kind: input, shape index: {}]
  %s9 = inlined_call_operand.vmem [shape: f32[64,1], index: 9, kind: output, shape index: {}]
  %s10 = sld [smem:[#allocation0]]
  $region50: #{tpu_custom_call.1} parent=0
    _
  %s12 = ssub.s32 1, %s10
  %s13 = scalar_select 0, %s12, %s10
  %v14 = vstv %s8
  %15 = vst [vmem:[#allocation7] sm:$0x1] %v14
  $region1: #{tpu_custom_call.1} parent=0
    #allocation8 [shape = 'u8[262144]{0}', space=vmem, size = 0x40000, scoped, tag = 'input window, operand 2, single buffered']
    #allocation9 [shape = 's32[1]{0}', space=sflag, size = 0x4, scoped, tag = 'scoped memory for tpu_custom_call.1']
    %16 = vsyncpa [#allocation9], 0
    // Predicated region
    $region2: #{tpu_custom_call.1} parent=1 // pred_check
      _
    $region3: #{tpu_custom_call.1} parent=1 // pred_check_branch
      %18 = sbr.rel (0) target = $region5
    $region4: #{tpu_custom_call.1} parent=1 // pred_region
      _
    $region5: #{tpu_custom_call.1} parent=1 // pred_fallthru
      _
    // Predicated region
    $region6: #{tpu_custom_call.1} parent=1 // pred_check
      _
    $region7: #{tpu_custom_call.1} parent=1 // pred_check_branch
      %20 = sbr.rel (0) target = $region9
    $region8: #{tpu_custom_call.1} parent=1 // pred_region
      _
    $region9: #{tpu_custom_call.1} parent=1 // pred_fallthru
      _
    // Predicated region
    $region10: #{tpu_custom_call.1} parent=1 // pred_check
      _
    $region11: #{tpu_custom_call.1} parent=1 // pred_check_branch
      %22 = sbr.rel (0) target = $region13
    $region12: #{tpu_custom_call.1} parent=1 // pred_region
      %s24 = ssub.s32 8192, 8192
      %25 = vsyncadd [#allocation9], %s24
      %s26 = sshll.u32 [#allocation8], 4
      %s27 = int_to_ptr.vmem [resolvable:$true] %s26
      %32 = dma.hbm_to_vmem [thread:$0]  %s2, 8192, %s27, [#allocation9], 512, 512, 32
    $region13: #{tpu_custom_call.1} parent=1 // pred_fallthru
      _
    // Predicated region
    $region14: #{tpu_custom_call.1} parent=1 // pred_check
      _
    $region15: #{tpu_custom_call.1} parent=1 // pred_check_branch
      %34 = sbr.rel (0) target = $region17
    $region16: #{tpu_custom_call.1} parent=1 // pred_region
      _
    $region17: #{tpu_custom_call.1} parent=1 // pred_fallthru
      _
    // Predicated region
    $region18: #{tpu_custom_call.1} parent=1 // pred_check
      _
    $region19: #{tpu_custom_call.1} parent=1 // pred_check_branch
      %36 = sbr.rel (0) target = $region21
    $region20: #{tpu_custom_call.1} parent=1 // pred_region
      _
    $region21: #{tpu_custom_call.1} parent=1 // pred_fallthru
      _
    // Predicated region
    $region22: #{tpu_custom_call.1} parent=1 // pred_check
      _
    $region23: #{tpu_custom_call.1} parent=1 // pred_check_branch
      %38 = sbr.rel (0) target = $region25
    $region24: #{tpu_custom_call.1} parent=1 // pred_region
      _
    $region25: #{tpu_custom_call.1} parent=1 // pred_fallthru
      _
    // Predicated region
    $region26: #{tpu_custom_call.1} parent=1 // pred_check
      _
    $region27: #{tpu_custom_call.1} parent=1 // pred_check_branch
      %40 = sbr.rel (0) target = $region29
    $region28: #{tpu_custom_call.1} parent=1 // pred_region
      _
    $region29: #{tpu_custom_call.1} parent=1 // pred_fallthru
      _
    // Predicated region
    $region30: #{tpu_custom_call.1} parent=1 // pred_check
      _
    $region31: #{tpu_custom_call.1} parent=1 // pred_check_branch
      %42 = sbr.rel (0) target = $region33
    $region32: #{tpu_custom_call.1} parent=1 // pred_region
      %43 = dma.done [#allocation9], 8192
    $region33: #{tpu_custom_call.1} parent=1 // pred_fallthru
      _
    // Predicated region
    $region34: #{tpu_custom_call.1} parent=1 // pred_check
      _
    $region35: #{tpu_custom_call.1} parent=1 // pred_check_branch
      %45 = sbr.rel target = $region37
    $region36: #{tpu_custom_call.1} parent=1 // pred_region
      %46 = sst [smem:[#allocation12]] [#allocation11]
      %47 = sst [smem:[#allocation13]] [#allocation10]
    $region37: #{tpu_custom_call.1} parent=1 // pred_fallthru
      _
    %49 = shalt.err (0)
    %s51 = sshll.u32 [#allocation4], 4
    %s52 = int_to_ptr.vmem [resolvable:$true] %s51
    %54 = dma.hbm_to_vmem [thread:$0]  %s4, 8192, %s52, [#allocation6]
    %s55 = scalar_lea.sflag [#allocation6], 1
    // Predicated region
    $region38: #{tpu_custom_call.1} parent=1 // pred_check
      _
    $region39: #{tpu_custom_call.1} parent=1 // pred_check_branch
      %57 = sbr.rel target = $region41
    $region40: #{tpu_custom_call.1} parent=1 // pred_region
      %58 = sst [smem:[#allocation12]] [#allocation15]
      %59 = sst [smem:[#allocation13]] [#allocation14]
    $region41: #{tpu_custom_call.1} parent=1 // pred_fallthru
      _
    %61 = shalt.err (0)
    %s63 = sshll.u32 [#allocation5], 4
    %s64 = int_to_ptr.vmem [resolvable:$true] %s63
    %66 = dma.hbm_to_vmem [thread:$0]  %s5, 8192, %s64, %s55
    %v67 = vld [vmem:[%s0] sm:$0xff]
    %v68 = vld [vmem:[%s0 + $0x8] sm:$0xff]
    %v69 = vld [vmem:[%s0 + $0x10] sm:$0xff]
    %v70 = vld [vmem:[%s0 + $0x18] sm:$0xff]
    %v71 = vld [vmem:[%s0 + $0x20] sm:$0xff]
    %v72 = vld [vmem:[%s0 + $0x28] sm:$0xff]
    %v73 = vld [vmem:[%s0 + $0x30] sm:$0xff]
    %v74 = vld [vmem:[%s0 + $0x38] sm:$0xff]
    %v75 = vld [vmem:[%s1] sm:$0x7f]
    %v76 = vld [vmem:[%s1 + $0x8] sm:$0x7f]
    %v77 = vld [vmem:[%s1 + $0x10] sm:$0x7f]
    %v78 = vld [vmem:[%s1 + $0x18] sm:$0x7f]
    %v79 = vld [vmem:[%s3] sm:$0xf]
    %v81 = vlaneseq
    %v82 = vshrl.u32 %v81, 7
    %v83 = vsub.s32 0, %v82
    %v84 = vrot.slane %v79, %v83
    %v85 = vlaneseq
    %v86 = vshrl.u32 %v85, 7
    %v87 = vsub.s32 1, %v86
    %v88 = vrot.slane %v79, %v87
    %v89 = vlaneseq
    %v90 = vshrl.u32 %v89, 7
    %v91 = vsub.s32 2, %v90
    %v92 = vrot.slane %v79, %v91
    %v93 = vlaneseq
    %v94 = vshrl.u32 %v93, 7
    %v95 = vsub.s32 3, %v94
    %v96 = vrot.slane %v79, %v95
    %vm101 = vcmask 56320
    %v103 = vsel %vm101, %v67, 0
    %v106 = vsel %vm101, %v68, 0
    %v109 = vsel %vm101, %v69, 0
    %v112 = vsel %vm101, %v70, 0
    %v115 = vsel %vm101, %v71, 0
    %v118 = vsel %vm101, %v72, 0
    %v121 = vsel %vm101, %v73, 0
    %v124 = vsel %vm101, %v74, 0
    %vm126 = vcmask 1046528
    %v128 = vsel %vm126, %v75, 0
    %v131 = vsel %vm126, %v76, 0
    %v134 = vsel %vm126, %v77, 0
    %v137 = vsel %vm126, %v78, 0
    %139 = vmatprep.subr.mxu0 %v131
    %140 = vmatpush1.msra.mxu0 %v128
    %141 = vmatprep.subr.mxu0 0.0
    %142 = vmatpush1.msra.mxu0 0.0
    %143 = vmatprep.subr.mxu0 0.0
    %144 = vmatpush1.msra.mxu0 0.0
    %145 = vmatprep.subr.mxu0 0.0
    %146 = vmatpush1.msra.mxu0 0.0
    %147 = vmatprep.subr.mxu0 0.0
    %148 = vmatpush1.msra.mxu0 0.0
    %149 = vmatprep.subr.mxu0 0.0
    %150 = vmatpush1.msra.mxu0 0.0
    %151 = vmatprep.subr.mxu0 0.0
    %152 = vmatpush1.msra.mxu0 0.0
    %153 = vmatprep.subr.mxu0 0.0
    %154 = vmatpush1.msra.mxu0 0.0
    %155 = vmatprep.subr.mxu0 0.0
    %156 = vmatpush1.msra.mxu0 0.0
    %157 = vmatprep.subr.mxu0 0.0
    %158 = vmatpush1.msra.mxu0 0.0
    %159 = vmatprep.subr.mxu0 0.0
    %160 = vmatpush1.msra.mxu0 0.0
    %161 = vmatprep.subr.mxu0 0.0
    %162 = vmatpush1.msra.mxu0 0.0
    %163 = vmatprep.subr.mxu0 0.0
    %164 = vmatpush1.msra.mxu0 0.0
    %165 = vmatprep.subr.mxu0 0.0
    %166 = vmatpush1.msra.mxu0 0.0
    %167 = vmatprep.subr.mxu0 0.0
    %168 = vmatpush1.msra.mxu0 0.0
    %169 = vmatprep.subr.mxu0 0.0
    %170 = vmatpush1.msra.mxu0 0.0
    %171 = vmatprep.subr.mxu0 0.0
    %172 = vmatpush1.msra.mxu0 0.0
    %173 = vmatprep.subr.mxu0 0.0
    %174 = vmatpush1.msra.mxu0 0.0
    %175 = vmatprep.subr.mxu0 0.0
    %176 = vmatpush1.msra.mxu0 0.0
    %177 = vmatprep.subr.mxu0 0.0
    %178 = vmatpush1.msra.mxu0 0.0
    %179 = vmatprep.subr.mxu0 0.0
    %180 = vmatpush1.msra.mxu0 0.0
    %181 = vmatprep.subr.mxu0 0.0
    %182 = vmatpush1.msra.mxu0 0.0
    %183 = vmatprep.subr.mxu0 0.0
    %184 = vmatpush1.msra.mxu0 0.0
    %185 = vmatprep.subr.mxu0 0.0
    %186 = vmatpush1.msra.mxu0 0.0
    %187 = vmatprep.subr.mxu0 0.0
    %188 = vmatpush1.msra.mxu0 0.0
    %189 = vmatprep.subr.mxu0 0.0
    %190 = vmatpush1.msra.mxu0 0.0
    %191 = vmatprep.subr.mxu0 0.0
    %192 = vmatpush1.msra.mxu0 0.0
    %193 = vmatprep.subr.mxu0 0.0
    %194 = vmatpush1.msra.mxu0 0.0
    %195 = vmatprep.subr.mxu0 0.0
    %196 = vmatpush1.msra.mxu0 0.0
    %197 = vmatprep.subr.mxu0 0.0
    %198 = vmatpush1.msra.mxu0 0.0
    %199 = vmatprep.subr.mxu0 0.0
    %200 = vmatpush1.msra.mxu0 0.0
    %201 = vmatprep.subr.mxu0 0.0
    %202 = vmatpush1.msra.mxu0 0.0
    %203 = vmatprep.mubr.f32.mxu0 0.0
    %204 = vmatmul.mubr.f32.gmra.mrb[0].mxu0 %v103
    %v205 = vpop.f32.mrb[0].mxu0
    %v206 = vadd.f32 %v84, %v205
    %v207 = vpop.f32.mrb[0].mxu0
    %v208 = vadd.f32 %v88, %v207
    %209 = vmatprep.mubr.f32.mxu0 0.0
    %210 = vmatmul.mubr.f32.gmra.mrb[0].mxu0 %v106
    %v211 = vpop.f32.mrb[0].mxu0
    %v212 = vadd.f32 %v84, %v211
    %v213 = vpop.f32.mrb[0].mxu0
    %v214 = vadd.f32 %v88, %v213
    %215 = vmatprep.mubr.f32.mxu0 0.0
    %216 = vmatmul.mubr.f32.gmra.mrb[0].mxu0 %v109
    %v217 = vpop.f32.mrb[0].mxu0
    %v218 = vadd.f32 %v84, %v217
    %v219 = vpop.f32.mrb[0].mxu0
    %v220 = vadd.f32 %v88, %v219
    %221 = vmatprep.mubr.f32.mxu0 0.0
    %222 = vmatmul.mubr.f32.gmra.mrb[0].mxu0 %v112
    %v223 = vpop.f32.mrb[0].mxu0
    %v224 = vadd.f32 %v84, %v223
    %v225 = vpop.f32.mrb[0].mxu0
    %v226 = vadd.f32 %v88, %v225
    %227 = vmatprep.mubr.f32.mxu0 0.0
    %228 = vmatmul.mubr.f32.gmra.mrb[0].mxu0 %v115
    %v229 = vpop.f32.mrb[0].mxu0
    %v230 = vadd.f32 %v84, %v229
    %v231 = vpop.f32.mrb[0].mxu0
    %v232 = vadd.f32 %v88, %v231
    %233 = vmatprep.mubr.f32.mxu0 0.0
    %234 = vmatmul.mubr.f32.gmra.mrb[0].mxu0 %v118
    %v235 = vpop.f32.mrb[0].mxu0
    %v236 = vadd.f32 %v84, %v235
    %v237 = vpop.f32.mrb[0].mxu0
    %v238 = vadd.f32 %v88, %v237
    %239 = vmatprep.mubr.f32.mxu0 0.0
    %240 = vmatmul.mubr.f32.gmra.mrb[0].mxu0 %v121
    %v241 = vpop.f32.mrb[0].mxu0
    %v242 = vadd.f32 %v84, %v241
    %v243 = vpop.f32.mrb[0].mxu0
    %v244 = vadd.f32 %v88, %v243
    %245 = vmatprep.mubr.f32.mxu0 0.0
    %246 = vmatmul.mubr.f32.gmra.mrb[0].mxu0 %v124
    %v247 = vpop.f32.mrb[0].mxu0
    %v248 = vadd.f32 %v84, %v247
    %v249 = vpop.f32.mrb[0].mxu0
    %v250 = vadd.f32 %v88, %v249
    %251 = vdwg.mxu0
    %252 = vmatprep.subr.mxu0 %v137
    %253 = vmatpush1.msra.mxu0 %v134
    %254 = vmatprep.subr.mxu0 0.0
    %255 = vmatpush1.msra.mxu0 0.0
    %256 = vmatprep.subr.mxu0 0.0
    %257 = vmatpush1.msra.mxu0 0.0
    %258 = vmatprep.subr.mxu0 0.0
    %259 = vmatpush1.msra.mxu0 0.0
    %260 = vmatprep.subr.mxu0 0.0
    %261 = vmatpush1.msra.mxu0 0.0
    %262 = vmatprep.subr.mxu0 0.0
    %263 = vmatpush1.msra.mxu0 0.0
    %264 = vmatprep.subr.mxu0 0.0
    %265 = vmatpush1.msra.mxu0 0.0
    %266 = vmatprep.subr.mxu0 0.0
    %267 = vmatpush1.msra.mxu0 0.0
    %268 = vmatprep.subr.mxu0 0.0
    %269 = vmatpush1.msra.mxu0 0.0
    %270 = vmatprep.subr.mxu0 0.0
    %271 = vmatpush1.msra.mxu0 0.0
    %272 = vmatprep.subr.mxu0 0.0
    %273 = vmatpush1.msra.mxu0 0.0
    %274 = vmatprep.subr.mxu0 0.0
    %275 = vmatpush1.msra.mxu0 0.0
    %276 = vmatprep.subr.mxu0 0.0
    %277 = vmatpush1.msra.mxu0 0.0
    %278 = vmatprep.subr.mxu0 0.0
    %279 = vmatpush1.msra.mxu0 0.0
    %280 = vmatprep.subr.mxu0 0.0
    %281 = vmatpush1.msra.mxu0 0.0
    %282 = vmatprep.subr.mxu0 0.0
    %283 = vmatpush1.msra.mxu0 0.0
    %284 = vmatprep.subr.mxu0 0.0
    %285 = vmatpush1.msra.mxu0 0.0
    %286 = vmatprep.subr.mxu0 0.0
    %287 = vmatpush1.msra.mxu0 0.0
    %288 = vmatprep.subr.mxu0 0.0
    %289 = vmatpush1.msra.mxu0 0.0
    %290 = vmatprep.subr.mxu0 0.0
    %291 = vmatpush1.msra.mxu0 0.0
    %292 = vmatprep.subr.mxu0 0.0
    %293 = vmatpush1.msra.mxu0 0.0
    %294 = vmatprep.subr.mxu0 0.0
    %295 = vmatpush1.msra.mxu0 0.0
    %296 = vmatprep.subr.mxu0 0.0
    %297 = vmatpush1.msra.mxu0 0.0
    %298 = vmatprep.subr.mxu0 0.0
    %299 = vmatpush1.msra.mxu0 0.0
    %300 = vmatprep.subr.mxu0 0.0
    %301 = vmatpush1.msra.mxu0 0.0
    %302 = vmatprep.subr.mxu0 0.0
    %303 = vmatpush1.msra.mxu0 0.0
    %304 = vmatprep.subr.mxu0 0.0
    %305 = vmatpush1.msra.mxu0 0.0
    %306 = vmatprep.subr.mxu0 0.0
    %307 = vmatpush1.msra.mxu0 0.0
    %308 = vmatprep.subr.mxu0 0.0
    %309 = vmatpush1.msra.mxu0 0.0
    %310 = vmatprep.subr.mxu0 0.0
    %311 = vmatpush1.msra.mxu0 0.0
    %312 = vmatprep.subr.mxu0 0.0
    %313 = vmatpush1.msra.mxu0 0.0
    %314 = vmatprep.subr.mxu0 0.0
    %315 = vmatpush1.msra.mxu0 0.0
    %316 = vmatprep.mubr.f32.mxu0 0.0
    %317 = vmatmul.mubr.f32.gmra.mrb[0].mxu0 %v103
    %v318 = vpop.f32.mrb[0].mxu0
    %v319 = vadd.f32 %v92, %v318
    %v320 = vpop.f32.mrb[0].mxu0
    %v321 = vadd.f32 %v96, %v320
    %322 = vmatprep.mubr.f32.mxu0 0.0
    %323 = vmatmul.mubr.f32.gmra.mrb[0].mxu0 %v106
    %v324 = vpop.f32.mrb[0].mxu0
    %v325 = vadd.f32 %v92, %v324
    %v326 = vpop.f32.mrb[0].mxu0
    %v327 = vadd.f32 %v96, %v326
    %328 = vmatprep.mubr.f32.mxu0 0.0
    %329 = vmatmul.mubr.f32.gmra.mrb[0].mxu0 %v109
    %v330 = vpop.f32.mrb[0].mxu0
    %v331 = vadd.f32 %v92, %v330
    %v332 = vpop.f32.mrb[0].mxu0
    %v333 = vadd.f32 %v96, %v332
    %334 = vmatprep.mubr.f32.mxu0 0.0
    %335 = vmatmul.mubr.f32.gmra.mrb[0].mxu0 %v112
    %v336 = vpop.f32.mrb[0].mxu0
    %v337 = vadd.f32 %v92, %v336
    %v338 = vpop.f32.mrb[0].mxu0
    %v339 = vadd.f32 %v96, %v338
    %340 = vmatprep.mubr.f32.mxu0 0.0
    %341 = vmatmul.mubr.f32.gmra.mrb[0].mxu0 %v115
    %v342 = vpop.f32.mrb[0].mxu0
    %v343 = vadd.f32 %v92, %v342
    %v344 = vpop.f32.mrb[0].mxu0
    %v345 = vadd.f32 %v96, %v344
    %346 = vmatprep.mubr.f32.mxu0 0.0
    %347 = vmatmul.mubr.f32.gmra.mrb[0].mxu0 %v118
    %v348 = vpop.f32.mrb[0].mxu0
    %v349 = vadd.f32 %v92, %v348
    %v350 = vpop.f32.mrb[0].mxu0
    %v351 = vadd.f32 %v96, %v350
    %352 = vmatprep.mubr.f32.mxu0 0.0
    %353 = vmatmul.mubr.f32.gmra.mrb[0].mxu0 %v121
    %v354 = vpop.f32.mrb[0].mxu0
    %v355 = vadd.f32 %v92, %v354
    %v356 = vpop.f32.mrb[0].mxu0
    %v357 = vadd.f32 %v96, %v356
    %358 = vmatprep.mubr.f32.mxu0 0.0
    %359 = vmatmul.mubr.f32.gmra.mrb[0].mxu0 %v124
    %v360 = vpop.f32.mrb[0].mxu0
    %v361 = vadd.f32 %v92, %v360
    %v362 = vpop.f32.mrb[0].mxu0
    %v363 = vadd.f32 %v96, %v362
    %364 = vdwg.mxu0
    %365 = vst [vmem:[#allocation2] sm:$0xff] %v206
    %366 = vst [vmem:[#allocation2 + $0x8] sm:$0xff] %v208
    %367 = vst [vmem:[#allocation2 + $0x10] sm:$0xff] %v319
    %368 = vst [vmem:[#allocation2 + $0x18] sm:$0xff] %v321
    %369 = vst [vmem:[#allocation2 + $0x20] sm:$0xff] %v212
    %370 = vst [vmem:[#allocation2 + $0x28] sm:$0xff] %v214
    %371 = vst [vmem:[#allocation2 + $0x30] sm:$0xff] %v325
    %372 = vst [vmem:[#allocation2 + $0x38] sm:$0xff] %v327
    %373 = vst [vmem:[#allocation2 + $0x40] sm:$0xff] %v218
    %374 = vst [vmem:[#allocation2 + $0x48] sm:$0xff] %v220
    %375 = vst [vmem:[#allocation2 + $0x50] sm:$0xff] %v331
    %376 = vst [vmem:[#allocation2 + $0x58] sm:$0xff] %v333
    %377 = vst [vmem:[#allocation2 + $0x60] sm:$0xff] %v224
    %378 = vst [vmem:[#allocation2 + $0x68] sm:$0xff] %v226
    %379 = vst [vmem:[#allocation2 + $0x70] sm:$0xff] %v337
    %380 = vst [vmem:[#allocation2 + $0x78] sm:$0xff] %v339
    %381 = vst [vmem:[#allocation2 + $0x80] sm:$0xff] %v230
    %382 = vst [vmem:[#allocation2 + $0x88] sm:$0xff] %v232
    %383 = vst [vmem:[#allocation2 + $0x90] sm:$0xff] %v343
    %384 = vst [vmem:[#allocation2 + $0x98] sm:$0xff] %v345
    %385 = vst [vmem:[#allocation2 + $0xa0] sm:$0xff] %v236
    %386 = vst [vmem:[#allocation2 + $0xa8] sm:$0xff] %v238
    %387 = vst [vmem:[#allocation2 + $0xb0] sm:$0xff] %v349
    %388 = vst [vmem:[#allocation2 + $0xb8] sm:$0xff] %v351
    %389 = vst [vmem:[#allocation2 + $0xc0] sm:$0xff] %v242
    %390 = vst [vmem:[#allocation2 + $0xc8] sm:$0xff] %v244
    %391 = vst [vmem:[#allocation2 + $0xd0] sm:$0xff] %v355
    %392 = vst [vmem:[#allocation2 + $0xd8] sm:$0xff] %v357
    %393 = vst [vmem:[#allocation2 + $0xe0] sm:$0xff] %v248
    %394 = vst [vmem:[#allocation2 + $0xe8] sm:$0xff] %v250
    %395 = vst [vmem:[#allocation2 + $0xf0] sm:$0xff] %v361
    %396 = vst [vmem:[#allocation2 + $0xf8] sm:$0xff] %v363
    %v397 = vld [vmem:[#allocation8] sm:$0xff]
    %v398 = vld [vmem:[#allocation8 + $0x8] sm:$0xff]
    %v399 = vld [vmem:[#allocation8 + $0x10] sm:$0xff]
    %v400 = vld [vmem:[#allocation8 + $0x18] sm:$0xff]
    %v401 = vld [vmem:[#allocation8 + $0x20] sm:$0xff]
    %v402 = vld [vmem:[#allocation8 + $0x28] sm:$0xff]
    %v403 = vld [vmem:[#allocation8 + $0x30] sm:$0xff]
    %v404 = vld [vmem:[#allocation8 + $0x38] sm:$0xff]
    %v405 = vld [vmem:[#allocation8 + $0x40] sm:$0xff]
    %v406 = vld [vmem:[#allocation8 + $0x48] sm:$0xff]
    %v407 = vld [vmem:[#allocation8 + $0x50] sm:$0xff]
    %v408 = vld [vmem:[#allocation8 + $0x58] sm:$0xff]
    %v409 = vld [vmem:[#allocation8 + $0x60] sm:$0xff]
    %v410 = vld [vmem:[#allocation8 + $0x68] sm:$0xff]
    %v411 = vld [vmem:[#allocation8 + $0x70] sm:$0xff]
    %v412 = vld [vmem:[#allocation8 + $0x78] sm:$0xff]
    %v413 = vld [vmem:[#allocation8 + $0x80] sm:$0xff]
    %v414 = vld [vmem:[#allocation8 + $0x88] sm:$0xff]
    %v415 = vld [vmem:[#allocation8 + $0x90] sm:$0xff]
    %v416 = vld [vmem:[#allocation8 + $0x98] sm:$0xff]
    %v417 = vld [vmem:[#allocation8 + $0xa0] sm:$0xff]
    %v418 = vld [vmem:[#allocation8 + $0xa8] sm:$0xff]
    %v419 = vld [vmem:[#allocation8 + $0xb0] sm:$0xff]
    %v420 = vld [vmem:[#allocation8 + $0xb8] sm:$0xff]
    %v421 = vld [vmem:[#allocation8 + $0xc0] sm:$0xff]
    %v422 = vld [vmem:[#allocation8 + $0xc8] sm:$0xff]
    %v423 = vld [vmem:[#allocation8 + $0xd0] sm:$0xff]
    %v424 = vld [vmem:[#allocation8 + $0xd8] sm:$0xff]
    %v425 = vld [vmem:[#allocation8 + $0xe0] sm:$0xff]
    %v426 = vld [vmem:[#allocation8 + $0xe8] sm:$0xff]
    %v427 = vld [vmem:[#allocation8 + $0xf0] sm:$0xff]
    %v428 = vld [vmem:[#allocation8 + $0xf8] sm:$0xff]
    %v429 = vld [vmem:[#allocation8 + $0x100] sm:$0xff]
    %v430 = vld [vmem:[#allocation8 + $0x108] sm:$0xff]
    %v431 = vld [vmem:[#allocation8 + $0x110] sm:$0xff]
    %v432 = vld [vmem:[#allocation8 + $0x118] sm:$0xff]
    %v433 = vld [vmem:[#allocation8 + $0x120] sm:$0xff]
    %v434 = vld [vmem:[#allocation8 + $0x128] sm:$0xff]
    %v435 = vld [vmem:[#allocation8 + $0x130] sm:$0xff]
    %v436 = vld [vmem:[#allocation8 + $0x138] sm:$0xff]
    %v437 = vld [vmem:[#allocation8 + $0x140] sm:$0xff]
    %v438 = vld [vmem:[#allocation8 + $0x148] sm:$0xff]
    %v439 = vld [vmem:[#allocation8 + $0x150] sm:$0xff]
    %v440 = vld [vmem:[#allocation8 + $0x158] sm:$0xff]
    %v441 = vld [vmem:[#allocation8 + $0x160] sm:$0xff]
    %v442 = vld [vmem:[#allocation8 + $0x168] sm:$0xff]
    %v443 = vld [vmem:[#allocation8 + $0x170] sm:$0xff]
    %v444 = vld [vmem:[#allocation8 + $0x178] sm:$0xff]
    %v445 = vld [vmem:[#allocation8 + $0x180] sm:$0xff]
    %v446 = vld [vmem:[#allocation8 + $0x188] sm:$0xff]
    %v447 = vld [vmem:[#allocation8 + $0x190] sm:$0xff]
    %v448 = vld [vmem:[#allocation8 + $0x198] sm:$0xff]
    %v449 = vld [vmem:[#allocation8 + $0x1a0] sm:$0xff]
    %v450 = vld [vmem:[#allocation8 + $0x1a8] sm:$0xff]
    %v451 = vld [vmem:[#allocation8 + $0x1b0] sm:$0xff]
    %v452 = vld [vmem:[#allocation8 + $0x1b8] sm:$0xff]
    %v453 = vld [vmem:[#allocation8 + $0x1c0] sm:$0xff]
    %v454 = vld [vmem:[#allocation8 + $0x1c8] sm:$0xff]
    %v455 = vld [vmem:[#allocation8 + $0x1d0] sm:$0xff]
    %v456 = vld [vmem:[#allocation8 + $0x1d8] sm:$0xff]
    %v457 = vld [vmem:[#allocation8 + $0x1e0] sm:$0xff]
    %v458 = vld [vmem:[#allocation8 + $0x1e8] sm:$0xff]
    %v459 = vld [vmem:[#allocation8 + $0x1f0] sm:$0xff]
    %v460 = vld [vmem:[#allocation8 + $0x1f8] sm:$0xff]
    %v461 = vld [vmem:[%s6] sm:$0xf]
    %v463 = vlaneseq
    %v464 = vshrl.u32 %v463, 7
    %v465 = vsub.s32 0, %v464
    %v466 = vrot.slane %v461, %v465
    %v467 = vlaneseq
    %v468 = vshrl.u32 %v467, 7
    %v469 = vsub.s32 1, %v468
    %v470 = vrot.slane %v461, %v469
    %v471 = vlaneseq
    %v472 = vshrl.u32 %v471, 7
    %v473 = vsub.s32 2, %v472
    %v474 = vrot.slane %v461, %v473
    %v475 = vlaneseq
    %v476 = vshrl.u32 %v475, 7
    %v477 = vsub.s32 3, %v476
    %v478 = vrot.slane %v461, %v477
    %v483 = vld [vmem:[#allocation2] sm:$0xff]
    %v484 = vld [vmem:[#allocation2 + $0x8] sm:$0xff]
    %v485 = vld [vmem:[#allocation2 + $0x10] sm:$0xff]
    %v486 = vld [vmem:[#allocation2 + $0x18] sm:$0xff]
    %v487 = vmul.f32 %v483, 0.5
    %v488 = vtanh.pop %v487
    %v489 = vmul.f32 %v488, 0.5
    %v490 = vadd.f32 %v489, 0.5
    %v491 = vmul.f32 %v484, 0.5
    %v492 = vtanh.pop %v491
    %v493 = vmul.f32 %v492, 0.5
    %v494 = vadd.f32 %v493, 0.5
    %v495 = vtanh.pop %v485
    %v496 = vmul.f32 %v486, 0.5
    %v497 = vtanh.pop %v496
    %v498 = vmul.f32 %v497, 0.5
    %v499 = vadd.f32 %v498, 0.5
    %v500 = vmul.f32 %v494, 0.0
    %v501 = vmul.f32 %v490, %v495
    %v502 = vadd.f32 %v500, %v501
    %v503 = vtanh.pop %v502
    %v504 = vmul.f32 %v499, %v503
    %s505 = smul.u32 8, 16
    %s506 = smul.u32 %s505, 4
    %s507 = sshll.u32 %s506, 4
    %508 = dma.done [#allocation6], %s507
    %s509 = sshll.u32 %s506, 4
    %510 = dma.done %s55, %s509
    %v511 = vld [vmem:[#allocation4] sm:$0xff]
    %v512 = vld [vmem:[#allocation4 + $0x8] sm:$0xff]
    %v513 = vld [vmem:[#allocation4 + $0x10] sm:$0xff]
    %v514 = vld [vmem:[#allocation4 + $0x18] sm:$0xff]
    %v515 = vld [vmem:[#allocation4 + $0x20] sm:$0xff]
    %v516 = vld [vmem:[#allocation4 + $0x28] sm:$0xff]
    %v517 = vld [vmem:[#allocation4 + $0x30] sm:$0xff]
    %v518 = vld [vmem:[#allocation4 + $0x38] sm:$0xff]
    %v519 = vld [vmem:[#allocation4 + $0x40] sm:$0xff]
    %v520 = vld [vmem:[#allocation4 + $0x48] sm:$0xff]
    %v521 = vld [vmem:[#allocation4 + $0x50] sm:$0xff]
    %v522 = vld [vmem:[#allocation4 + $0x58] sm:$0xff]
    %v523 = vld [vmem:[#allocation4 + $0x60] sm:$0xff]
    %v524 = vld [vmem:[#allocation4 + $0x68] sm:$0xff]
    %v525 = vld [vmem:[#allocation4 + $0x70] sm:$0xff]
    %v526 = vld [vmem:[#allocation4 + $0x78] sm:$0xff]
    %v527 = vld [vmem:[#allocation4 + $0x80] sm:$0xff]
    %v528 = vld [vmem:[#allocation4 + $0x88] sm:$0xff]
    %v529 = vld [vmem:[#allocation4 + $0x90] sm:$0xff]
    %v530 = vld [vmem:[#allocation4 + $0x98] sm:$0xff]
    %v531 = vld [vmem:[#allocation4 + $0xa0] sm:$0xff]
    %v532 = vld [vmem:[#allocation4 + $0xa8] sm:$0xff]
    %v533 = vld [vmem:[#allocation4 + $0xb0] sm:$0xff]
    %v534 = vld [vmem:[#allocation4 + $0xb8] sm:$0xff]
    %v535 = vld [vmem:[#allocation4 + $0xc0] sm:$0xff]
    %v536 = vld [vmem:[#allocation4 + $0xc8] sm:$0xff]
    %v537 = vld [vmem:[#allocation4 + $0xd0] sm:$0xff]
    %v538 = vld [vmem:[#allocation4 + $0xd8] sm:$0xff]
    %v539 = vld [vmem:[#allocation4 + $0xe0] sm:$0xff]
    %v540 = vld [vmem:[#allocation4 + $0xe8] sm:$0xff]
    %v541 = vld [vmem:[#allocation4 + $0xf0] sm:$0xff]
    %v542 = vld [vmem:[#allocation4 + $0xf8] sm:$0xff]
    %v543 = vld [vmem:[#allocation4 + $0x100] sm:$0xff]
    %v544 = vld [vmem:[#allocation4 + $0x108] sm:$0xff]
    %v545 = vld [vmem:[#allocation4 + $0x110] sm:$0xff]
    %v546 = vld [vmem:[#allocation4 + $0x118] sm:$0xff]
    %v547 = vld [vmem:[#allocation4 + $0x120] sm:$0xff]
    %v548 = vld [vmem:[#allocation4 + $0x128] sm:$0xff]
    %v549 = vld [vmem:[#allocation4 + $0x130] sm:$0xff]
    %v550 = vld [vmem:[#allocation4 + $0x138] sm:$0xff]
    %v551 = vld [vmem:[#allocation4 + $0x140] sm:$0xff]
    %v552 = vld [vmem:[#allocation4 + $0x148] sm:$0xff]
    %v553 = vld [vmem:[#allocation4 + $0x150] sm:$0xff]
    %v554 = vld [vmem:[#allocation4 + $0x158] sm:$0xff]
    %v555 = vld [vmem:[#allocation4 + $0x160] sm:$0xff]
    %v556 = vld [vmem:[#allocation4 + $0x168] sm:$0xff]
    %v557 = vld [vmem:[#allocation4 + $0x170] sm:$0xff]
    %v558 = vld [vmem:[#allocation4 + $0x178] sm:$0xff]
    %v559 = vld [vmem:[#allocation4 + $0x180] sm:$0xff]
    %v560 = vld [vmem:[#allocation4 + $0x188] sm:$0xff]
    %v561 = vld [vmem:[#allocation4 + $0x190] sm:$0xff]
    %v562 = vld [vmem:[#allocation4 + $0x198] sm:$0xff]
    %v563 = vld [vmem:[#allocation4 + $0x1a0] sm:$0xff]
    %v564 = vld [vmem:[#allocation4 + $0x1a8] sm:$0xff]
    %v565 = vld [vmem:[#allocation4 + $0x1b0] sm:$0xff]
    %v566 = vld [vmem:[#allocation4 + $0x1b8] sm:$0xff]
    %v567 = vld [vmem:[#allocation4 + $0x1c0] sm:$0xff]
    %v568 = vld [vmem:[#allocation4 + $0x1c8] sm:$0xff]
    %v569 = vld [vmem:[#allocation4 + $0x1d0] sm:$0xff]
    %v570 = vld [vmem:[#allocation4 + $0x1d8] sm:$0xff]
    %v571 = vld [vmem:[#allocation4 + $0x1e0] sm:$0xff]
    %v572 = vld [vmem:[#allocation4 + $0x1e8] sm:$0xff]
    %v573 = vld [vmem:[#allocation4 + $0x1f0] sm:$0xff]
    %v574 = vld [vmem:[#allocation4 + $0x1f8] sm:$0xff]
    %v575 = vld [vmem:[#allocation5] sm:$0xff]
    %v576 = vld [vmem:[#allocation5 + $0x8] sm:$0xff]
    %v577 = vld [vmem:[#allocation5 + $0x10] sm:$0xff]
    %v578 = vld [vmem:[#allocation5 + $0x18] sm:$0xff]
    %v579 = vld [vmem:[#allocation5 + $0x20] sm:$0xff]
    %v580 = vld [vmem:[#allocation5 + $0x28] sm:$0xff]
    %v581 = vld [vmem:[#allocation5 + $0x30] sm:$0xff]
    %v582 = vld [vmem:[#allocation5 + $0x38] sm:$0xff]
    %v583 = vld [vmem:[#allocation5 + $0x40] sm:$0xff]
    %v584 = vld [vmem:[#allocation5 + $0x48] sm:$0xff]
    %v585 = vld [vmem:[#allocation5 + $0x50] sm:$0xff]
    %v586 = vld [vmem:[#allocation5 + $0x58] sm:$0xff]
    %v587 = vld [vmem:[#allocation5 + $0x60] sm:$0xff]
    %v588 = vld [vmem:[#allocation5 + $0x68] sm:$0xff]
    %v589 = vld [vmem:[#allocation5 + $0x70] sm:$0xff]
    %v590 = vld [vmem:[#allocation5 + $0x78] sm:$0xff]
    %v591 = vld [vmem:[#allocation5 + $0x80] sm:$0xff]
    %v592 = vld [vmem:[#allocation5 + $0x88] sm:$0xff]
    %v593 = vld [vmem:[#allocation5 + $0x90] sm:$0xff]
    %v594 = vld [vmem:[#allocation5 + $0x98] sm:$0xff]
    %v595 = vld [vmem:[#allocation5 + $0xa0] sm:$0xff]
    %v596 = vld [vmem:[#allocation5 + $0xa8] sm:$0xff]
    %v597 = vld [vmem:[#allocation5 + $0xb0] sm:$0xff]
    %v598 = vld [vmem:[#allocation5 + $0xb8] sm:$0xff]
    %v599 = vld [vmem:[#allocation5 + $0xc0] sm:$0xff]
    %v600 = vld [vmem:[#allocation5 + $0xc8] sm:$0xff]
    %v601 = vld [vmem:[#allocation5 + $0xd0] sm:$0xff]
    %v602 = vld [vmem:[#allocation5 + $0xd8] sm:$0xff]
    %v603 = vld [vmem:[#allocation5 + $0xe0] sm:$0xff]
    %v604 = vld [vmem:[#allocation5 + $0xe8] sm:$0xff]
    %v605 = vld [vmem:[#allocation5 + $0xf0] sm:$0xff]
    %v606 = vld [vmem:[#allocation5 + $0xf8] sm:$0xff]
    %v607 = vld [vmem:[#allocation5 + $0x100] sm:$0xff]
    %v608 = vld [vmem:[#allocation5 + $0x108] sm:$0xff]
    %v609 = vld [vmem:[#allocation5 + $0x110] sm:$0xff]
    %v610 = vld [vmem:[#allocation5 + $0x118] sm:$0xff]
    %v611 = vld [vmem:[#allocation5 + $0x120] sm:$0xff]
    %v612 = vld [vmem:[#allocation5 + $0x128] sm:$0xff]
    %v613 = vld [vmem:[#allocation5 + $0x130] sm:$0xff]
    %v614 = vld [vmem:[#allocation5 + $0x138] sm:$0xff]
    %v615 = vld [vmem:[#allocation5 + $0x140] sm:$0xff]
    %v616 = vld [vmem:[#allocation5 + $0x148] sm:$0xff]
    %v617 = vld [vmem:[#allocation5 + $0x150] sm:$0xff]
    %v618 = vld [vmem:[#allocation5 + $0x158] sm:$0xff]
    %v619 = vld [vmem:[#allocation5 + $0x160] sm:$0xff]
    %v620 = vld [vmem:[#allocation5 + $0x168] sm:$0xff]
    %v621 = vld [vmem:[#allocation5 + $0x170] sm:$0xff]
    %v622 = vld [vmem:[#allocation5 + $0x178] sm:$0xff]
    %v623 = vld [vmem:[#allocation5 + $0x180] sm:$0xff]
    %v624 = vld [vmem:[#allocation5 + $0x188] sm:$0xff]
    %v625 = vld [vmem:[#allocation5 + $0x190] sm:$0xff]
    %v626 = vld [vmem:[#allocation5 + $0x198] sm:$0xff]
    %v627 = vld [vmem:[#allocation5 + $0x1a0] sm:$0xff]
    %v628 = vld [vmem:[#allocation5 + $0x1a8] sm:$0xff]
    %v629 = vld [vmem:[#allocation5 + $0x1b0] sm:$0xff]
    %v630 = vld [vmem:[#allocation5 + $0x1b8] sm:$0xff]
    %v631 = vld [vmem:[#allocation5 + $0x1c0] sm:$0xff]
    %v632 = vld [vmem:[#allocation5 + $0x1c8] sm:$0xff]
    %v633 = vld [vmem:[#allocation5 + $0x1d0] sm:$0xff]
    %v634 = vld [vmem:[#allocation5 + $0x1d8] sm:$0xff]
    %v635 = vld [vmem:[#allocation5 + $0x1e0] sm:$0xff]
    %v636 = vld [vmem:[#allocation5 + $0x1e8] sm:$0xff]
    %v637 = vld [vmem:[#allocation5 + $0x1f0] sm:$0xff]
    %v638 = vld [vmem:[#allocation5 + $0x1f8] sm:$0xff]
    %639 = vmatprep.subr.mxu0 %v576
    %640 = vmatpush1.msra.mxu0 %v575
    %641 = vmatprep.subr.mxu0 %v580
    %642 = vmatpush1.msra.mxu0 %v579
    %643 = vmatprep.subr.mxu0 %v584
    %644 = vmatpush1.msra.mxu0 %v583
    %645 = vmatprep.subr.mxu0 %v588
    %646 = vmatpush1.msra.mxu0 %v587
    %647 = vmatprep.subr.mxu0 %v592
    %648 = vmatpush1.msra.mxu0 %v591
    %649 = vmatprep.subr.mxu0 %v596
    %650 = vmatpush1.msra.mxu0 %v595
    %651 = vmatprep.subr.mxu0 %v600
    %652 = vmatpush1.msra.mxu0 %v599
    %653 = vmatprep.subr.mxu0 %v604
    %654 = vmatpush1.msra.mxu0 %v603
    %655 = vmatprep.subr.mxu0 %v608
    %656 = vmatpush1.msra.mxu0 %v607
    %657 = vmatprep.subr.mxu0 %v612
    %658 = vmatpush1.msra.mxu0 %v611
    %659 = vmatprep.subr.mxu0 %v616
    %660 = vmatpush1.msra.mxu0 %v615
    %661 = vmatprep.subr.mxu0 %v620
    %662 = vmatpush1.msra.mxu0 %v619
    %663 = vmatprep.subr.mxu0 %v624
    %664 = vmatpush1.msra.mxu0 %v623
    %665 = vmatprep.subr.mxu0 %v628
    %666 = vmatpush1.msra.mxu0 %v627
    %667 = vmatprep.subr.mxu0 %v632
    %668 = vmatpush1.msra.mxu0 %v631
    %669 = vmatprep.subr.mxu0 %v636
    %670 = vmatpush1.msra.mxu0 %v635
    %671 = vmatprep.subr.mxu0 0.0
    %672 = vmatpush1.msra.mxu0 0.0
    %673 = vmatprep.subr.mxu0 0.0
    %674 = vmatpush1.msra.mxu0 0.0
    %675 = vmatprep.subr.mxu0 0.0
    %676 = vmatpush1.msra.mxu0 0.0
    %677 = vmatprep.subr.mxu0 0.0
    %678 = vmatpush1.msra.mxu0 0.0
    %679 = vmatprep.subr.mxu0 0.0
    %680 = vmatpush1.msra.mxu0 0.0
    %681 = vmatprep.subr.mxu0 0.0
    %682 = vmatpush1.msra.mxu0 0.0
    %683 = vmatprep.subr.mxu0 0.0
    %684 = vmatpush1.msra.mxu0 0.0
    %685 = vmatprep.subr.mxu0 0.0
    %686 = vmatpush1.msra.mxu0 0.0
    %687 = vmatprep.subr.mxu0 0.0
    %688 = vmatpush1.msra.mxu0 0.0
    %689 = vmatprep.subr.mxu0 0.0
    %690 = vmatpush1.msra.mxu0 0.0
    %691 = vmatprep.subr.mxu0 0.0
    %692 = vmatpush1.msra.mxu0 0.0
    %693 = vmatprep.subr.mxu0 0.0
    %694 = vmatpush1.msra.mxu0 0.0
    %695 = vmatprep.subr.mxu0 0.0
    %696 = vmatpush1.msra.mxu0 0.0
    %697 = vmatprep.subr.mxu0 0.0
    %698 = vmatpush1.msra.mxu0 0.0
    %699 = vmatprep.subr.mxu0 0.0
    %700 = vmatpush1.msra.mxu0 0.0
    %701 = vmatprep.subr.mxu0 0.0
    %702 = vmatpush1.msra.mxu0 0.0
    %703 = vmatprep.mubr.f32.mxu0 0.0
    %704 = vmatmul.mubr.f32.gmra.mrb[0].mxu0 %v504
    %v705 = vpop.f32.mrb[0].mxu0
    %v706 = vadd.f32 %v466, %v705
    %v707 = vpop.f32.mrb[0].mxu0
    %v708 = vadd.f32 %v470, %v707
    %709 = vdwg.mxu0
    %710 = vmatprep.subr.mxu0 %v578
    %711 = vmatpush1.msra.mxu0 %v577
    %712 = vmatprep.subr.mxu0 %v582
    %713 = vmatpush1.msra.mxu0 %v581
    %714 = vmatprep.subr.mxu0 %v586
    %715 = vmatpush1.msra.mxu0 %v585
    %716 = vmatprep.subr.mxu0 %v590
    %717 = vmatpush1.msra.mxu0 %v589
    %718 = vmatprep.subr.mxu0 %v594
    %719 = vmatpush1.msra.mxu0 %v593
    %720 = vmatprep.subr.mxu0 %v598
    %721 = vmatpush1.msra.mxu0 %v597
    %722 = vmatprep.subr.mxu0 %v602
    %723 = vmatpush1.msra.mxu0 %v601
    %724 = vmatprep.subr.mxu0 %v606
    %725 = vmatpush1.msra.mxu0 %v605
    %726 = vmatprep.subr.mxu0 %v610
    %727 = vmatpush1.msra.mxu0 %v609
    %728 = vmatprep.subr.mxu0 %v614
    %729 = vmatpush1.msra.mxu0 %v613
    %730 = vmatprep.subr.mxu0 %v618
    %731 = vmatpush1.msra.mxu0 %v617
    %732 = vmatprep.subr.mxu0 %v622
    %733 = vmatpush1.msra.mxu0 %v621
    %734 = vmatprep.subr.mxu0 %v626
    %735 = vmatpush1.msra.mxu0 %v625
    %736 = vmatprep.subr.mxu0 %v630
    %737 = vmatpush1.msra.mxu0 %v629
    %738 = vmatprep.subr.mxu0 %v634
    %739 = vmatpush1.msra.mxu0 %v633
    %740 = vmatprep.subr.mxu0 %v638
    %741 = vmatpush1.msra.mxu0 %v637
    %742 = vmatprep.subr.mxu0 0.0
    %743 = vmatpush1.msra.mxu0 0.0
    %744 = vmatprep.subr.mxu0 0.0
    %745 = vmatpush1.msra.mxu0 0.0
    %746 = vmatprep.subr.mxu0 0.0
    %747 = vmatpush1.msra.mxu0 0.0
    %748 = vmatprep.subr.mxu0 0.0
    %749 = vmatpush1.msra.mxu0 0.0
    %750 = vmatprep.subr.mxu0 0.0
    %751 = vmatpush1.msra.mxu0 0.0
    %752 = vmatprep.subr.mxu0 0.0
    %753 = vmatpush1.msra.mxu0 0.0
    %754 = vmatprep.subr.mxu0 0.0
    %755 = vmatpush1.msra.mxu0 0.0
    %756 = vmatprep.subr.mxu0 0.0
    %757 = vmatpush1.msra.mxu0 0.0
    %758 = vmatprep.subr.mxu0 0.0
    %759 = vmatpush1.msra.mxu0 0.0
    %760 = vmatprep.subr.mxu0 0.0
    %761 = vmatpush1.msra.mxu0 0.0
    %762 = vmatprep.subr.mxu0 0.0
    %763 = vmatpush1.msra.mxu0 0.0
    %764 = vmatprep.subr.mxu0 0.0
    %765 = vmatpush1.msra.mxu0 0.0
    %766 = vmatprep.subr.mxu0 0.0
    %767 = vmatpush1.msra.mxu0 0.0
    %768 = vmatprep.subr.mxu0 0.0
    %769 = vmatpush1.msra.mxu0 0.0
    %770 = vmatprep.subr.mxu0 0.0
    %771 = vmatpush1.msra.mxu0 0.0
    %772 = vmatprep.subr.mxu0 0.0
    %773 = vmatpush1.msra.mxu0 0.0
    %774 = vmatprep.mubr.f32.mxu0 0.0
    %775 = vmatmul.mubr.f32.gmra.mrb[0].mxu0 %v504
    %v776 = vpop.f32.mrb[0].mxu0
    %v777 = vadd.f32 %v474, %v776
    %v778 = vpop.f32.mrb[0].mxu0
    %v779 = vadd.f32 %v478, %v778
    %780 = vdwg.mxu0
    %v781 = vmul.f32 %v706, 0.5
    %v782 = vtanh.pop %v781
    %v783 = vmul.f32 %v782, 0.5
    %v784 = vadd.f32 %v783, 0.5
    %v785 = vmul.f32 %v708, 0.5
    %v786 = vtanh.pop %v785
    %v787 = vmul.f32 %v786, 0.5
    %v788 = vadd.f32 %v787, 0.5
    %v789 = vtanh.pop %v777
    %v790 = vmul.f32 %v779, 0.5
    %v791 = vtanh.pop %v790
    %v792 = vmul.f32 %v791, 0.5
    %v793 = vadd.f32 %v792, 0.5
    %v794 = vmul.f32 %v788, 0.0
    %v795 = vmul.f32 %v784, %v789
    %v796 = vadd.f32 %v794, %v795
    %v797 = vtanh.pop %v796
    %v798 = vmul.f32 %v793, %v797
    %799 = vst [vmem:[#allocation3] sm:$0xff] %v798
    %s800 = smul.u32 1, 4
    %s801 = smul.addr %s800, 8
    %s802 = scalar_lea.vmem [#allocation2], %s801
    %v803 = vld [vmem:[%s802] sm:$0xff]
    %v804 = vld [vmem:[%s802 + $0x8] sm:$0xff]
    %v805 = vld [vmem:[%s802 + $0x10] sm:$0xff]
    %v806 = vld [vmem:[%s802 + $0x18] sm:$0xff]
    %807 = vmatprep.subr.mxu0 %v398
    %808 = vmatpush1.msra.mxu0 %v397
    %809 = vmatprep.subr.mxu0 %v402
    %810 = vmatpush1.msra.mxu0 %v401
    %811 = vmatprep.subr.mxu0 %v406
    %812 = vmatpush1.msra.mxu0 %v405
    %813 = vmatprep.subr.mxu0 %v410
    %814 = vmatpush1.msra.mxu0 %v409
    %815 = vmatprep.subr.mxu0 %v414
    %816 = vmatpush1.msra.mxu0 %v413
    %817 = vmatprep.subr.mxu0 %v418
    %818 = vmatpush1.msra.mxu0 %v417
    %819 = vmatprep.subr.mxu0 %v422
    %820 = vmatpush1.msra.mxu0 %v421
    %821 = vmatprep.subr.mxu0 %v426
    %822 = vmatpush1.msra.mxu0 %v425
    %823 = vmatprep.subr.mxu0 %v430
    %824 = vmatpush1.msra.mxu0 %v429
    %825 = vmatprep.subr.mxu0 %v434
    %826 = vmatpush1.msra.mxu0 %v433
    %827 = vmatprep.subr.mxu0 %v438
    %828 = vmatpush1.msra.mxu0 %v437
    %829 = vmatprep.subr.mxu0 %v442
    %830 = vmatpush1.msra.mxu0 %v441
    %831 = vmatprep.subr.mxu0 %v446
    %832 = vmatpush1.msra.mxu0 %v445
    %833 = vmatprep.subr.mxu0 %v450
    %834 = vmatpush1.msra.mxu0 %v449
    %835 = vmatprep.subr.mxu0 %v454
    %836 = vmatpush1.msra.mxu0 %v453
    %837 = vmatprep.subr.mxu0 %v458
    %838 = vmatpush1.msra.mxu0 %v457
    %839 = vmatprep.subr.mxu0 0.0
    %840 = vmatpush1.msra.mxu0 0.0
    %841 = vmatprep.subr.mxu0 0.0
    %842 = vmatpush1.msra.mxu0 0.0
    %843 = vmatprep.subr.mxu0 0.0
    %844 = vmatpush1.msra.mxu0 0.0
    %845 = vmatprep.subr.mxu0 0.0
    %846 = vmatpush1.msra.mxu0 0.0
    %847 = vmatprep.subr.mxu0 0.0
    %848 = vmatpush1.msra.mxu0 0.0
    %849 = vmatprep.subr.mxu0 0.0
    %850 = vmatpush1.msra.mxu0 0.0
    %851 = vmatprep.subr.mxu0 0.0
    %852 = vmatpush1.msra.mxu0 0.0
    %853 = vmatprep.subr.mxu0 0.0
    %854 = vmatpush1.msra.mxu0 0.0
    %855 = vmatprep.subr.mxu0 0.0
    %856 = vmatpush1.msra.mxu0 0.0
    %857 = vmatprep.subr.mxu0 0.0
    %858 = vmatpush1.msra.mxu0 0.0
    %859 = vmatprep.subr.mxu0 0.0
    %860 = vmatpush1.msra.mxu0 0.0
    %861 = vmatprep.subr.mxu0 0.0
    %862 = vmatpush1.msra.mxu0 0.0
    %863 = vmatprep.subr.mxu0 0.0
    %864 = vmatpush1.msra.mxu0 0.0
    %865 = vmatprep.subr.mxu0 0.0
    %866 = vmatpush1.msra.mxu0 0.0
    %867 = vmatprep.subr.mxu0 0.0
    %868 = vmatpush1.msra.mxu0 0.0
    %869 = vmatprep.subr.mxu0 0.0
    %870 = vmatpush1.msra.mxu0 0.0
    %871 = vmatprep.mubr.f32.mxu0 0.0
    %872 = vmatmul.mubr.f32.gmra.mrb[0].mxu0 %v504
    %v873 = vpop.f32.mrb[0].mxu0
    %v874 = vadd.f32 0.0, %v873
    %v875 = vpop.f32.mrb[0].mxu0
    %v876 = vadd.f32 0.0, %v875
    %877 = vdwg.mxu0
    %878 = vmatprep.subr.mxu0 %v400
    %879 = vmatpush1.msra.mxu0 %v399
    %880 = vmatprep.subr.mxu0 %v404
    %881 = vmatpush1.msra.mxu0 %v403
    %882 = vmatprep.subr.mxu0 %v408
    %883 = vmatpush1.msra.mxu0 %v407
    %884 = vmatprep.subr.mxu0 %v412
    %885 = vmatpush1.msra.mxu0 %v411
    %886 = vmatprep.subr.mxu0 %v416
    %887 = vmatpush1.msra.mxu0 %v415
    %888 = vmatprep.subr.mxu0 %v420
    %889 = vmatpush1.msra.mxu0 %v419
    %890 = vmatprep.subr.mxu0 %v424
    %891 = vmatpush1.msra.mxu0 %v423
    %892 = vmatprep.subr.mxu0 %v428
    %893 = vmatpush1.msra.mxu0 %v427
    %894 = vmatprep.subr.mxu0 %v432
    %895 = vmatpush1.msra.mxu0 %v431
    %896 = vmatprep.subr.mxu0 %v436
    %897 = vmatpush1.msra.mxu0 %v435
    %898 = vmatprep.subr.mxu0 %v440
    %899 = vmatpush1.msra.mxu0 %v439
    %900 = vmatprep.subr.mxu0 %v444
    %901 = vmatpush1.msra.mxu0 %v443
    %902 = vmatprep.subr.mxu0 %v448
    %903 = vmatpush1.msra.mxu0 %v447
    %904 = vmatprep.subr.mxu0 %v452
    %905 = vmatpush1.msra.mxu0 %v451
    %906 = vmatprep.subr.mxu0 %v456
    %907 = vmatpush1.msra.mxu0 %v455
    %908 = vmatprep.subr.mxu0 %v460
    %909 = vmatpush1.msra.mxu0 %v459
    %910 = vmatprep.subr.mxu0 0.0
    %911 = vmatpush1.msra.mxu0 0.0
    %912 = vmatprep.subr.mxu0 0.0
    %913 = vmatpush1.msra.mxu0 0.0
    %914 = vmatprep.subr.mxu0 0.0
    %915 = vmatpush1.msra.mxu0 0.0
    %916 = vmatprep.subr.mxu0 0.0
    %917 = vmatpush1.msra.mxu0 0.0
    %918 = vmatprep.subr.mxu0 0.0
    %919 = vmatpush1.msra.mxu0 0.0
    %920 = vmatprep.subr.mxu0 0.0
    %921 = vmatpush1.msra.mxu0 0.0
    %922 = vmatprep.subr.mxu0 0.0
    %923 = vmatpush1.msra.mxu0 0.0
    %924 = vmatprep.subr.mxu0 0.0
    %925 = vmatpush1.msra.mxu0 0.0
    %926 = vmatprep.subr.mxu0 0.0
    %927 = vmatpush1.msra.mxu0 0.0
    %928 = vmatprep.subr.mxu0 0.0
    %929 = vmatpush1.msra.mxu0 0.0
    %930 = vmatprep.subr.mxu0 0.0
    %931 = vmatpush1.msra.mxu0 0.0
    %932 = vmatprep.subr.mxu0 0.0
    %933 = vmatpush1.msra.mxu0 0.0
    %934 = vmatprep.subr.mxu0 0.0
    %935 = vmatpush1.msra.mxu0 0.0
    %936 = vmatprep.subr.mxu0 0.0
    %937 = vmatpush1.msra.mxu0 0.0
    %938 = vmatprep.subr.mxu0 0.0
    %939 = vmatpush1.msra.mxu0 0.0
    %940 = vmatprep.subr.mxu0 0.0
    %941 = vmatpush1.msra.mxu0 0.0
    %942 = vmatprep.mubr.f32.mxu0 0.0
    %943 = vmatmul.mubr.f32.gmra.mrb[0].mxu0 %v504
    %v944 = vpop.f32.mrb[0].mxu0
    %v945 = vadd.f32 0.0, %v944
    %v946 = vpop.f32.mrb[0].mxu0
    %v947 = vadd.f32 0.0, %v946
    %948 = vdwg.mxu0
    %v949 = vadd.f32 %v803, %v874
    %v950 = vadd.f32 %v804, %v876
    %v951 = vadd.f32 %v805, %v945
    %v952 = vadd.f32 %v806, %v947
    %v953 = vmul.f32 %v949, 0.5
    %v954 = vtanh.pop %v953
    %v955 = vmul.f32 %v954, 0.5
    %v956 = vadd.f32 %v955, 0.5
    %v957 = vmul.f32 %v950, 0.5
    %v958 = vtanh.pop %v957
    %v959 = vmul.f32 %v958, 0.5
    %v960 = vadd.f32 %v959, 0.5
    %v961 = vtanh.pop %v951
    %v962 = vmul.f32 %v952, 0.5
    %v963 = vtanh.pop %v962
    %v964 = vmul.f32 %v963, 0.5
    %v965 = vadd.f32 %v964, 0.5
    %v966 = vmul.f32 %v960, %v502
    %v967 = vmul.f32 %v956, %v961
    %v968 = vadd.f32 %v966, %v967
    %v969 = vtanh.pop %v968
    %v970 = vmul.f32 %v965, %v969
    %971 = vmatprep.subr.mxu0 %v576
    %972 = vmatpush1.msra.mxu0 %v575
    %973 = vmatprep.subr.mxu0 %v580
    %974 = vmatpush1.msra.mxu0 %v579
    %975 = vmatprep.subr.mxu0 %v584
    %976 = vmatpush1.msra.mxu0 %v583
    %977 = vmatprep.subr.mxu0 %v588
    %978 = vmatpush1.msra.mxu0 %v587
    %979 = vmatprep.subr.mxu0 %v592
    %980 = vmatpush1.msra.mxu0 %v591
    %981 = vmatprep.subr.mxu0 %v596
    %982 = vmatpush1.msra.mxu0 %v595
    %983 = vmatprep.subr.mxu0 %v600
    %984 = vmatpush1.msra.mxu0 %v599
    %985 = vmatprep.subr.mxu0 %v604
    %986 = vmatpush1.msra.mxu0 %v603
    %987 = vmatprep.subr.mxu0 %v608
    %988 = vmatpush1.msra.mxu0 %v607
    %989 = vmatprep.subr.mxu0 %v612
    %990 = vmatpush1.msra.mxu0 %v611
    %991 = vmatprep.subr.mxu0 %v616
    %992 = vmatpush1.msra.mxu0 %v615
    %993 = vmatprep.subr.mxu0 %v620
    %994 = vmatpush1.msra.mxu0 %v619
    %995 = vmatprep.subr.mxu0 %v624
    %996 = vmatpush1.msra.mxu0 %v623
    %997 = vmatprep.subr.mxu0 %v628
    %998 = vmatpush1.msra.mxu0 %v627
    %999 = vmatprep.subr.mxu0 %v632
    %1000 = vmatpush1.msra.mxu0 %v631
    %1001 = vmatprep.subr.mxu0 %v636
    %1002 = vmatpush1.msra.mxu0 %v635
    %1003 = vmatprep.subr.mxu0 0.0
    %1004 = vmatpush1.msra.mxu0 0.0
    %1005 = vmatprep.subr.mxu0 0.0
    %1006 = vmatpush1.msra.mxu0 0.0
    %1007 = vmatprep.subr.mxu0 0.0
    %1008 = vmatpush1.msra.mxu0 0.0
    %1009 = vmatprep.subr.mxu0 0.0
    %1010 = vmatpush1.msra.mxu0 0.0
    %1011 = vmatprep.subr.mxu0 0.0
    %1012 = vmatpush1.msra.mxu0 0.0
    %1013 = vmatprep.subr.mxu0 0.0
    %1014 = vmatpush1.msra.mxu0 0.0
    %1015 = vmatprep.subr.mxu0 0.0
    %1016 = vmatpush1.msra.mxu0 0.0
    %1017 = vmatprep.subr.mxu0 0.0
    %1018 = vmatpush1.msra.mxu0 0.0
    %1019 = vmatprep.subr.mxu0 0.0
    %1020 = vmatpush1.msra.mxu0 0.0
    %1021 = vmatprep.subr.mxu0 0.0
    %1022 = vmatpush1.msra.mxu0 0.0
    %1023 = vmatprep.subr.mxu0 0.0
    %1024 = vmatpush1.msra.mxu0 0.0
    %1025 = vmatprep.subr.mxu0 0.0
    %1026 = vmatpush1.msra.mxu0 0.0
    %1027 = vmatprep.subr.mxu0 0.0
    %1028 = vmatpush1.msra.mxu0 0.0
    %1029 = vmatprep.subr.mxu0 0.0
    %1030 = vmatpush1.msra.mxu0 0.0
    %1031 = vmatprep.subr.mxu0 0.0
    %1032 = vmatpush1.msra.mxu0 0.0
    %1033 = vmatprep.subr.mxu0 0.0
    %1034 = vmatpush1.msra.mxu0 0.0
    %1035 = vmatprep.mubr.f32.mxu0 0.0
    %1036 = vmatmul.mubr.f32.gmra.mrb[0].mxu0 %v970
    %v1037 = vpop.f32.mrb[0].mxu0
    %v1038 = vadd.f32 0.0, %v1037
    %v1039 = vpop.f32.mrb[0].mxu0
    %v1040 = vadd.f32 0.0, %v1039
    %1041 = vdwg.mxu0
    %1042 = vmatprep.subr.mxu0 %v578
    %1043 = vmatpush1.msra.mxu0 %v577
    %1044 = vmatprep.subr.mxu0 %v582
    %1045 = vmatpush1.msra.mxu0 %v581
    %1046 = vmatprep.subr.mxu0 %v586
    %1047 = vmatpush1.msra.mxu0 %v585
    %1048 = vmatprep.subr.mxu0 %v590
    %1049 = vmatpush1.msra.mxu0 %v589
    %1050 = vmatprep.subr.mxu0 %v594
    %1051 = vmatpush1.msra.mxu0 %v593
    %1052 = vmatprep.subr.mxu0 %v598
    %1053 = vmatpush1.msra.mxu0 %v597
    %1054 = vmatprep.subr.mxu0 %v602
    %1055 = vmatpush1.msra.mxu0 %v601
    %1056 = vmatprep.subr.mxu0 %v606
    %1057 = vmatpush1.msra.mxu0 %v605
    %1058 = vmatprep.subr.mxu0 %v610
    %1059 = vmatpush1.msra.mxu0 %v609
    %1060 = vmatprep.subr.mxu0 %v614
    %1061 = vmatpush1.msra.mxu0 %v613
    %1062 = vmatprep.subr.mxu0 %v618
    %1063 = vmatpush1.msra.mxu0 %v617
    %1064 = vmatprep.subr.mxu0 %v622
    %1065 = vmatpush1.msra.mxu0 %v621
    %1066 = vmatprep.subr.mxu0 %v626
    %1067 = vmatpush1.msra.mxu0 %v625
    %1068 = vmatprep.subr.mxu0 %v630
    %1069 = vmatpush1.msra.mxu0 %v629
    %1070 = vmatprep.subr.mxu0 %v634
    %1071 = vmatpush1.msra.mxu0 %v633
    %1072 = vmatprep.subr.mxu0 %v638
    %1073 = vmatpush1.msra.mxu0 %v637
    %1074 = vmatprep.subr.mxu0 0.0
    %1075 = vmatpush1.msra.mxu0 0.0
    %1076 = vmatprep.subr.mxu0 0.0
    %1077 = vmatpush1.msra.mxu0 0.0
    %1078 = vmatprep.subr.mxu0 0.0
    %1079 = vmatpush1.msra.mxu0 0.0
    %1080 = vmatprep.subr.mxu0 0.0
    %1081 = vmatpush1.msra.mxu0 0.0
    %1082 = vmatprep.subr.mxu0 0.0
    %1083 = vmatpush1.msra.mxu0 0.0
    %1084 = vmatprep.subr.mxu0 0.0
    %1085 = vmatpush1.msra.mxu0 0.0
    %1086 = vmatprep.subr.mxu0 0.0
    %1087 = vmatpush1.msra.mxu0 0.0
    %1088 = vmatprep.subr.mxu0 0.0
    %1089 = vmatpush1.msra.mxu0 0.0
    %1090 = vmatprep.subr.mxu0 0.0
    %1091 = vmatpush1.msra.mxu0 0.0
    %1092 = vmatprep.subr.mxu0 0.0
    %1093 = vmatpush1.msra.mxu0 0.0
    %1094 = vmatprep.subr.mxu0 0.0
    %1095 = vmatpush1.msra.mxu0 0.0
    %1096 = vmatprep.subr.mxu0 0.0
    %1097 = vmatpush1.msra.mxu0 0.0
    %1098 = vmatprep.subr.mxu0 0.0
    %1099 = vmatpush1.msra.mxu0 0.0
    %1100 = vmatprep.subr.mxu0 0.0
    %1101 = vmatpush1.msra.mxu0 0.0
    %1102 = vmatprep.subr.mxu0 0.0
    %1103 = vmatpush1.msra.mxu0 0.0
    %1104 = vmatprep.subr.mxu0 0.0
    %1105 = vmatpush1.msra.mxu0 0.0
    %1106 = vmatprep.mubr.f32.mxu0 0.0
    %1107 = vmatmul.mubr.f32.gmra.mrb[0].mxu0 %v970
    %v1108 = vpop.f32.mrb[0].mxu0
    %v1109 = vadd.f32 0.0, %v1108
    %v1110 = vpop.f32.mrb[0].mxu0
    %v1111 = vadd.f32 0.0, %v1110
    %1112 = vdwg.mxu0
    %1113 = vmatprep.subr.mxu0 %v512
    %1114 = vmatpush1.msra.mxu0 %v511
    %1115 = vmatprep.subr.mxu0 %v516
    %1116 = vmatpush1.msra.mxu0 %v515
    %1117 = vmatprep.subr.mxu0 %v520
    %1118 = vmatpush1.msra.mxu0 %v519
    %1119 = vmatprep.subr.mxu0 %v524
    %1120 = vmatpush1.msra.mxu0 %v523
    %1121 = vmatprep.subr.mxu0 %v528
    %1122 = vmatpush1.msra.mxu0 %v527
    %1123 = vmatprep.subr.mxu0 %v532
    %1124 = vmatpush1.msra.mxu0 %v531
    %1125 = vmatprep.subr.mxu0 %v536
    %1126 = vmatpush1.msra.mxu0 %v535
    %1127 = vmatprep.subr.mxu0 %v540
    %1128 = vmatpush1.msra.mxu0 %v539
    %1129 = vmatprep.subr.mxu0 %v544
    %1130 = vmatpush1.msra.mxu0 %v543
    %1131 = vmatprep.subr.mxu0 %v548
    %1132 = vmatpush1.msra.mxu0 %v547
    %1133 = vmatprep.subr.mxu0 %v552
    %1134 = vmatpush1.msra.mxu0 %v551
    %1135 = vmatprep.subr.mxu0 %v556
    %1136 = vmatpush1.msra.mxu0 %v555
    %1137 = vmatprep.subr.mxu0 %v560
    %1138 = vmatpush1.msra.mxu0 %v559
    %1139 = vmatprep.subr.mxu0 %v564
    %1140 = vmatpush1.msra.mxu0 %v563
    %1141 = vmatprep.subr.mxu0 %v568
    %1142 = vmatpush1.msra.mxu0 %v567
    %1143 = vmatprep.subr.mxu0 %v572
    %1144 = vmatpush1.msra.mxu0 %v571
    %1145 = vmatprep.subr.mxu0 0.0
    %1146 = vmatpush1.msra.mxu0 0.0
    %1147 = vmatprep.subr.mxu0 0.0
    %1148 = vmatpush1.msra.mxu0 0.0
    %1149 = vmatprep.subr.mxu0 0.0
    %1150 = vmatpush1.msra.mxu0 0.0
    %1151 = vmatprep.subr.mxu0 0.0
    %1152 = vmatpush1.msra.mxu0 0.0
    %1153 = vmatprep.subr.mxu0 0.0
    %1154 = vmatpush1.msra.mxu0 0.0
    %1155 = vmatprep.subr.mxu0 0.0
    %1156 = vmatpush1.msra.mxu0 0.0
    %1157 = vmatprep.subr.mxu0 0.0
    %1158 = vmatpush1.msra.mxu0 0.0
    %1159 = vmatprep.subr.mxu0 0.0
    %1160 = vmatpush1.msra.mxu0 0.0
    %1161 = vmatprep.subr.mxu0 0.0
    %1162 = vmatpush1.msra.mxu0 0.0
    %1163 = vmatprep.subr.mxu0 0.0
    %1164 = vmatpush1.msra.mxu0 0.0
    %1165 = vmatprep.subr.mxu0 0.0
    %1166 = vmatpush1.msra.mxu0 0.0
    %1167 = vmatprep.subr.mxu0 0.0
    %1168 = vmatpush1.msra.mxu0 0.0
    %1169 = vmatprep.subr.mxu0 0.0
    %1170 = vmatpush1.msra.mxu0 0.0
    %1171 = vmatprep.subr.mxu0 0.0
    %1172 = vmatpush1.msra.mxu0 0.0
    %1173 = vmatprep.subr.mxu0 0.0
    %1174 = vmatpush1.msra.mxu0 0.0
    %1175 = vmatprep.subr.mxu0 0.0
    %1176 = vmatpush1.msra.mxu0 0.0
    %1177 = vmatprep.mubr.f32.mxu0 0.0
    %1178 = vmatmul.mubr.f32.gmra.mrb[0].mxu0 %v798
    %v1179 = vpop.f32.mrb[0].mxu0
    %v1180 = vadd.f32 %v1038, %v1179
    %v1181 = vpop.f32.mrb[0].mxu0
    %v1182 = vadd.f32 %v1040, %v1181
    %1183 = vdwg.mxu0
    %1184 = vmatprep.subr.mxu0 %v514
    %1185 = vmatpush1.msra.mxu0 %v513
    %1186 = vmatprep.subr.mxu0 %v518
    %1187 = vmatpush1.msra.mxu0 %v517
    %1188 = vmatprep.subr.mxu0 %v522
    %1189 = vmatpush1.msra.mxu0 %v521
    %1190 = vmatprep.subr.mxu0 %v526
    %1191 = vmatpush1.msra.mxu0 %v525
    %1192 = vmatprep.subr.mxu0 %v530
    %1193 = vmatpush1.msra.mxu0 %v529
    %1194 = vmatprep.subr.mxu0 %v534
    %1195 = vmatpush1.msra.mxu0 %v533
    %1196 = vmatprep.subr.mxu0 %v538
    %1197 = vmatpush1.msra.mxu0 %v537
    %1198 = vmatprep.subr.mxu0 %v542
    %1199 = vmatpush1.msra.mxu0 %v541
    %1200 = vmatprep.subr.mxu0 %v546
    %1201 = vmatpush1.msra.mxu0 %v545
    %1202 = vmatprep.subr.mxu0 %v550
    %1203 = vmatpush1.msra.mxu0 %v549
    %1204 = vmatprep.subr.mxu0 %v554
    %1205 = vmatpush1.msra.mxu0 %v553
    %1206 = vmatprep.subr.mxu0 %v558
    %1207 = vmatpush1.msra.mxu0 %v557
    %1208 = vmatprep.subr.mxu0 %v562
    %1209 = vmatpush1.msra.mxu0 %v561
    %1210 = vmatprep.subr.mxu0 %v566
    %1211 = vmatpush1.msra.mxu0 %v565
    %1212 = vmatprep.subr.mxu0 %v570
    %1213 = vmatpush1.msra.mxu0 %v569
    %1214 = vmatprep.subr.mxu0 %v574
    %1215 = vmatpush1.msra.mxu0 %v573
    %1216 = vmatprep.subr.mxu0 0.0
    %1217 = vmatpush1.msra.mxu0 0.0
    %1218 = vmatprep.subr.mxu0 0.0
    %1219 = vmatpush1.msra.mxu0 0.0
    %1220 = vmatprep.subr.mxu0 0.0
    %1221 = vmatpush1.msra.mxu0 0.0
    %1222 = vmatprep.subr.mxu0 0.0
    %1223 = vmatpush1.msra.mxu0 0.0
    %1224 = vmatprep.subr.mxu0 0.0
    %1225 = vmatpush1.msra.mxu0 0.0
    %1226 = vmatprep.subr.mxu0 0.0
    %1227 = vmatpush1.msra.mxu0 0.0
    %1228 = vmatprep.subr.mxu0 0.0
    %1229 = vmatpush1.msra.mxu0 0.0
    %1230 = vmatprep.subr.mxu0 0.0
    %1231 = vmatpush1.msra.mxu0 0.0
    %1232 = vmatprep.subr.mxu0 0.0
    %1233 = vmatpush1.msra.mxu0 0.0
    %1234 = vmatprep.subr.mxu0 0.0
    %1235 = vmatpush1.msra.mxu0 0.0
    %1236 = vmatprep.subr.mxu0 0.0
    %1237 = vmatpush1.msra.mxu0 0.0
    %1238 = vmatprep.subr.mxu0 0.0
    %1239 = vmatpush1.msra.mxu0 0.0
    %1240 = vmatprep.subr.mxu0 0.0
    %1241 = vmatpush1.msra.mxu0 0.0
    %1242 = vmatprep.subr.mxu0 0.0
    %1243 = vmatpush1.msra.mxu0 0.0
    %1244 = vmatprep.subr.mxu0 0.0
    %1245 = vmatpush1.msra.mxu0 0.0
    %1246 = vmatprep.subr.mxu0 0.0
    %1247 = vmatpush1.msra.mxu0 0.0
    %1248 = vmatprep.mubr.f32.mxu0 0.0
    %1249 = vmatmul.mubr.f32.gmra.mrb[0].mxu0 %v798
    %v1250 = vpop.f32.mrb[0].mxu0
    %v1251 = vadd.f32 %v1109, %v1250
    %v1252 = vpop.f32.mrb[0].mxu0
    %v1253 = vadd.f32 %v1111, %v1252
    %1254 = vdwg.mxu0
    %v1255 = vadd.f32 %v1180, %v466
    %v1256 = vadd.f32 %v1182, %v470
    %v1257 = vadd.f32 %v1251, %v474
    %v1258 = vadd.f32 %v1253, %v478
    %v1259 = vmul.f32 %v1255, 0.5
    %v1260 = vtanh.pop %v1259
    %v1261 = vmul.f32 %v1260, 0.5
    %v1262 = vadd.f32 %v1261, 0.5
    %v1263 = vmul.f32 %v1256, 0.5
    %v1264 = vtanh.pop %v1263
    %v1265 = vmul.f32 %v1264, 0.5
    %v1266 = vadd.f32 %v1265, 0.5
    %v1267 = vtanh.pop %v1257
    %v1268 = vmul.f32 %v1258, 0.5
    %v1269 = vtanh.pop %v1268
    %v1270 = vmul.f32 %v1269, 0.5
    %v1271 = vadd.f32 %v1270, 0.5
    %v1272 = vmul.f32 %v1266, %v796
    %v1273 = vmul.f32 %v1262, %v1267
    %v1274 = vadd.f32 %v1272, %v1273
    %v1275 = vtanh.pop %v1274
    %v1276 = vmul.f32 %v1271, %v1275
    %s1277 = scalar_lea.vmem [#allocation3], 8
    %1278 = vst [vmem:[%s1277] sm:$0xff] %v1276
    %s1279 = smul.u32 2, 4
    %s1280 = smul.addr %s1279, 8
    %s1281 = scalar_lea.vmem [#allocation2], %s1280
    %v1282 = vld [vmem:[%s1281] sm:$0xff]
    %v1283 = vld [vmem:[%s1281 + $0x8] sm:$0xff]
    %v1284 = vld [vmem:[%s1281 + $0x10] sm:$0xff]
    %v1285 = vld [vmem:[%s1281 + $0x18] sm:$0xff]
    %1286 = vmatprep.subr.mxu0 %v398
    %1287 = vmatpush1.msra.mxu0 %v397
    %1288 = vmatprep.subr.mxu0 %v402
    %1289 = vmatpush1.msra.mxu0 %v401
    %1290 = vmatprep.subr.mxu0 %v406
    %1291 = vmatpush1.msra.mxu0 %v405
    %1292 = vmatprep.subr.mxu0 %v410
    %1293 = vmatpush1.msra.mxu0 %v409
    %1294 = vmatprep.subr.mxu0 %v414
    %1295 = vmatpush1.msra.mxu0 %v413
    %1296 = vmatprep.subr.mxu0 %v418
    %1297 = vmatpush1.msra.mxu0 %v417
    %1298 = vmatprep.subr.mxu0 %v422
    %1299 = vmatpush1.msra.mxu0 %v421
    %1300 = vmatprep.subr.mxu0 %v426
    %1301 = vmatpush1.msra.mxu0 %v425
    %1302 = vmatprep.subr.mxu0 %v430
    %1303 = vmatpush1.msra.mxu0 %v429
    %1304 = vmatprep.subr.mxu0 %v434
    %1305 = vmatpush1.msra.mxu0 %v433
    %1306 = vmatprep.subr.mxu0 %v438
    %1307 = vmatpush1.msra.mxu0 %v437
    %1308 = vmatprep.subr.mxu0 %v442
    %1309 = vmatpush1.msra.mxu0 %v441
    %1310 = vmatprep.subr.mxu0 %v446
    %1311 = vmatpush1.msra.mxu0 %v445
    %1312 = vmatprep.subr.mxu0 %v450
    %1313 = vmatpush1.msra.mxu0 %v449
    %1314 = vmatprep.subr.mxu0 %v454
    %1315 = vmatpush1.msra.mxu0 %v453
    %1316 = vmatprep.subr.mxu0 %v458
    %1317 = vmatpush1.msra.mxu0 %v457
    %1318 = vmatprep.subr.mxu0 0.0
    %1319 = vmatpush1.msra.mxu0 0.0
    %1320 = vmatprep.subr.mxu0 0.0
    %1321 = vmatpush1.msra.mxu0 0.0
    %1322 = vmatprep.subr.mxu0 0.0
    %1323 = vmatpush1.msra.mxu0 0.0
    %1324 = vmatprep.subr.mxu0 0.0
    %1325 = vmatpush1.msra.mxu0 0.0
    %1326 = vmatprep.subr.mxu0 0.0
    %1327 = vmatpush1.msra.mxu0 0.0
    %1328 = vmatprep.subr.mxu0 0.0
    %1329 = vmatpush1.msra.mxu0 0.0
    %1330 = vmatprep.subr.mxu0 0.0
    %1331 = vmatpush1.msra.mxu0 0.0
    %1332 = vmatprep.subr.mxu0 0.0
    %1333 = vmatpush1.msra.mxu0 0.0
    %1334 = vmatprep.subr.mxu0 0.0
    %1335 = vmatpush1.msra.mxu0 0.0
    %1336 = vmatprep.subr.mxu0 0.0
    %1337 = vmatpush1.msra.mxu0 0.0
    %1338 = vmatprep.subr.mxu0 0.0
    %1339 = vmatpush1.msra.mxu0 0.0
    %1340 = vmatprep.subr.mxu0 0.0
    %1341 = vmatpush1.msra.mxu0 0.0
    %1342 = vmatprep.subr.mxu0 0.0
    %1343 = vmatpush1.msra.mxu0 0.0
    %1344 = vmatprep.subr.mxu0 0.0
    %1345 = vmatpush1.msra.mxu0 0.0
    %1346 = vmatprep.subr.mxu0 0.0
    %1347 = vmatpush1.msra.mxu0 0.0
    %1348 = vmatprep.subr.mxu0 0.0
    %1349 = vmatpush1.msra.mxu0 0.0
    %1350 = vmatprep.mubr.f32.mxu0 0.0
    %1351 = vmatmul.mubr.f32.gmra.mrb[0].mxu0 %v970
    %v1352 = vpop.f32.mrb[0].mxu0
    %v1353 = vadd.f32 0.0, %v1352
    %v1354 = vpop.f32.mrb[0].mxu0
    %v1355 = vadd.f32 0.0, %v1354
    %1356 = vdwg.mxu0
    %1357 = vmatprep.subr.mxu0 %v400
    %1358 = vmatpush1.msra.mxu0 %v399
    %1359 = vmatprep.subr.mxu0 %v404
    %1360 = vmatpush1.msra.mxu0 %v403
    %1361 = vmatprep.subr.mxu0 %v408
    %1362 = vmatpush1.msra.mxu0 %v407
    %1363 = vmatprep.subr.mxu0 %v412
    %1364 = vmatpush1.msra.mxu0 %v411
    %1365 = vmatprep.subr.mxu0 %v416
    %1366 = vmatpush1.msra.mxu0 %v415
    %1367 = vmatprep.subr.mxu0 %v420
    %1368 = vmatpush1.msra.mxu0 %v419
    %1369 = vmatprep.subr.mxu0 %v424
    %1370 = vmatpush1.msra.mxu0 %v423
    %1371 = vmatprep.subr.mxu0 %v428
    %1372 = vmatpush1.msra.mxu0 %v427
    %1373 = vmatprep.subr.mxu0 %v432
    %1374 = vmatpush1.msra.mxu0 %v431
    %1375 = vmatprep.subr.mxu0 %v436
    %1376 = vmatpush1.msra.mxu0 %v435
    %1377 = vmatprep.subr.mxu0 %v440
    %1378 = vmatpush1.msra.mxu0 %v439
    %1379 = vmatprep.subr.mxu0 %v444
    %1380 = vmatpush1.msra.mxu0 %v443
    %1381 = vmatprep.subr.mxu0 %v448
    %1382 = vmatpush1.msra.mxu0 %v447
    %1383 = vmatprep.subr.mxu0 %v452
    %1384 = vmatpush1.msra.mxu0 %v451
    %1385 = vmatprep.subr.mxu0 %v456
    %1386 = vmatpush1.msra.mxu0 %v455
    %1387 = vmatprep.subr.mxu0 %v460
    %1388 = vmatpush1.msra.mxu0 %v459
    %1389 = vmatprep.subr.mxu0 0.0
    %1390 = vmatpush1.msra.mxu0 0.0
    %1391 = vmatprep.subr.mxu0 0.0
    %1392 = vmatpush1.msra.mxu0 0.0
    %1393 = vmatprep.subr.mxu0 0.0
    %1394 = vmatpush1.msra.mxu0 0.0
    %1395 = vmatprep.subr.mxu0 0.0
    %1396 = vmatpush1.msra.mxu0 0.0
    %1397 = vmatprep.subr.mxu0 0.0
    %1398 = vmatpush1.msra.mxu0 0.0
    %1399 = vmatprep.subr.mxu0 0.0
    %1400 = vmatpush1.msra.mxu0 0.0
    %1401 = vmatprep.subr.mxu0 0.0
    %1402 = vmatpush1.msra.mxu0 0.0
    %1403 = vmatprep.subr.mxu0 0.0
    %1404 = vmatpush1.msra.mxu0 0.0
    %1405 = vmatprep.subr.mxu0 0.0
    %1406 = vmatpush1.msra.mxu0 0.0
    %1407 = vmatprep.subr.mxu0 0.0
    %1408 = vmatpush1.msra.mxu0 0.0
    %1409 = vmatprep.subr.mxu0 0.0
    %1410 = vmatpush1.msra.mxu0 0.0
    %1411 = vmatprep.subr.mxu0 0.0
    %1412 = vmatpush1.msra.mxu0 0.0
    %1413 = vmatprep.subr.mxu0 0.0
    %1414 = vmatpush1.msra.mxu0 0.0
    %1415 = vmatprep.subr.mxu0 0.0
    %1416 = vmatpush1.msra.mxu0 0.0
    %1417 = vmatprep.subr.mxu0 0.0
    %1418 = vmatpush1.msra.mxu0 0.0
    %1419 = vmatprep.subr.mxu0 0.0
    %1420 = vmatpush1.msra.mxu0 0.0
    %1421 = vmatprep.mubr.f32.mxu0 0.0
    %1422 = vmatmul.mubr.f32.gmra.mrb[0].mxu0 %v970
    %v1423 = vpop.f32.mrb[0].mxu0
    %v1424 = vadd.f32 0.0, %v1423
    %v1425 = vpop.f32.mrb[0].mxu0
    %v1426 = vadd.f32 0.0, %v1425
    %1427 = vdwg.mxu0
    %v1428 = vadd.f32 %v1282, %v1353
    %v1429 = vadd.f32 %v1283, %v1355
    %v1430 = vadd.f32 %v1284, %v1424
    %v1431 = vadd.f32 %v1285, %v1426
    %v1432 = vmul.f32 %v1428, 0.5
    %v1433 = vtanh.pop %v1432
    %v1434 = vmul.f32 %v1433, 0.5
    %v1435 = vadd.f32 %v1434, 0.5
    %v1436 = vmul.f32 %v1429, 0.5
    %v1437 = vtanh.pop %v1436
    %v1438 = vmul.f32 %v1437, 0.5
    %v1439 = vadd.f32 %v1438, 0.5
    %v1440 = vtanh.pop %v1430
    %v1441 = vmul.f32 %v1431, 0.5
    %v1442 = vtanh.pop %v1441
    %v1443 = vmul.f32 %v1442, 0.5
    %v1444 = vadd.f32 %v1443, 0.5
    %v1445 = vmul.f32 %v1439, %v968
    %v1446 = vmul.f32 %v1435, %v1440
    %v1447 = vadd.f32 %v1445, %v1446
    %v1448 = vtanh.pop %v1447
    %v1449 = vmul.f32 %v1444, %v1448
    %1450 = vmatprep.subr.mxu0 %v576
    %1451 = vmatpush1.msra.mxu0 %v575
    %1452 = vmatprep.subr.mxu0 %v580
    %1453 = vmatpush1.msra.mxu0 %v579
    %1454 = vmatprep.subr.mxu0 %v584
    %1455 = vmatpush1.msra.mxu0 %v583
    %1456 = vmatprep.subr.mxu0 %v588
    %1457 = vmatpush1.msra.mxu0 %v587
    %1458 = vmatprep.subr.mxu0 %v592
    %1459 = vmatpush1.msra.mxu0 %v591
    %1460 = vmatprep.subr.mxu0 %v596
    %1461 = vmatpush1.msra.mxu0 %v595
    %1462 = vmatprep.subr.mxu0 %v600
    %1463 = vmatpush1.msra.mxu0 %v599
    %1464 = vmatprep.subr.mxu0 %v604
    %1465 = vmatpush1.msra.mxu0 %v603
    %1466 = vmatprep.subr.mxu0 %v608
    %1467 = vmatpush1.msra.mxu0 %v607
    %1468 = vmatprep.subr.mxu0 %v612
    %1469 = vmatpush1.msra.mxu0 %v611
    %1470 = vmatprep.subr.mxu0 %v616
    %1471 = vmatpush1.msra.mxu0 %v615
    %1472 = vmatprep.subr.mxu0 %v620
    %1473 = vmatpush1.msra.mxu0 %v619
    %1474 = vmatprep.subr.mxu0 %v624
    %1475 = vmatpush1.msra.mxu0 %v623
    %1476 = vmatprep.subr.mxu0 %v628
    %1477 = vmatpush1.msra.mxu0 %v627
    %1478 = vmatprep.subr.mxu0 %v632
    %1479 = vmatpush1.msra.mxu0 %v631
    %1480 = vmatprep.subr.mxu0 %v636
    %1481 = vmatpush1.msra.mxu0 %v635
    %1482 = vmatprep.subr.mxu0 0.0
    %1483 = vmatpush1.msra.mxu0 0.0
    %1484 = vmatprep.subr.mxu0 0.0
    %1485 = vmatpush1.msra.mxu0 0.0
    %1486 = vmatprep.subr.mxu0 0.0
    %1487 = vmatpush1.msra.mxu0 0.0
    %1488 = vmatprep.subr.mxu0 0.0
    %1489 = vmatpush1.msra.mxu0 0.0
    %1490 = vmatprep.subr.mxu0 0.0
    %1491 = vmatpush1.msra.mxu0 0.0
    %1492 = vmatprep.subr.mxu0 0.0
    %1493 = vmatpush1.msra.mxu0 0.0
    %1494 = vmatprep.subr.mxu0 0.0
    %1495 = vmatpush1.msra.mxu0 0.0
    %1496 = vmatprep.subr.mxu0 0.0
    %1497 = vmatpush1.msra.mxu0 0.0
    %1498 = vmatprep.subr.mxu0 0.0
    %1499 = vmatpush1.msra.mxu0 0.0
    %1500 = vmatprep.subr.mxu0 0.0
    %1501 = vmatpush1.msra.mxu0 0.0
    %1502 = vmatprep.subr.mxu0 0.0
    %1503 = vmatpush1.msra.mxu0 0.0
    %1504 = vmatprep.subr.mxu0 0.0
    %1505 = vmatpush1.msra.mxu0 0.0
    %1506 = vmatprep.subr.mxu0 0.0
    %1507 = vmatpush1.msra.mxu0 0.0
    %1508 = vmatprep.subr.mxu0 0.0
    %1509 = vmatpush1.msra.mxu0 0.0
    %1510 = vmatprep.subr.mxu0 0.0
    %1511 = vmatpush1.msra.mxu0 0.0
    %1512 = vmatprep.subr.mxu0 0.0
    %1513 = vmatpush1.msra.mxu0 0.0
    %1514 = vmatprep.mubr.f32.mxu0 0.0
    %1515 = vmatmul.mubr.f32.gmra.mrb[0].mxu0 %v1449
    %v1516 = vpop.f32.mrb[0].mxu0
    %v1517 = vadd.f32 0.0, %v1516
    %v1518 = vpop.f32.mrb[0].mxu0
    %v1519 = vadd.f32 0.0, %v1518
    %1520 = vdwg.mxu0
    %1521 = vmatprep.subr.mxu0 %v578
    %1522 = vmatpush1.msra.mxu0 %v577
    %1523 = vmatprep.subr.mxu0 %v582
    %1524 = vmatpush1.msra.mxu0 %v581
    %1525 = vmatprep.subr.mxu0 %v586
    %1526 = vmatpush1.msra.mxu0 %v585
    %1527 = vmatprep.subr.mxu0 %v590
    %1528 = vmatpush1.msra.mxu0 %v589
    %1529 = vmatprep.subr.mxu0 %v594
    %1530 = vmatpush1.msra.mxu0 %v593
    %1531 = vmatprep.subr.mxu0 %v598
    %1532 = vmatpush1.msra.mxu0 %v597
    %1533 = vmatprep.subr.mxu0 %v602
    %1534 = vmatpush1.msra.mxu0 %v601
    %1535 = vmatprep.subr.mxu0 %v606
    %1536 = vmatpush1.msra.mxu0 %v605
    %1537 = vmatprep.subr.mxu0 %v610
    %1538 = vmatpush1.msra.mxu0 %v609
    %1539 = vmatprep.subr.mxu0 %v614
    %1540 = vmatpush1.msra.mxu0 %v613
    %1541 = vmatprep.subr.mxu0 %v618
    %1542 = vmatpush1.msra.mxu0 %v617
    %1543 = vmatprep.subr.mxu0 %v622
    %1544 = vmatpush1.msra.mxu0 %v621
    %1545 = vmatprep.subr.mxu0 %v626
    %1546 = vmatpush1.msra.mxu0 %v625
    %1547 = vmatprep.subr.mxu0 %v630
    %1548 = vmatpush1.msra.mxu0 %v629
    %1549 = vmatprep.subr.mxu0 %v634
    %1550 = vmatpush1.msra.mxu0 %v633
    %1551 = vmatprep.subr.mxu0 %v638
    %1552 = vmatpush1.msra.mxu0 %v637
    %1553 = vmatprep.subr.mxu0 0.0
    %1554 = vmatpush1.msra.mxu0 0.0
    %1555 = vmatprep.subr.mxu0 0.0
    %1556 = vmatpush1.msra.mxu0 0.0
    %1557 = vmatprep.subr.mxu0 0.0
    %1558 = vmatpush1.msra.mxu0 0.0
    %1559 = vmatprep.subr.mxu0 0.0
    %1560 = vmatpush1.msra.mxu0 0.0
    %1561 = vmatprep.subr.mxu0 0.0
    %1562 = vmatpush1.msra.mxu0 0.0
    %1563 = vmatprep.subr.mxu0 0.0
    %1564 = vmatpush1.msra.mxu0 0.0
    %1565 = vmatprep.subr.mxu0 0.0
    %1566 = vmatpush1.msra.mxu0 0.0
    %1567 = vmatprep.subr.mxu0 0.0
    %1568 = vmatpush1.msra.mxu0 0.0
    %1569 = vmatprep.subr.mxu0 0.0
    %1570 = vmatpush1.msra.mxu0 0.0
    %1571 = vmatprep.subr.mxu0 0.0
    %1572 = vmatpush1.msra.mxu0 0.0
    %1573 = vmatprep.subr.mxu0 0.0
    %1574 = vmatpush1.msra.mxu0 0.0
    %1575 = vmatprep.subr.mxu0 0.0
    %1576 = vmatpush1.msra.mxu0 0.0
    %1577 = vmatprep.subr.mxu0 0.0
    %1578 = vmatpush1.msra.mxu0 0.0
    %1579 = vmatprep.subr.mxu0 0.0
    %1580 = vmatpush1.msra.mxu0 0.0
    %1581 = vmatprep.subr.mxu0 0.0
    %1582 = vmatpush1.msra.mxu0 0.0
    %1583 = vmatprep.subr.mxu0 0.0
    %1584 = vmatpush1.msra.mxu0 0.0
    %1585 = vmatprep.mubr.f32.mxu0 0.0
    %1586 = vmatmul.mubr.f32.gmra.mrb[0].mxu0 %v1449
    %v1587 = vpop.f32.mrb[0].mxu0
    %v1588 = vadd.f32 0.0, %v1587
    %v1589 = vpop.f32.mrb[0].mxu0
    %v1590 = vadd.f32 0.0, %v1589
    %1591 = vdwg.mxu0
    %1592 = vmatprep.subr.mxu0 %v512
    %1593 = vmatpush1.msra.mxu0 %v511
    %1594 = vmatprep.subr.mxu0 %v516
    %1595 = vmatpush1.msra.mxu0 %v515
    %1596 = vmatprep.subr.mxu0 %v520
    %1597 = vmatpush1.msra.mxu0 %v519
    %1598 = vmatprep.subr.mxu0 %v524
    %1599 = vmatpush1.msra.mxu0 %v523
    %1600 = vmatprep.subr.mxu0 %v528
    %1601 = vmatpush1.msra.mxu0 %v527
    %1602 = vmatprep.subr.mxu0 %v532
    %1603 = vmatpush1.msra.mxu0 %v531
    %1604 = vmatprep.subr.mxu0 %v536
    %1605 = vmatpush1.msra.mxu0 %v535
    %1606 = vmatprep.subr.mxu0 %v540
    %1607 = vmatpush1.msra.mxu0 %v539
    %1608 = vmatprep.subr.mxu0 %v544
    %1609 = vmatpush1.msra.mxu0 %v543
    %1610 = vmatprep.subr.mxu0 %v548
    %1611 = vmatpush1.msra.mxu0 %v547
    %1612 = vmatprep.subr.mxu0 %v552
    %1613 = vmatpush1.msra.mxu0 %v551
    %1614 = vmatprep.subr.mxu0 %v556
    %1615 = vmatpush1.msra.mxu0 %v555
    %1616 = vmatprep.subr.mxu0 %v560
    %1617 = vmatpush1.msra.mxu0 %v559
    %1618 = vmatprep.subr.mxu0 %v564
    %1619 = vmatpush1.msra.mxu0 %v563
    %1620 = vmatprep.subr.mxu0 %v568
    %1621 = vmatpush1.msra.mxu0 %v567
    %1622 = vmatprep.subr.mxu0 %v572
    %1623 = vmatpush1.msra.mxu0 %v571
    %1624 = vmatprep.subr.mxu0 0.0
    %1625 = vmatpush1.msra.mxu0 0.0
    %1626 = vmatprep.subr.mxu0 0.0
    %1627 = vmatpush1.msra.mxu0 0.0
    %1628 = vmatprep.subr.mxu0 0.0
    %1629 = vmatpush1.msra.mxu0 0.0
    %1630 = vmatprep.subr.mxu0 0.0
    %1631 = vmatpush1.msra.mxu0 0.0
    %1632 = vmatprep.subr.mxu0 0.0
    %1633 = vmatpush1.msra.mxu0 0.0
    %1634 = vmatprep.subr.mxu0 0.0
    %1635 = vmatpush1.msra.mxu0 0.0
    %1636 = vmatprep.subr.mxu0 0.0
    %1637 = vmatpush1.msra.mxu0 0.0
    %1638 = vmatprep.subr.mxu0 0.0
    %1639 = vmatpush1.msra.mxu0 0.0
    %1640 = vmatprep.subr.mxu0 0.0
    %1641 = vmatpush1.msra.mxu0 0.0
    %1642 = vmatprep.subr.mxu0 0.0
    %1643 = vmatpush1.msra.mxu0 0.0
    %1644 = vmatprep.subr.mxu0 0.0
    %1645 = vmatpush1.msra.mxu0 0.0
    %1646 = vmatprep.subr.mxu0 0.0
    %1647 = vmatpush1.msra.mxu0 0.0
    %1648 = vmatprep.subr.mxu0 0.0
    %1649 = vmatpush1.msra.mxu0 0.0
    %1650 = vmatprep.subr.mxu0 0.0
    %1651 = vmatpush1.msra.mxu0 0.0
    %1652 = vmatprep.subr.mxu0 0.0
    %1653 = vmatpush1.msra.mxu0 0.0
    %1654 = vmatprep.subr.mxu0 0.0
    %1655 = vmatpush1.msra.mxu0 0.0
    %1656 = vmatprep.mubr.f32.mxu0 0.0
    %1657 = vmatmul.mubr.f32.gmra.mrb[0].mxu0 %v1276
    %v1658 = vpop.f32.mrb[0].mxu0
    %v1659 = vadd.f32 %v1517, %v1658
    %v1660 = vpop.f32.mrb[0].mxu0
    %v1661 = vadd.f32 %v1519, %v1660
    %1662 = vdwg.mxu0
    %1663 = vmatprep.subr.mxu0 %v514
    %1664 = vmatpush1.msra.mxu0 %v513
    %1665 = vmatprep.subr.mxu0 %v518
    %1666 = vmatpush1.msra.mxu0 %v517
    %1667 = vmatprep.subr.mxu0 %v522
    %1668 = vmatpush1.msra.mxu0 %v521
    %1669 = vmatprep.subr.mxu0 %v526
    %1670 = vmatpush1.msra.mxu0 %v525
    %1671 = vmatprep.subr.mxu0 %v530
    %1672 = vmatpush1.msra.mxu0 %v529
    %1673 = vmatprep.subr.mxu0 %v534
    %1674 = vmatpush1.msra.mxu0 %v533
    %1675 = vmatprep.subr.mxu0 %v538
    %1676 = vmatpush1.msra.mxu0 %v537
    %1677 = vmatprep.subr.mxu0 %v542
    %1678 = vmatpush1.msra.mxu0 %v541
    %1679 = vmatprep.subr.mxu0 %v546
    %1680 = vmatpush1.msra.mxu0 %v545
    %1681 = vmatprep.subr.mxu0 %v550
    %1682 = vmatpush1.msra.mxu0 %v549
    %1683 = vmatprep.subr.mxu0 %v554
    %1684 = vmatpush1.msra.mxu0 %v553
    %1685 = vmatprep.subr.mxu0 %v558
    %1686 = vmatpush1.msra.mxu0 %v557
    %1687 = vmatprep.subr.mxu0 %v562
    %1688 = vmatpush1.msra.mxu0 %v561
    %1689 = vmatprep.subr.mxu0 %v566
    %1690 = vmatpush1.msra.mxu0 %v565
    %1691 = vmatprep.subr.mxu0 %v570
    %1692 = vmatpush1.msra.mxu0 %v569
    %1693 = vmatprep.subr.mxu0 %v574
    %1694 = vmatpush1.msra.mxu0 %v573
    %1695 = vmatprep.subr.mxu0 0.0
    %1696 = vmatpush1.msra.mxu0 0.0
    %1697 = vmatprep.subr.mxu0 0.0
    %1698 = vmatpush1.msra.mxu0 0.0
    %1699 = vmatprep.subr.mxu0 0.0
    %1700 = vmatpush1.msra.mxu0 0.0
    %1701 = vmatprep.subr.mxu0 0.0
    %1702 = vmatpush1.msra.mxu0 0.0
    %1703 = vmatprep.subr.mxu0 0.0
    %1704 = vmatpush1.msra.mxu0 0.0
    %1705 = vmatprep.subr.mxu0 0.0
    %1706 = vmatpush1.msra.mxu0 0.0
    %1707 = vmatprep.subr.mxu0 0.0
    %1708 = vmatpush1.msra.mxu0 0.0
    %1709 = vmatprep.subr.mxu0 0.0
    %1710 = vmatpush1.msra.mxu0 0.0
    %1711 = vmatprep.subr.mxu0 0.0
    %1712 = vmatpush1.msra.mxu0 0.0
    %1713 = vmatprep.subr.mxu0 0.0
    %1714 = vmatpush1.msra.mxu0 0.0
    %1715 = vmatprep.subr.mxu0 0.0
    %1716 = vmatpush1.msra.mxu0 0.0
    %1717 = vmatprep.subr.mxu0 0.0
    %1718 = vmatpush1.msra.mxu0 0.0
    %1719 = vmatprep.subr.mxu0 0.0
    %1720 = vmatpush1.msra.mxu0 0.0
    %1721 = vmatprep.subr.mxu0 0.0
    %1722 = vmatpush1.msra.mxu0 0.0
    %1723 = vmatprep.subr.mxu0 0.0
    %1724 = vmatpush1.msra.mxu0 0.0
    %1725 = vmatprep.subr.mxu0 0.0
    %1726 = vmatpush1.msra.mxu0 0.0
    %1727 = vmatprep.mubr.f32.mxu0 0.0
    %1728 = vmatmul.mubr.f32.gmra.mrb[0].mxu0 %v1276
    %v1729 = vpop.f32.mrb[0].mxu0
    %v1730 = vadd.f32 %v1588, %v1729
    %v1731 = vpop.f32.mrb[0].mxu0
    %v1732 = vadd.f32 %v1590, %v1731
    %1733 = vdwg.mxu0
    %v1734 = vadd.f32 %v1659, %v466
    %v1735 = vadd.f32 %v1661, %v470
    %v1736 = vadd.f32 %v1730, %v474
    %v1737 = vadd.f32 %v1732, %v478
    %v1738 = vmul.f32 %v1734, 0.5
    %v1739 = vtanh.pop %v1738
    %v1740 = vmul.f32 %v1739, 0.5
    %v1741 = vadd.f32 %v1740, 0.5
    %v1742 = vmul.f32 %v1735, 0.5
    %v1743 = vtanh.pop %v1742
    %v1744 = vmul.f32 %v1743, 0.5
    %v1745 = vadd.f32 %v1744, 0.5
    %v1746 = vtanh.pop %v1736
    %v1747 = vmul.f32 %v1737, 0.5
    %v1748 = vtanh.pop %v1747
    %v1749 = vmul.f32 %v1748, 0.5
    %v1750 = vadd.f32 %v1749, 0.5
    %v1751 = vmul.f32 %v1745, %v1274
    %v1752 = vmul.f32 %v1741, %v1746
    %v1753 = vadd.f32 %v1751, %v1752
    %v1754 = vtanh.pop %v1753
    %v1755 = vmul.f32 %v1750, %v1754
    %s1756 = scalar_lea.vmem [#allocation3], 16
    %1757 = vst [vmem:[%s1756] sm:$0xff] %v1755
    %s1758 = smul.u32 3, 4
    %s1759 = smul.addr %s1758, 8
    %s1760 = scalar_lea.vmem [#allocation2], %s1759
    %v1761 = vld [vmem:[%s1760] sm:$0xff]
    %v1762 = vld [vmem:[%s1760 + $0x8] sm:$0xff]
    %v1763 = vld [vmem:[%s1760 + $0x10] sm:$0xff]
    %v1764 = vld [vmem:[%s1760 + $0x18] sm:$0xff]
    %1765 = vmatprep.subr.mxu0 %v398
    %1766 = vmatpush1.msra.mxu0 %v397
    %1767 = vmatprep.subr.mxu0 %v402
    %1768 = vmatpush1.msra.mxu0 %v401
    %1769 = vmatprep.subr.mxu0 %v406
    %1770 = vmatpush1.msra.mxu0 %v405
    %1771 = vmatprep.subr.mxu0 %v410
    %1772 = vmatpush1.msra.mxu0 %v409
    %1773 = vmatprep.subr.mxu0 %v414
    %1774 = vmatpush1.msra.mxu0 %v413
    %1775 = vmatprep.subr.mxu0 %v418
    %1776 = vmatpush1.msra.mxu0 %v417
    %1777 = vmatprep.subr.mxu0 %v422
    %1778 = vmatpush1.msra.mxu0 %v421
    %1779 = vmatprep.subr.mxu0 %v426
    %1780 = vmatpush1.msra.mxu0 %v425
    %1781 = vmatprep.subr.mxu0 %v430
    %1782 = vmatpush1.msra.mxu0 %v429
    %1783 = vmatprep.subr.mxu0 %v434
    %1784 = vmatpush1.msra.mxu0 %v433
    %1785 = vmatprep.subr.mxu0 %v438
    %1786 = vmatpush1.msra.mxu0 %v437
    %1787 = vmatprep.subr.mxu0 %v442
    %1788 = vmatpush1.msra.mxu0 %v441
    %1789 = vmatprep.subr.mxu0 %v446
    %1790 = vmatpush1.msra.mxu0 %v445
    %1791 = vmatprep.subr.mxu0 %v450
    %1792 = vmatpush1.msra.mxu0 %v449
    %1793 = vmatprep.subr.mxu0 %v454
    %1794 = vmatpush1.msra.mxu0 %v453
    %1795 = vmatprep.subr.mxu0 %v458
    %1796 = vmatpush1.msra.mxu0 %v457
    %1797 = vmatprep.subr.mxu0 0.0
    %1798 = vmatpush1.msra.mxu0 0.0
    %1799 = vmatprep.subr.mxu0 0.0
    %1800 = vmatpush1.msra.mxu0 0.0
    %1801 = vmatprep.subr.mxu0 0.0
    %1802 = vmatpush1.msra.mxu0 0.0
    %1803 = vmatprep.subr.mxu0 0.0
    %1804 = vmatpush1.msra.mxu0 0.0
    %1805 = vmatprep.subr.mxu0 0.0
    %1806 = vmatpush1.msra.mxu0 0.0
    %1807 = vmatprep.subr.mxu0 0.0
    %1808 = vmatpush1.msra.mxu0 0.0
    %1809 = vmatprep.subr.mxu0 0.0
    %1810 = vmatpush1.msra.mxu0 0.0
    %1811 = vmatprep.subr.mxu0 0.0
    %1812 = vmatpush1.msra.mxu0 0.0
    %1813 = vmatprep.subr.mxu0 0.0
    %1814 = vmatpush1.msra.mxu0 0.0
    %1815 = vmatprep.subr.mxu0 0.0
    %1816 = vmatpush1.msra.mxu0 0.0
    %1817 = vmatprep.subr.mxu0 0.0
    %1818 = vmatpush1.msra.mxu0 0.0
    %1819 = vmatprep.subr.mxu0 0.0
    %1820 = vmatpush1.msra.mxu0 0.0
    %1821 = vmatprep.subr.mxu0 0.0
    %1822 = vmatpush1.msra.mxu0 0.0
    %1823 = vmatprep.subr.mxu0 0.0
    %1824 = vmatpush1.msra.mxu0 0.0
    %1825 = vmatprep.subr.mxu0 0.0
    %1826 = vmatpush1.msra.mxu0 0.0
    %1827 = vmatprep.subr.mxu0 0.0
    %1828 = vmatpush1.msra.mxu0 0.0
    %1829 = vmatprep.mubr.f32.mxu0 0.0
    %1830 = vmatmul.mubr.f32.gmra.mrb[0].mxu0 %v1449
    %v1831 = vpop.f32.mrb[0].mxu0
    %v1832 = vadd.f32 0.0, %v1831
    %v1833 = vpop.f32.mrb[0].mxu0
    %v1834 = vadd.f32 0.0, %v1833
    %1835 = vdwg.mxu0
    %1836 = vmatprep.subr.mxu0 %v400
    %1837 = vmatpush1.msra.mxu0 %v399
    %1838 = vmatprep.subr.mxu0 %v404
    %1839 = vmatpush1.msra.mxu0 %v403
    %1840 = vmatprep.subr.mxu0 %v408
    %1841 = vmatpush1.msra.mxu0 %v407
    %1842 = vmatprep.subr.mxu0 %v412
    %1843 = vmatpush1.msra.mxu0 %v411
    %1844 = vmatprep.subr.mxu0 %v416
    %1845 = vmatpush1.msra.mxu0 %v415
    %1846 = vmatprep.subr.mxu0 %v420
    %1847 = vmatpush1.msra.mxu0 %v419
    %1848 = vmatprep.subr.mxu0 %v424
    %1849 = vmatpush1.msra.mxu0 %v423
    %1850 = vmatprep.subr.mxu0 %v428
    %1851 = vmatpush1.msra.mxu0 %v427
    %1852 = vmatprep.subr.mxu0 %v432
    %1853 = vmatpush1.msra.mxu0 %v431
    %1854 = vmatprep.subr.mxu0 %v436
    %1855 = vmatpush1.msra.mxu0 %v435
    %1856 = vmatprep.subr.mxu0 %v440
    %1857 = vmatpush1.msra.mxu0 %v439
    %1858 = vmatprep.subr.mxu0 %v444
    %1859 = vmatpush1.msra.mxu0 %v443
    %1860 = vmatprep.subr.mxu0 %v448
    %1861 = vmatpush1.msra.mxu0 %v447
    %1862 = vmatprep.subr.mxu0 %v452
    %1863 = vmatpush1.msra.mxu0 %v451
    %1864 = vmatprep.subr.mxu0 %v456
    %1865 = vmatpush1.msra.mxu0 %v455
    %1866 = vmatprep.subr.mxu0 %v460
    %1867 = vmatpush1.msra.mxu0 %v459
    %1868 = vmatprep.subr.mxu0 0.0
    %1869 = vmatpush1.msra.mxu0 0.0
    %1870 = vmatprep.subr.mxu0 0.0
    %1871 = vmatpush1.msra.mxu0 0.0
    %1872 = vmatprep.subr.mxu0 0.0
    %1873 = vmatpush1.msra.mxu0 0.0
    %1874 = vmatprep.subr.mxu0 0.0
    %1875 = vmatpush1.msra.mxu0 0.0
    %1876 = vmatprep.subr.mxu0 0.0
    %1877 = vmatpush1.msra.mxu0 0.0
    %1878 = vmatprep.subr.mxu0 0.0
    %1879 = vmatpush1.msra.mxu0 0.0
    %1880 = vmatprep.subr.mxu0 0.0
    %1881 = vmatpush1.msra.mxu0 0.0
    %1882 = vmatprep.subr.mxu0 0.0
    %1883 = vmatpush1.msra.mxu0 0.0
    %1884 = vmatprep.subr.mxu0 0.0
    %1885 = vmatpush1.msra.mxu0 0.0
    %1886 = vmatprep.subr.mxu0 0.0
    %1887 = vmatpush1.msra.mxu0 0.0
    %1888 = vmatprep.subr.mxu0 0.0
    %1889 = vmatpush1.msra.mxu0 0.0
    %1890 = vmatprep.subr.mxu0 0.0
    %1891 = vmatpush1.msra.mxu0 0.0
    %1892 = vmatprep.subr.mxu0 0.0
    %1893 = vmatpush1.msra.mxu0 0.0
    %1894 = vmatprep.subr.mxu0 0.0
    %1895 = vmatpush1.msra.mxu0 0.0
    %1896 = vmatprep.subr.mxu0 0.0
    %1897 = vmatpush1.msra.mxu0 0.0
    %1898 = vmatprep.subr.mxu0 0.0
    %1899 = vmatpush1.msra.mxu0 0.0
    %1900 = vmatprep.mubr.f32.mxu0 0.0
    %1901 = vmatmul.mubr.f32.gmra.mrb[0].mxu0 %v1449
    %v1902 = vpop.f32.mrb[0].mxu0
    %v1903 = vadd.f32 0.0, %v1902
    %v1904 = vpop.f32.mrb[0].mxu0
    %v1905 = vadd.f32 0.0, %v1904
    %1906 = vdwg.mxu0
    %v1907 = vadd.f32 %v1761, %v1832
    %v1908 = vadd.f32 %v1762, %v1834
    %v1909 = vadd.f32 %v1763, %v1903
    %v1910 = vadd.f32 %v1764, %v1905
    %v1911 = vmul.f32 %v1907, 0.5
    %v1912 = vtanh.pop %v1911
    %v1913 = vmul.f32 %v1912, 0.5
    %v1914 = vadd.f32 %v1913, 0.5
    %v1915 = vmul.f32 %v1908, 0.5
    %v1916 = vtanh.pop %v1915
    %v1917 = vmul.f32 %v1916, 0.5
    %v1918 = vadd.f32 %v1917, 0.5
    %v1919 = vtanh.pop %v1909
    %v1920 = vmul.f32 %v1910, 0.5
    %v1921 = vtanh.pop %v1920
    %v1922 = vmul.f32 %v1921, 0.5
    %v1923 = vadd.f32 %v1922, 0.5
    %v1924 = vmul.f32 %v1918, %v1447
    %v1925 = vmul.f32 %v1914, %v1919
    %v1926 = vadd.f32 %v1924, %v1925
    %v1927 = vtanh.pop %v1926
    %v1928 = vmul.f32 %v1923, %v1927
    %1929 = vmatprep.subr.mxu0 %v576
    %1930 = vmatpush1.msra.mxu0 %v575
    %1931 = vmatprep.subr.mxu0 %v580
    %1932 = vmatpush1.msra.mxu0 %v579
    %1933 = vmatprep.subr.mxu0 %v584
    %1934 = vmatpush1.msra.mxu0 %v583
    %1935 = vmatprep.subr.mxu0 %v588
    %1936 = vmatpush1.msra.mxu0 %v587
    %1937 = vmatprep.subr.mxu0 %v592
    %1938 = vmatpush1.msra.mxu0 %v591
    %1939 = vmatprep.subr.mxu0 %v596
    %1940 = vmatpush1.msra.mxu0 %v595
    %1941 = vmatprep.subr.mxu0 %v600
    %1942 = vmatpush1.msra.mxu0 %v599
    %1943 = vmatprep.subr.mxu0 %v604
    %1944 = vmatpush1.msra.mxu0 %v603
    %1945 = vmatprep.subr.mxu0 %v608
    %1946 = vmatpush1.msra.mxu0 %v607
    %1947 = vmatprep.subr.mxu0 %v612
    %1948 = vmatpush1.msra.mxu0 %v611
    %1949 = vmatprep.subr.mxu0 %v616
    %1950 = vmatpush1.msra.mxu0 %v615
    %1951 = vmatprep.subr.mxu0 %v620
    %1952 = vmatpush1.msra.mxu0 %v619
    %1953 = vmatprep.subr.mxu0 %v624
    %1954 = vmatpush1.msra.mxu0 %v623
    %1955 = vmatprep.subr.mxu0 %v628
    %1956 = vmatpush1.msra.mxu0 %v627
    %1957 = vmatprep.subr.mxu0 %v632
    %1958 = vmatpush1.msra.mxu0 %v631
    %1959 = vmatprep.subr.mxu0 %v636
    %1960 = vmatpush1.msra.mxu0 %v635
    %1961 = vmatprep.subr.mxu0 0.0
    %1962 = vmatpush1.msra.mxu0 0.0
    %1963 = vmatprep.subr.mxu0 0.0
    %1964 = vmatpush1.msra.mxu0 0.0
    %1965 = vmatprep.subr.mxu0 0.0
    %1966 = vmatpush1.msra.mxu0 0.0
    %1967 = vmatprep.subr.mxu0 0.0
    %1968 = vmatpush1.msra.mxu0 0.0
    %1969 = vmatprep.subr.mxu0 0.0
    %1970 = vmatpush1.msra.mxu0 0.0
    %1971 = vmatprep.subr.mxu0 0.0
    %1972 = vmatpush1.msra.mxu0 0.0
    %1973 = vmatprep.subr.mxu0 0.0
    %1974 = vmatpush1.msra.mxu0 0.0
    %1975 = vmatprep.subr.mxu0 0.0
    %1976 = vmatpush1.msra.mxu0 0.0
    %1977 = vmatprep.subr.mxu0 0.0
    %1978 = vmatpush1.msra.mxu0 0.0
    %1979 = vmatprep.subr.mxu0 0.0
    %1980 = vmatpush1.msra.mxu0 0.0
    %1981 = vmatprep.subr.mxu0 0.0
    %1982 = vmatpush1.msra.mxu0 0.0
    %1983 = vmatprep.subr.mxu0 0.0
    %1984 = vmatpush1.msra.mxu0 0.0
    %1985 = vmatprep.subr.mxu0 0.0
    %1986 = vmatpush1.msra.mxu0 0.0
    %1987 = vmatprep.subr.mxu0 0.0
    %1988 = vmatpush1.msra.mxu0 0.0
    %1989 = vmatprep.subr.mxu0 0.0
    %1990 = vmatpush1.msra.mxu0 0.0
    %1991 = vmatprep.subr.mxu0 0.0
    %1992 = vmatpush1.msra.mxu0 0.0
    %1993 = vmatprep.mubr.f32.mxu0 0.0
    %1994 = vmatmul.mubr.f32.gmra.mrb[0].mxu0 %v1928
    %v1995 = vpop.f32.mrb[0].mxu0
    %v1996 = vadd.f32 0.0, %v1995
    %v1997 = vpop.f32.mrb[0].mxu0
    %v1998 = vadd.f32 0.0, %v1997
    %1999 = vdwg.mxu0
    %2000 = vmatprep.subr.mxu0 %v578
    %2001 = vmatpush1.msra.mxu0 %v577
    %2002 = vmatprep.subr.mxu0 %v582
    %2003 = vmatpush1.msra.mxu0 %v581
    %2004 = vmatprep.subr.mxu0 %v586
    %2005 = vmatpush1.msra.mxu0 %v585
    %2006 = vmatprep.subr.mxu0 %v590
    %2007 = vmatpush1.msra.mxu0 %v589
    %2008 = vmatprep.subr.mxu0 %v594
    %2009 = vmatpush1.msra.mxu0 %v593
    %2010 = vmatprep.subr.mxu0 %v598
    %2011 = vmatpush1.msra.mxu0 %v597
    %2012 = vmatprep.subr.mxu0 %v602
    %2013 = vmatpush1.msra.mxu0 %v601
    %2014 = vmatprep.subr.mxu0 %v606
    %2015 = vmatpush1.msra.mxu0 %v605
    %2016 = vmatprep.subr.mxu0 %v610
    %2017 = vmatpush1.msra.mxu0 %v609
    %2018 = vmatprep.subr.mxu0 %v614
    %2019 = vmatpush1.msra.mxu0 %v613
    %2020 = vmatprep.subr.mxu0 %v618
    %2021 = vmatpush1.msra.mxu0 %v617
    %2022 = vmatprep.subr.mxu0 %v622
    %2023 = vmatpush1.msra.mxu0 %v621
    %2024 = vmatprep.subr.mxu0 %v626
    %2025 = vmatpush1.msra.mxu0 %v625
    %2026 = vmatprep.subr.mxu0 %v630
    %2027 = vmatpush1.msra.mxu0 %v629
    %2028 = vmatprep.subr.mxu0 %v634
    %2029 = vmatpush1.msra.mxu0 %v633
    %2030 = vmatprep.subr.mxu0 %v638
    %2031 = vmatpush1.msra.mxu0 %v637
    %2032 = vmatprep.subr.mxu0 0.0
    %2033 = vmatpush1.msra.mxu0 0.0
    %2034 = vmatprep.subr.mxu0 0.0
    %2035 = vmatpush1.msra.mxu0 0.0
    %2036 = vmatprep.subr.mxu0 0.0
    %2037 = vmatpush1.msra.mxu0 0.0
    %2038 = vmatprep.subr.mxu0 0.0
    %2039 = vmatpush1.msra.mxu0 0.0
    %2040 = vmatprep.subr.mxu0 0.0
    %2041 = vmatpush1.msra.mxu0 0.0
    %2042 = vmatprep.subr.mxu0 0.0
    %2043 = vmatpush1.msra.mxu0 0.0
    %2044 = vmatprep.subr.mxu0 0.0
    %2045 = vmatpush1.msra.mxu0 0.0
    %2046 = vmatprep.subr.mxu0 0.0
    %2047 = vmatpush1.msra.mxu0 0.0
    %2048 = vmatprep.subr.mxu0 0.0
    %2049 = vmatpush1.msra.mxu0 0.0
    %2050 = vmatprep.subr.mxu0 0.0
    %2051 = vmatpush1.msra.mxu0 0.0
    %2052 = vmatprep.subr.mxu0 0.0
    %2053 = vmatpush1.msra.mxu0 0.0
    %2054 = vmatprep.subr.mxu0 0.0
    %2055 = vmatpush1.msra.mxu0 0.0
    %2056 = vmatprep.subr.mxu0 0.0
    %2057 = vmatpush1.msra.mxu0 0.0
    %2058 = vmatprep.subr.mxu0 0.0
    %2059 = vmatpush1.msra.mxu0 0.0
    %2060 = vmatprep.subr.mxu0 0.0
    %2061 = vmatpush1.msra.mxu0 0.0
    %2062 = vmatprep.subr.mxu0 0.0
    %2063 = vmatpush1.msra.mxu0 0.0
    %2064 = vmatprep.mubr.f32.mxu0 0.0
    %2065 = vmatmul.mubr.f32.gmra.mrb[0].mxu0 %v1928
    %v2066 = vpop.f32.mrb[0].mxu0
    %v2067 = vadd.f32 0.0, %v2066
    %v2068 = vpop.f32.mrb[0].mxu0
    %v2069 = vadd.f32 0.0, %v2068
    %2070 = vdwg.mxu0
    %2071 = vmatprep.subr.mxu0 %v512
    %2072 = vmatpush1.msra.mxu0 %v511
    %2073 = vmatprep.subr.mxu0 %v516
    %2074 = vmatpush1.msra.mxu0 %v515
    %2075 = vmatprep.subr.mxu0 %v520
    %2076 = vmatpush1.msra.mxu0 %v519
    %2077 = vmatprep.subr.mxu0 %v524
    %2078 = vmatpush1.msra.mxu0 %v523
    %2079 = vmatprep.subr.mxu0 %v528
    %2080 = vmatpush1.msra.mxu0 %v527
    %2081 = vmatprep.subr.mxu0 %v532
    %2082 = vmatpush1.msra.mxu0 %v531
    %2083 = vmatprep.subr.mxu0 %v536
    %2084 = vmatpush1.msra.mxu0 %v535
    %2085 = vmatprep.subr.mxu0 %v540
    %2086 = vmatpush1.msra.mxu0 %v539
    %2087 = vmatprep.subr.mxu0 %v544
    %2088 = vmatpush1.msra.mxu0 %v543
    %2089 = vmatprep.subr.mxu0 %v548
    %2090 = vmatpush1.msra.mxu0 %v547
    %2091 = vmatprep.subr.mxu0 %v552
    %2092 = vmatpush1.msra.mxu0 %v551
    %2093 = vmatprep.subr.mxu0 %v556
    %2094 = vmatpush1.msra.mxu0 %v555
    %2095 = vmatprep.subr.mxu0 %v560
    %2096 = vmatpush1.msra.mxu0 %v559
    %2097 = vmatprep.subr.mxu0 %v564
    %2098 = vmatpush1.msra.mxu0 %v563
    %2099 = vmatprep.subr.mxu0 %v568
    %2100 = vmatpush1.msra.mxu0 %v567
    %2101 = vmatprep.subr.mxu0 %v572
    %2102 = vmatpush1.msra.mxu0 %v571
    %2103 = vmatprep.subr.mxu0 0.0
    %2104 = vmatpush1.msra.mxu0 0.0
    %2105 = vmatprep.subr.mxu0 0.0
    %2106 = vmatpush1.msra.mxu0 0.0
    %2107 = vmatprep.subr.mxu0 0.0
    %2108 = vmatpush1.msra.mxu0 0.0
    %2109 = vmatprep.subr.mxu0 0.0
    %2110 = vmatpush1.msra.mxu0 0.0
    %2111 = vmatprep.subr.mxu0 0.0
    %2112 = vmatpush1.msra.mxu0 0.0
    %2113 = vmatprep.subr.mxu0 0.0
    %2114 = vmatpush1.msra.mxu0 0.0
    %2115 = vmatprep.subr.mxu0 0.0
    %2116 = vmatpush1.msra.mxu0 0.0
    %2117 = vmatprep.subr.mxu0 0.0
    %2118 = vmatpush1.msra.mxu0 0.0
    %2119 = vmatprep.subr.mxu0 0.0
    %2120 = vmatpush1.msra.mxu0 0.0
    %2121 = vmatprep.subr.mxu0 0.0
    %2122 = vmatpush1.msra.mxu0 0.0
    %2123 = vmatprep.subr.mxu0 0.0
    %2124 = vmatpush1.msra.mxu0 0.0
    %2125 = vmatprep.subr.mxu0 0.0
    %2126 = vmatpush1.msra.mxu0 0.0
    %2127 = vmatprep.subr.mxu0 0.0
    %2128 = vmatpush1.msra.mxu0 0.0
    %2129 = vmatprep.subr.mxu0 0.0
    %2130 = vmatpush1.msra.mxu0 0.0
    %2131 = vmatprep.subr.mxu0 0.0
    %2132 = vmatpush1.msra.mxu0 0.0
    %2133 = vmatprep.subr.mxu0 0.0
    %2134 = vmatpush1.msra.mxu0 0.0
    %2135 = vmatprep.mubr.f32.mxu0 0.0
    %2136 = vmatmul.mubr.f32.gmra.mrb[0].mxu0 %v1755
    %v2137 = vpop.f32.mrb[0].mxu0
    %v2138 = vadd.f32 %v1996, %v2137
    %v2139 = vpop.f32.mrb[0].mxu0
    %v2140 = vadd.f32 %v1998, %v2139
    %2141 = vdwg.mxu0
    %2142 = vmatprep.subr.mxu0 %v514
    %2143 = vmatpush1.msra.mxu0 %v513
    %2144 = vmatprep.subr.mxu0 %v518
    %2145 = vmatpush1.msra.mxu0 %v517
    %2146 = vmatprep.subr.mxu0 %v522
    %2147 = vmatpush1.msra.mxu0 %v521
    %2148 = vmatprep.subr.mxu0 %v526
    %2149 = vmatpush1.msra.mxu0 %v525
    %2150 = vmatprep.subr.mxu0 %v530
    %2151 = vmatpush1.msra.mxu0 %v529
    %2152 = vmatprep.subr.mxu0 %v534
    %2153 = vmatpush1.msra.mxu0 %v533
    %2154 = vmatprep.subr.mxu0 %v538
    %2155 = vmatpush1.msra.mxu0 %v537
    %2156 = vmatprep.subr.mxu0 %v542
    %2157 = vmatpush1.msra.mxu0 %v541
    %2158 = vmatprep.subr.mxu0 %v546
    %2159 = vmatpush1.msra.mxu0 %v545
    %2160 = vmatprep.subr.mxu0 %v550
    %2161 = vmatpush1.msra.mxu0 %v549
    %2162 = vmatprep.subr.mxu0 %v554
    %2163 = vmatpush1.msra.mxu0 %v553
    %2164 = vmatprep.subr.mxu0 %v558
    %2165 = vmatpush1.msra.mxu0 %v557
    %2166 = vmatprep.subr.mxu0 %v562
    %2167 = vmatpush1.msra.mxu0 %v561
    %2168 = vmatprep.subr.mxu0 %v566
    %2169 = vmatpush1.msra.mxu0 %v565
    %2170 = vmatprep.subr.mxu0 %v570
    %2171 = vmatpush1.msra.mxu0 %v569
    %2172 = vmatprep.subr.mxu0 %v574
    %2173 = vmatpush1.msra.mxu0 %v573
    %2174 = vmatprep.subr.mxu0 0.0
    %2175 = vmatpush1.msra.mxu0 0.0
    %2176 = vmatprep.subr.mxu0 0.0
    %2177 = vmatpush1.msra.mxu0 0.0
    %2178 = vmatprep.subr.mxu0 0.0
    %2179 = vmatpush1.msra.mxu0 0.0
    %2180 = vmatprep.subr.mxu0 0.0
    %2181 = vmatpush1.msra.mxu0 0.0
    %2182 = vmatprep.subr.mxu0 0.0
    %2183 = vmatpush1.msra.mxu0 0.0
    %2184 = vmatprep.subr.mxu0 0.0
    %2185 = vmatpush1.msra.mxu0 0.0
    %2186 = vmatprep.subr.mxu0 0.0
    %2187 = vmatpush1.msra.mxu0 0.0
    %2188 = vmatprep.subr.mxu0 0.0
    %2189 = vmatpush1.msra.mxu0 0.0
    %2190 = vmatprep.subr.mxu0 0.0
    %2191 = vmatpush1.msra.mxu0 0.0
    %2192 = vmatprep.subr.mxu0 0.0
    %2193 = vmatpush1.msra.mxu0 0.0
    %2194 = vmatprep.subr.mxu0 0.0
    %2195 = vmatpush1.msra.mxu0 0.0
    %2196 = vmatprep.subr.mxu0 0.0
    %2197 = vmatpush1.msra.mxu0 0.0
    %2198 = vmatprep.subr.mxu0 0.0
    %2199 = vmatpush1.msra.mxu0 0.0
    %2200 = vmatprep.subr.mxu0 0.0
    %2201 = vmatpush1.msra.mxu0 0.0
    %2202 = vmatprep.subr.mxu0 0.0
    %2203 = vmatpush1.msra.mxu0 0.0
    %2204 = vmatprep.subr.mxu0 0.0
    %2205 = vmatpush1.msra.mxu0 0.0
    %2206 = vmatprep.mubr.f32.mxu0 0.0
    %2207 = vmatmul.mubr.f32.gmra.mrb[0].mxu0 %v1755
    %v2208 = vpop.f32.mrb[0].mxu0
    %v2209 = vadd.f32 %v2067, %v2208
    %v2210 = vpop.f32.mrb[0].mxu0
    %v2211 = vadd.f32 %v2069, %v2210
    %2212 = vdwg.mxu0
    %v2213 = vadd.f32 %v2138, %v466
    %v2214 = vadd.f32 %v2140, %v470
    %v2215 = vadd.f32 %v2209, %v474
    %v2216 = vadd.f32 %v2211, %v478
    %v2217 = vmul.f32 %v2213, 0.5
    %v2218 = vtanh.pop %v2217
    %v2219 = vmul.f32 %v2218, 0.5
    %v2220 = vadd.f32 %v2219, 0.5
    %v2221 = vmul.f32 %v2214, 0.5
    %v2222 = vtanh.pop %v2221
    %v2223 = vmul.f32 %v2222, 0.5
    %v2224 = vadd.f32 %v2223, 0.5
    %v2225 = vtanh.pop %v2215
    %v2226 = vmul.f32 %v2216, 0.5
    %v2227 = vtanh.pop %v2226
    %v2228 = vmul.f32 %v2227, 0.5
    %v2229 = vadd.f32 %v2228, 0.5
    %v2230 = vmul.f32 %v2224, %v1753
    %v2231 = vmul.f32 %v2220, %v2225
    %v2232 = vadd.f32 %v2230, %v2231
    %v2233 = vtanh.pop %v2232
    %v2234 = vmul.f32 %v2229, %v2233
    %s2235 = scalar_lea.vmem [#allocation3], 24
    %2236 = vst [vmem:[%s2235] sm:$0xff] %v2234
    %s2237 = smul.u32 4, 4
    %s2238 = smul.addr %s2237, 8
    %s2239 = scalar_lea.vmem [#allocation2], %s2238
    %v2240 = vld [vmem:[%s2239] sm:$0xff]
    %v2241 = vld [vmem:[%s2239 + $0x8] sm:$0xff]
    %v2242 = vld [vmem:[%s2239 + $0x10] sm:$0xff]
    %v2243 = vld [vmem:[%s2239 + $0x18] sm:$0xff]
    %2244 = vmatprep.subr.mxu0 %v398
    %2245 = vmatpush1.msra.mxu0 %v397
    %2246 = vmatprep.subr.mxu0 %v402
    %2247 = vmatpush1.msra.mxu0 %v401
    %2248 = vmatprep.subr.mxu0 %v406
    %2249 = vmatpush1.msra.mxu0 %v405
    %2250 = vmatprep.subr.mxu0 %v410
    %2251 = vmatpush1.msra.mxu0 %v409
    %2252 = vmatprep.subr.mxu0 %v414
    %2253 = vmatpush1.msra.mxu0 %v413
    %2254 = vmatprep.subr.mxu0 %v418
    %2255 = vmatpush1.msra.mxu0 %v417
    %2256 = vmatprep.subr.mxu0 %v422
    %2257 = vmatpush1.msra.mxu0 %v421
    %2258 = vmatprep.subr.mxu0 %v426
    %2259 = vmatpush1.msra.mxu0 %v425
    %2260 = vmatprep.subr.mxu0 %v430
    %2261 = vmatpush1.msra.mxu0 %v429
    %2262 = vmatprep.subr.mxu0 %v434
    %2263 = vmatpush1.msra.mxu0 %v433
    %2264 = vmatprep.subr.mxu0 %v438
    %2265 = vmatpush1.msra.mxu0 %v437
    %2266 = vmatprep.subr.mxu0 %v442
    %2267 = vmatpush1.msra.mxu0 %v441
    %2268 = vmatprep.subr.mxu0 %v446
    %2269 = vmatpush1.msra.mxu0 %v445
    %2270 = vmatprep.subr.mxu0 %v450
    %2271 = vmatpush1.msra.mxu0 %v449
    %2272 = vmatprep.subr.mxu0 %v454
    %2273 = vmatpush1.msra.mxu0 %v453
    %2274 = vmatprep.subr.mxu0 %v458
    %2275 = vmatpush1.msra.mxu0 %v457
    %2276 = vmatprep.subr.mxu0 0.0
    %2277 = vmatpush1.msra.mxu0 0.0
    %2278 = vmatprep.subr.mxu0 0.0
    %2279 = vmatpush1.msra.mxu0 0.0
    %2280 = vmatprep.subr.mxu0 0.0
    %2281 = vmatpush1.msra.mxu0 0.0
    %2282 = vmatprep.subr.mxu0 0.0
    %2283 = vmatpush1.msra.mxu0 0.0
    %2284 = vmatprep.subr.mxu0 0.0
    %2285 = vmatpush1.msra.mxu0 0.0
    %2286 = vmatprep.subr.mxu0 0.0
    %2287 = vmatpush1.msra.mxu0 0.0
    %2288 = vmatprep.subr.mxu0 0.0
    %2289 = vmatpush1.msra.mxu0 0.0
    %2290 = vmatprep.subr.mxu0 0.0
    %2291 = vmatpush1.msra.mxu0 0.0
    %2292 = vmatprep.subr.mxu0 0.0
    %2293 = vmatpush1.msra.mxu0 0.0
    %2294 = vmatprep.subr.mxu0 0.0
    %2295 = vmatpush1.msra.mxu0 0.0
    %2296 = vmatprep.subr.mxu0 0.0
    %2297 = vmatpush1.msra.mxu0 0.0
    %2298 = vmatprep.subr.mxu0 0.0
    %2299 = vmatpush1.msra.mxu0 0.0
    %2300 = vmatprep.subr.mxu0 0.0
    %2301 = vmatpush1.msra.mxu0 0.0
    %2302 = vmatprep.subr.mxu0 0.0
    %2303 = vmatpush1.msra.mxu0 0.0
    %2304 = vmatprep.subr.mxu0 0.0
    %2305 = vmatpush1.msra.mxu0 0.0
    %2306 = vmatprep.subr.mxu0 0.0
    %2307 = vmatpush1.msra.mxu0 0.0
    %2308 = vmatprep.mubr.f32.mxu0 0.0
    %2309 = vmatmul.mubr.f32.gmra.mrb[0].mxu0 %v1928
    %v2310 = vpop.f32.mrb[0].mxu0
    %v2311 = vadd.f32 0.0, %v2310
    %v2312 = vpop.f32.mrb[0].mxu0
    %v2313 = vadd.f32 0.0, %v2312
    %2314 = vdwg.mxu0
    %2315 = vmatprep.subr.mxu0 %v400
    %2316 = vmatpush1.msra.mxu0 %v399
    %2317 = vmatprep.subr.mxu0 %v404
    %2318 = vmatpush1.msra.mxu0 %v403
    %2319 = vmatprep.subr.mxu0 %v408
    %2320 = vmatpush1.msra.mxu0 %v407
    %2321 = vmatprep.subr.mxu0 %v412
    %2322 = vmatpush1.msra.mxu0 %v411
    %2323 = vmatprep.subr.mxu0 %v416
    %2324 = vmatpush1.msra.mxu0 %v415
    %2325 = vmatprep.subr.mxu0 %v420
    %2326 = vmatpush1.msra.mxu0 %v419
    %2327 = vmatprep.subr.mxu0 %v424
    %2328 = vmatpush1.msra.mxu0 %v423
    %2329 = vmatprep.subr.mxu0 %v428
    %2330 = vmatpush1.msra.mxu0 %v427
    %2331 = vmatprep.subr.mxu0 %v432
    %2332 = vmatpush1.msra.mxu0 %v431
    %2333 = vmatprep.subr.mxu0 %v436
    %2334 = vmatpush1.msra.mxu0 %v435
    %2335 = vmatprep.subr.mxu0 %v440
    %2336 = vmatpush1.msra.mxu0 %v439
    %2337 = vmatprep.subr.mxu0 %v444
    %2338 = vmatpush1.msra.mxu0 %v443
    %2339 = vmatprep.subr.mxu0 %v448
    %2340 = vmatpush1.msra.mxu0 %v447
    %2341 = vmatprep.subr.mxu0 %v452
    %2342 = vmatpush1.msra.mxu0 %v451
    %2343 = vmatprep.subr.mxu0 %v456
    %2344 = vmatpush1.msra.mxu0 %v455
    %2345 = vmatprep.subr.mxu0 %v460
    %2346 = vmatpush1.msra.mxu0 %v459
    %2347 = vmatprep.subr.mxu0 0.0
    %2348 = vmatpush1.msra.mxu0 0.0
    %2349 = vmatprep.subr.mxu0 0.0
    %2350 = vmatpush1.msra.mxu0 0.0
    %2351 = vmatprep.subr.mxu0 0.0
    %2352 = vmatpush1.msra.mxu0 0.0
    %2353 = vmatprep.subr.mxu0 0.0
    %2354 = vmatpush1.msra.mxu0 0.0
    %2355 = vmatprep.subr.mxu0 0.0
    %2356 = vmatpush1.msra.mxu0 0.0
    %2357 = vmatprep.subr.mxu0 0.0
    %2358 = vmatpush1.msra.mxu0 0.0
    %2359 = vmatprep.subr.mxu0 0.0
    %2360 = vmatpush1.msra.mxu0 0.0
    %2361 = vmatprep.subr.mxu0 0.0
    %2362 = vmatpush1.msra.mxu0 0.0
    %2363 = vmatprep.subr.mxu0 0.0
    %2364 = vmatpush1.msra.mxu0 0.0
    %2365 = vmatprep.subr.mxu0 0.0
    %2366 = vmatpush1.msra.mxu0 0.0
    %2367 = vmatprep.subr.mxu0 0.0
    %2368 = vmatpush1.msra.mxu0 0.0
    %2369 = vmatprep.subr.mxu0 0.0
    %2370 = vmatpush1.msra.mxu0 0.0
    %2371 = vmatprep.subr.mxu0 0.0
    %2372 = vmatpush1.msra.mxu0 0.0
    %2373 = vmatprep.subr.mxu0 0.0
    %2374 = vmatpush1.msra.mxu0 0.0
    %2375 = vmatprep.subr.mxu0 0.0
    %2376 = vmatpush1.msra.mxu0 0.0
    %2377 = vmatprep.subr.mxu0 0.0
    %2378 = vmatpush1.msra.mxu0 0.0
    %2379 = vmatprep.mubr.f32.mxu0 0.0
    %2380 = vmatmul.mubr.f32.gmra.mrb[0].mxu0 %v1928
    %v2381 = vpop.f32.mrb[0].mxu0
    %v2382 = vadd.f32 0.0, %v2381
    %v2383 = vpop.f32.mrb[0].mxu0
    %v2384 = vadd.f32 0.0, %v2383
    %2385 = vdwg.mxu0
    %v2386 = vadd.f32 %v2240, %v2311
    %v2387 = vadd.f32 %v2241, %v2313
    %v2388 = vadd.f32 %v2242, %v2382
    %v2389 = vadd.f32 %v2243, %v2384
    %v2390 = vmul.f32 %v2386, 0.5
    %v2391 = vtanh.pop %v2390
    %v2392 = vmul.f32 %v2391, 0.5
    %v2393 = vadd.f32 %v2392, 0.5
    %v2394 = vmul.f32 %v2387, 0.5
    %v2395 = vtanh.pop %v2394
    %v2396 = vmul.f32 %v2395, 0.5
    %v2397 = vadd.f32 %v2396, 0.5
    %v2398 = vtanh.pop %v2388
    %v2399 = vmul.f32 %v2389, 0.5
    %v2400 = vtanh.pop %v2399
    %v2401 = vmul.f32 %v2400, 0.5
    %v2402 = vadd.f32 %v2401, 0.5
    %v2403 = vmul.f32 %v2397, %v1926
    %v2404 = vmul.f32 %v2393, %v2398
    %v2405 = vadd.f32 %v2403, %v2404
    %v2406 = vtanh.pop %v2405
    %v2407 = vmul.f32 %v2402, %v2406
    %2408 = vmatprep.subr.mxu0 %v576
    %2409 = vmatpush1.msra.mxu0 %v575
    %2410 = vmatprep.subr.mxu0 %v580
    %2411 = vmatpush1.msra.mxu0 %v579
    %2412 = vmatprep.subr.mxu0 %v584
    %2413 = vmatpush1.msra.mxu0 %v583
    %2414 = vmatprep.subr.mxu0 %v588
    %2415 = vmatpush1.msra.mxu0 %v587
    %2416 = vmatprep.subr.mxu0 %v592
    %2417 = vmatpush1.msra.mxu0 %v591
    %2418 = vmatprep.subr.mxu0 %v596
    %2419 = vmatpush1.msra.mxu0 %v595
    %2420 = vmatprep.subr.mxu0 %v600
    %2421 = vmatpush1.msra.mxu0 %v599
    %2422 = vmatprep.subr.mxu0 %v604
    %2423 = vmatpush1.msra.mxu0 %v603
    %2424 = vmatprep.subr.mxu0 %v608
    %2425 = vmatpush1.msra.mxu0 %v607
    %2426 = vmatprep.subr.mxu0 %v612
    %2427 = vmatpush1.msra.mxu0 %v611
    %2428 = vmatprep.subr.mxu0 %v616
    %2429 = vmatpush1.msra.mxu0 %v615
    %2430 = vmatprep.subr.mxu0 %v620
    %2431 = vmatpush1.msra.mxu0 %v619
    %2432 = vmatprep.subr.mxu0 %v624
    %2433 = vmatpush1.msra.mxu0 %v623
    %2434 = vmatprep.subr.mxu0 %v628
    %2435 = vmatpush1.msra.mxu0 %v627
    %2436 = vmatprep.subr.mxu0 %v632
    %2437 = vmatpush1.msra.mxu0 %v631
    %2438 = vmatprep.subr.mxu0 %v636
    %2439 = vmatpush1.msra.mxu0 %v635
    %2440 = vmatprep.subr.mxu0 0.0
    %2441 = vmatpush1.msra.mxu0 0.0
    %2442 = vmatprep.subr.mxu0 0.0
    %2443 = vmatpush1.msra.mxu0 0.0
    %2444 = vmatprep.subr.mxu0 0.0
    %2445 = vmatpush1.msra.mxu0 0.0
    %2446 = vmatprep.subr.mxu0 0.0
    %2447 = vmatpush1.msra.mxu0 0.0
    %2448 = vmatprep.subr.mxu0 0.0
    %2449 = vmatpush1.msra.mxu0 0.0
    %2450 = vmatprep.subr.mxu0 0.0
    %2451 = vmatpush1.msra.mxu0 0.0
    %2452 = vmatprep.subr.mxu0 0.0
    %2453 = vmatpush1.msra.mxu0 0.0
    %2454 = vmatprep.subr.mxu0 0.0
    %2455 = vmatpush1.msra.mxu0 0.0
    %2456 = vmatprep.subr.mxu0 0.0
    %2457 = vmatpush1.msra.mxu0 0.0
    %2458 = vmatprep.subr.mxu0 0.0
    %2459 = vmatpush1.msra.mxu0 0.0
    %2460 = vmatprep.subr.mxu0 0.0
    %2461 = vmatpush1.msra.mxu0 0.0
    %2462 = vmatprep.subr.mxu0 0.0
    %2463 = vmatpush1.msra.mxu0 0.0
    %2464 = vmatprep.subr.mxu0 0.0
    %2465 = vmatpush1.msra.mxu0 0.0
    %2466 = vmatprep.subr.mxu0 0.0
    %2467 = vmatpush1.msra.mxu0 0.0
    %2468 = vmatprep.subr.mxu0 0.0
    %2469 = vmatpush1.msra.mxu0 0.0
    %2470 = vmatprep.subr.mxu0 0.0
    %2471 = vmatpush1.msra.mxu0 0.0
    %2472 = vmatprep.mubr.f32.mxu0 0.0
    %2473 = vmatmul.mubr.f32.gmra.mrb[0].mxu0 %v2407
    %v2474 = vpop.f32.mrb[0].mxu0
    %v2475 = vadd.f32 0.0, %v2474
    %v2476 = vpop.f32.mrb[0].mxu0
    %v2477 = vadd.f32 0.0, %v2476
    %2478 = vdwg.mxu0
    %2479 = vmatprep.subr.mxu0 %v578
    %2480 = vmatpush1.msra.mxu0 %v577
    %2481 = vmatprep.subr.mxu0 %v582
    %2482 = vmatpush1.msra.mxu0 %v581
    %2483 = vmatprep.subr.mxu0 %v586
    %2484 = vmatpush1.msra.mxu0 %v585
    %2485 = vmatprep.subr.mxu0 %v590
    %2486 = vmatpush1.msra.mxu0 %v589
    %2487 = vmatprep.subr.mxu0 %v594
    %2488 = vmatpush1.msra.mxu0 %v593
    %2489 = vmatprep.subr.mxu0 %v598
    %2490 = vmatpush1.msra.mxu0 %v597
    %2491 = vmatprep.subr.mxu0 %v602
    %2492 = vmatpush1.msra.mxu0 %v601
    %2493 = vmatprep.subr.mxu0 %v606
    %2494 = vmatpush1.msra.mxu0 %v605
    %2495 = vmatprep.subr.mxu0 %v610
    %2496 = vmatpush1.msra.mxu0 %v609
    %2497 = vmatprep.subr.mxu0 %v614
    %2498 = vmatpush1.msra.mxu0 %v613
    %2499 = vmatprep.subr.mxu0 %v618
    %2500 = vmatpush1.msra.mxu0 %v617
    %2501 = vmatprep.subr.mxu0 %v622
    %2502 = vmatpush1.msra.mxu0 %v621
    %2503 = vmatprep.subr.mxu0 %v626
    %2504 = vmatpush1.msra.mxu0 %v625
    %2505 = vmatprep.subr.mxu0 %v630
    %2506 = vmatpush1.msra.mxu0 %v629
    %2507 = vmatprep.subr.mxu0 %v634
    %2508 = vmatpush1.msra.mxu0 %v633
    %2509 = vmatprep.subr.mxu0 %v638
    %2510 = vmatpush1.msra.mxu0 %v637
    %2511 = vmatprep.subr.mxu0 0.0
    %2512 = vmatpush1.msra.mxu0 0.0
    %2513 = vmatprep.subr.mxu0 0.0
    %2514 = vmatpush1.msra.mxu0 0.0
    %2515 = vmatprep.subr.mxu0 0.0
    %2516 = vmatpush1.msra.mxu0 0.0
    %2517 = vmatprep.subr.mxu0 0.0
    %2518 = vmatpush1.msra.mxu0 0.0
    %2519 = vmatprep.subr.mxu0 0.0
    %2520 = vmatpush1.msra.mxu0 0.0
    %2521 = vmatprep.subr.mxu0 0.0
    %2522 = vmatpush1.msra.mxu0 0.0
    %2523 = vmatprep.subr.mxu0 0.0
    %2524 = vmatpush1.msra.mxu0 0.0
    %2525 = vmatprep.subr.mxu0 0.0
    %2526 = vmatpush1.msra.mxu0 0.0
    %2527 = vmatprep.subr.mxu0 0.0
    %2528 = vmatpush1.msra.mxu0 0.0
    %2529 = vmatprep.subr.mxu0 0.0
    %2530 = vmatpush1.msra.mxu0 0.0
    %2531 = vmatprep.subr.mxu0 0.0
    %2532 = vmatpush1.msra.mxu0 0.0
    %2533 = vmatprep.subr.mxu0 0.0
    %2534 = vmatpush1.msra.mxu0 0.0
    %2535 = vmatprep.subr.mxu0 0.0
    %2536 = vmatpush1.msra.mxu0 0.0
    %2537 = vmatprep.subr.mxu0 0.0
    %2538 = vmatpush1.msra.mxu0 0.0
    %2539 = vmatprep.subr.mxu0 0.0
    %2540 = vmatpush1.msra.mxu0 0.0
    %2541 = vmatprep.subr.mxu0 0.0
    %2542 = vmatpush1.msra.mxu0 0.0
    %2543 = vmatprep.mubr.f32.mxu0 0.0
    %2544 = vmatmul.mubr.f32.gmra.mrb[0].mxu0 %v2407
    %v2545 = vpop.f32.mrb[0].mxu0
    %v2546 = vadd.f32 0.0, %v2545
    %v2547 = vpop.f32.mrb[0].mxu0
    %v2548 = vadd.f32 0.0, %v2547
    %2549 = vdwg.mxu0
    %2550 = vmatprep.subr.mxu0 %v512
    %2551 = vmatpush1.msra.mxu0 %v511
    %2552 = vmatprep.subr.mxu0 %v516
    %2553 = vmatpush1.msra.mxu0 %v515
    %2554 = vmatprep.subr.mxu0 %v520
    %2555 = vmatpush1.msra.mxu0 %v519
    %2556 = vmatprep.subr.mxu0 %v524
    %2557 = vmatpush1.msra.mxu0 %v523
    %2558 = vmatprep.subr.mxu0 %v528
    %2559 = vmatpush1.msra.mxu0 %v527
    %2560 = vmatprep.subr.mxu0 %v532
    %2561 = vmatpush1.msra.mxu0 %v531
    %2562 = vmatprep.subr.mxu0 %v536
    %2563 = vmatpush1.msra.mxu0 %v535
    %2564 = vmatprep.subr.mxu0 %v540
    %2565 = vmatpush1.msra.mxu0 %v539
    %2566 = vmatprep.subr.mxu0 %v544
    %2567 = vmatpush1.msra.mxu0 %v543
    %2568 = vmatprep.subr.mxu0 %v548
    %2569 = vmatpush1.msra.mxu0 %v547
    %2570 = vmatprep.subr.mxu0 %v552
    %2571 = vmatpush1.msra.mxu0 %v551
    %2572 = vmatprep.subr.mxu0 %v556
    %2573 = vmatpush1.msra.mxu0 %v555
    %2574 = vmatprep.subr.mxu0 %v560
    %2575 = vmatpush1.msra.mxu0 %v559
    %2576 = vmatprep.subr.mxu0 %v564
    %2577 = vmatpush1.msra.mxu0 %v563
    %2578 = vmatprep.subr.mxu0 %v568
    %2579 = vmatpush1.msra.mxu0 %v567
    %2580 = vmatprep.subr.mxu0 %v572
    %2581 = vmatpush1.msra.mxu0 %v571
    %2582 = vmatprep.subr.mxu0 0.0
    %2583 = vmatpush1.msra.mxu0 0.0
    %2584 = vmatprep.subr.mxu0 0.0
    %2585 = vmatpush1.msra.mxu0 0.0
    %2586 = vmatprep.subr.mxu0 0.0
    %2587 = vmatpush1.msra.mxu0 0.0
    %2588 = vmatprep.subr.mxu0 0.0
    %2589 = vmatpush1.msra.mxu0 0.0
    %2590 = vmatprep.subr.mxu0 0.0
    %2591 = vmatpush1.msra.mxu0 0.0
    %2592 = vmatprep.subr.mxu0 0.0
    %2593 = vmatpush1.msra.mxu0 0.0
    %2594 = vmatprep.subr.mxu0 0.0
    %2595 = vmatpush1.msra.mxu0 0.0
    %2596 = vmatprep.subr.mxu0 0.0
    %2597 = vmatpush1.msra.mxu0 0.0
    %2598 = vmatprep.subr.mxu0 0.0
    %2599 = vmatpush1.msra.mxu0 0.0
    %2600 = vmatprep.subr.mxu0 0.0
    %2601 = vmatpush1.msra.mxu0 0.0
    %2602 = vmatprep.subr.mxu0 0.0
    %2603 = vmatpush1.msra.mxu0 0.0
    %2604 = vmatprep.subr.mxu0 0.0
    %2605 = vmatpush1.msra.mxu0 0.0
    %2606 = vmatprep.subr.mxu0 0.0
    %2607 = vmatpush1.msra.mxu0 0.0
    %2608 = vmatprep.subr.mxu0 0.0
    %2609 = vmatpush1.msra.mxu0 0.0
    %2610 = vmatprep.subr.mxu0 0.0
    %2611 = vmatpush1.msra.mxu0 0.0
    %2612 = vmatprep.subr.mxu0 0.0
    %2613 = vmatpush1.msra.mxu0 0.0
    %2614 = vmatprep.mubr.f32.mxu0 0.0
    %2615 = vmatmul.mubr.f32.gmra.mrb[0].mxu0 %v2234
    %v2616 = vpop.f32.mrb[0].mxu0
    %v2617 = vadd.f32 %v2475, %v2616
    %v2618 = vpop.f32.mrb[0].mxu0
    %v2619 = vadd.f32 %v2477, %v2618
    %2620 = vdwg.mxu0
    %2621 = vmatprep.subr.mxu0 %v514
    %2622 = vmatpush1.msra.mxu0 %v513
    %2623 = vmatprep.subr.mxu0 %v518
    %2624 = vmatpush1.msra.mxu0 %v517
    %2625 = vmatprep.subr.mxu0 %v522
    %2626 = vmatpush1.msra.mxu0 %v521
    %2627 = vmatprep.subr.mxu0 %v526
    %2628 = vmatpush1.msra.mxu0 %v525
    %2629 = vmatprep.subr.mxu0 %v530
    %2630 = vmatpush1.msra.mxu0 %v529
    %2631 = vmatprep.subr.mxu0 %v534
    %2632 = vmatpush1.msra.mxu0 %v533
    %2633 = vmatprep.subr.mxu0 %v538
    %2634 = vmatpush1.msra.mxu0 %v537
    %2635 = vmatprep.subr.mxu0 %v542
    %2636 = vmatpush1.msra.mxu0 %v541
    %2637 = vmatprep.subr.mxu0 %v546
    %2638 = vmatpush1.msra.mxu0 %v545
    %2639 = vmatprep.subr.mxu0 %v550
    %2640 = vmatpush1.msra.mxu0 %v549
    %2641 = vmatprep.subr.mxu0 %v554
    %2642 = vmatpush1.msra.mxu0 %v553
    %2643 = vmatprep.subr.mxu0 %v558
    %2644 = vmatpush1.msra.mxu0 %v557
    %2645 = vmatprep.subr.mxu0 %v562
    %2646 = vmatpush1.msra.mxu0 %v561
    %2647 = vmatprep.subr.mxu0 %v566
    %2648 = vmatpush1.msra.mxu0 %v565
    %2649 = vmatprep.subr.mxu0 %v570
    %2650 = vmatpush1.msra.mxu0 %v569
    %2651 = vmatprep.subr.mxu0 %v574
    %2652 = vmatpush1.msra.mxu0 %v573
    %2653 = vmatprep.subr.mxu0 0.0
    %2654 = vmatpush1.msra.mxu0 0.0
    %2655 = vmatprep.subr.mxu0 0.0
    %2656 = vmatpush1.msra.mxu0 0.0
    %2657 = vmatprep.subr.mxu0 0.0
    %2658 = vmatpush1.msra.mxu0 0.0
    %2659 = vmatprep.subr.mxu0 0.0
    %2660 = vmatpush1.msra.mxu0 0.0
    %2661 = vmatprep.subr.mxu0 0.0
    %2662 = vmatpush1.msra.mxu0 0.0
    %2663 = vmatprep.subr.mxu0 0.0
    %2664 = vmatpush1.msra.mxu0 0.0
    %2665 = vmatprep.subr.mxu0 0.0
    %2666 = vmatpush1.msra.mxu0 0.0
    %2667 = vmatprep.subr.mxu0 0.0
    %2668 = vmatpush1.msra.mxu0 0.0
    %2669 = vmatprep.subr.mxu0 0.0
    %2670 = vmatpush1.msra.mxu0 0.0
    %2671 = vmatprep.subr.mxu0 0.0
    %2672 = vmatpush1.msra.mxu0 0.0
    %2673 = vmatprep.subr.mxu0 0.0
    %2674 = vmatpush1.msra.mxu0 0.0
    %2675 = vmatprep.subr.mxu0 0.0
    %2676 = vmatpush1.msra.mxu0 0.0
    %2677 = vmatprep.subr.mxu0 0.0
    %2678 = vmatpush1.msra.mxu0 0.0
    %2679 = vmatprep.subr.mxu0 0.0
    %2680 = vmatpush1.msra.mxu0 0.0
    %2681 = vmatprep.subr.mxu0 0.0
    %2682 = vmatpush1.msra.mxu0 0.0
    %2683 = vmatprep.subr.mxu0 0.0
    %2684 = vmatpush1.msra.mxu0 0.0
    %2685 = vmatprep.mubr.f32.mxu0 0.0
    %2686 = vmatmul.mubr.f32.gmra.mrb[0].mxu0 %v2234
    %v2687 = vpop.f32.mrb[0].mxu0
    %v2688 = vadd.f32 %v2546, %v2687
    %v2689 = vpop.f32.mrb[0].mxu0
    %v2690 = vadd.f32 %v2548, %v2689
    %2691 = vdwg.mxu0
    %v2692 = vadd.f32 %v2617, %v466
    %v2693 = vadd.f32 %v2619, %v470
    %v2694 = vadd.f32 %v2688, %v474
    %v2695 = vadd.f32 %v2690, %v478
    %v2696 = vmul.f32 %v2692, 0.5
    %v2697 = vtanh.pop %v2696
    %v2698 = vmul.f32 %v2697, 0.5
    %v2699 = vadd.f32 %v2698, 0.5
    %v2700 = vmul.f32 %v2693, 0.5
    %v2701 = vtanh.pop %v2700
    %v2702 = vmul.f32 %v2701, 0.5
    %v2703 = vadd.f32 %v2702, 0.5
    %v2704 = vtanh.pop %v2694
    %v2705 = vmul.f32 %v2695, 0.5
    %v2706 = vtanh.pop %v2705
    %v2707 = vmul.f32 %v2706, 0.5
    %v2708 = vadd.f32 %v2707, 0.5
    %v2709 = vmul.f32 %v2703, %v2232
    %v2710 = vmul.f32 %v2699, %v2704
    %v2711 = vadd.f32 %v2709, %v2710
    %v2712 = vtanh.pop %v2711
    %v2713 = vmul.f32 %v2708, %v2712
    %s2714 = scalar_lea.vmem [#allocation3], 32
    %2715 = vst [vmem:[%s2714] sm:$0xff] %v2713
    %s2716 = smul.u32 5, 4
    %s2717 = smul.addr %s2716, 8
    %s2718 = scalar_lea.vmem [#allocation2], %s2717
    %v2719 = vld [vmem:[%s2718] sm:$0xff]
    %v2720 = vld [vmem:[%s2718 + $0x8] sm:$0xff]
    %v2721 = vld [vmem:[%s2718 + $0x10] sm:$0xff]
    %v2722 = vld [vmem:[%s2718 + $0x18] sm:$0xff]
    %2723 = vmatprep.subr.mxu0 %v398
    %2724 = vmatpush1.msra.mxu0 %v397
    %2725 = vmatprep.subr.mxu0 %v402
    %2726 = vmatpush1.msra.mxu0 %v401
    %2727 = vmatprep.subr.mxu0 %v406
    %2728 = vmatpush1.msra.mxu0 %v405
    %2729 = vmatprep.subr.mxu0 %v410
    %2730 = vmatpush1.msra.mxu0 %v409
    %2731 = vmatprep.subr.mxu0 %v414
    %2732 = vmatpush1.msra.mxu0 %v413
    %2733 = vmatprep.subr.mxu0 %v418
    %2734 = vmatpush1.msra.mxu0 %v417
    %2735 = vmatprep.subr.mxu0 %v422
    %2736 = vmatpush1.msra.mxu0 %v421
    %2737 = vmatprep.subr.mxu0 %v426
    %2738 = vmatpush1.msra.mxu0 %v425
    %2739 = vmatprep.subr.mxu0 %v430
    %2740 = vmatpush1.msra.mxu0 %v429
    %2741 = vmatprep.subr.mxu0 %v434
    %2742 = vmatpush1.msra.mxu0 %v433
    %2743 = vmatprep.subr.mxu0 %v438
    %2744 = vmatpush1.msra.mxu0 %v437
    %2745 = vmatprep.subr.mxu0 %v442
    %2746 = vmatpush1.msra.mxu0 %v441
    %2747 = vmatprep.subr.mxu0 %v446
    %2748 = vmatpush1.msra.mxu0 %v445
    %2749 = vmatprep.subr.mxu0 %v450
    %2750 = vmatpush1.msra.mxu0 %v449
    %2751 = vmatprep.subr.mxu0 %v454
    %2752 = vmatpush1.msra.mxu0 %v453
    %2753 = vmatprep.subr.mxu0 %v458
    %2754 = vmatpush1.msra.mxu0 %v457
    %2755 = vmatprep.subr.mxu0 0.0
    %2756 = vmatpush1.msra.mxu0 0.0
    %2757 = vmatprep.subr.mxu0 0.0
    %2758 = vmatpush1.msra.mxu0 0.0
    %2759 = vmatprep.subr.mxu0 0.0
    %2760 = vmatpush1.msra.mxu0 0.0
    %2761 = vmatprep.subr.mxu0 0.0
    %2762 = vmatpush1.msra.mxu0 0.0
    %2763 = vmatprep.subr.mxu0 0.0
    %2764 = vmatpush1.msra.mxu0 0.0
    %2765 = vmatprep.subr.mxu0 0.0
    %2766 = vmatpush1.msra.mxu0 0.0
    %2767 = vmatprep.subr.mxu0 0.0
    %2768 = vmatpush1.msra.mxu0 0.0
    %2769 = vmatprep.subr.mxu0 0.0
    %2770 = vmatpush1.msra.mxu0 0.0
    %2771 = vmatprep.subr.mxu0 0.0
    %2772 = vmatpush1.msra.mxu0 0.0
    %2773 = vmatprep.subr.mxu0 0.0
    %2774 = vmatpush1.msra.mxu0 0.0
    %2775 = vmatprep.subr.mxu0 0.0
    %2776 = vmatpush1.msra.mxu0 0.0
    %2777 = vmatprep.subr.mxu0 0.0
    %2778 = vmatpush1.msra.mxu0 0.0
    %2779 = vmatprep.subr.mxu0 0.0
    %2780 = vmatpush1.msra.mxu0 0.0
    %2781 = vmatprep.subr.mxu0 0.0
    %2782 = vmatpush1.msra.mxu0 0.0
    %2783 = vmatprep.subr.mxu0 0.0
    %2784 = vmatpush1.msra.mxu0 0.0
    %2785 = vmatprep.subr.mxu0 0.0
    %2786 = vmatpush1.msra.mxu0 0.0
    %2787 = vmatprep.mubr.f32.mxu0 0.0
    %2788 = vmatmul.mubr.f32.gmra.mrb[0].mxu0 %v2407
    %v2789 = vpop.f32.mrb[0].mxu0
    %v2790 = vadd.f32 0.0, %v2789
    %v2791 = vpop.f32.mrb[0].mxu0
    %v2792 = vadd.f32 0.0, %v2791
    %2793 = vdwg.mxu0
    %2794 = vmatprep.subr.mxu0 %v400
    %2795 = vmatpush1.msra.mxu0 %v399
    %2796 = vmatprep.subr.mxu0 %v404
    %2797 = vmatpush1.msra.mxu0 %v403
    %2798 = vmatprep.subr.mxu0 %v408
    %2799 = vmatpush1.msra.mxu0 %v407
    %2800 = vmatprep.subr.mxu0 %v412
    %2801 = vmatpush1.msra.mxu0 %v411
    %2802 = vmatprep.subr.mxu0 %v416
    %2803 = vmatpush1.msra.mxu0 %v415
    %2804 = vmatprep.subr.mxu0 %v420
    %2805 = vmatpush1.msra.mxu0 %v419
    %2806 = vmatprep.subr.mxu0 %v424
    %2807 = vmatpush1.msra.mxu0 %v423
    %2808 = vmatprep.subr.mxu0 %v428
    %2809 = vmatpush1.msra.mxu0 %v427
    %2810 = vmatprep.subr.mxu0 %v432
    %2811 = vmatpush1.msra.mxu0 %v431
    %2812 = vmatprep.subr.mxu0 %v436
    %2813 = vmatpush1.msra.mxu0 %v435
    %2814 = vmatprep.subr.mxu0 %v440
    %2815 = vmatpush1.msra.mxu0 %v439
    %2816 = vmatprep.subr.mxu0 %v444
    %2817 = vmatpush1.msra.mxu0 %v443
    %2818 = vmatprep.subr.mxu0 %v448
    %2819 = vmatpush1.msra.mxu0 %v447
    %2820 = vmatprep.subr.mxu0 %v452
    %2821 = vmatpush1.msra.mxu0 %v451
    %2822 = vmatprep.subr.mxu0 %v456
    %2823 = vmatpush1.msra.mxu0 %v455
    %2824 = vmatprep.subr.mxu0 %v460
    %2825 = vmatpush1.msra.mxu0 %v459
    %2826 = vmatprep.subr.mxu0 0.0
    %2827 = vmatpush1.msra.mxu0 0.0
    %2828 = vmatprep.subr.mxu0 0.0
    %2829 = vmatpush1.msra.mxu0 0.0
    %2830 = vmatprep.subr.mxu0 0.0
    %2831 = vmatpush1.msra.mxu0 0.0
    %2832 = vmatprep.subr.mxu0 0.0
    %2833 = vmatpush1.msra.mxu0 0.0
    %2834 = vmatprep.subr.mxu0 0.0
    %2835 = vmatpush1.msra.mxu0 0.0
    %2836 = vmatprep.subr.mxu0 0.0
    %2837 = vmatpush1.msra.mxu0 0.0
    %2838 = vmatprep.subr.mxu0 0.0
    %2839 = vmatpush1.msra.mxu0 0.0
    %2840 = vmatprep.subr.mxu0 0.0
    %2841 = vmatpush1.msra.mxu0 0.0
    %2842 = vmatprep.subr.mxu0 0.0
    %2843 = vmatpush1.msra.mxu0 0.0
    %2844 = vmatprep.subr.mxu0 0.0
    %2845 = vmatpush1.msra.mxu0 0.0
    %2846 = vmatprep.subr.mxu0 0.0
    %2847 = vmatpush1.msra.mxu0 0.0
    %2848 = vmatprep.subr.mxu0 0.0
    %2849 = vmatpush1.msra.mxu0 0.0
    %2850 = vmatprep.subr.mxu0 0.0
    %2851 = vmatpush1.msra.mxu0 0.0
    %2852 = vmatprep.subr.mxu0 0.0
    %2853 = vmatpush1.msra.mxu0 0.0
    %2854 = vmatprep.subr.mxu0 0.0
    %2855 = vmatpush1.msra.mxu0 0.0
    %2856 = vmatprep.subr.mxu0 0.0
    %2857 = vmatpush1.msra.mxu0 0.0
    %2858 = vmatprep.mubr.f32.mxu0 0.0
    %2859 = vmatmul.mubr.f32.gmra.mrb[0].mxu0 %v2407
    %v2860 = vpop.f32.mrb[0].mxu0
    %v2861 = vadd.f32 0.0, %v2860
    %v2862 = vpop.f32.mrb[0].mxu0
    %v2863 = vadd.f32 0.0, %v2862
    %2864 = vdwg.mxu0
    %v2865 = vadd.f32 %v2719, %v2790
    %v2866 = vadd.f32 %v2720, %v2792
    %v2867 = vadd.f32 %v2721, %v2861
    %v2868 = vadd.f32 %v2722, %v2863
    %v2869 = vmul.f32 %v2865, 0.5
    %v2870 = vtanh.pop %v2869
    %v2871 = vmul.f32 %v2870, 0.5
    %v2872 = vadd.f32 %v2871, 0.5
    %v2873 = vmul.f32 %v2866, 0.5
    %v2874 = vtanh.pop %v2873
    %v2875 = vmul.f32 %v2874, 0.5
    %v2876 = vadd.f32 %v2875, 0.5
    %v2877 = vtanh.pop %v2867
    %v2878 = vmul.f32 %v2868, 0.5
    %v2879 = vtanh.pop %v2878
    %v2880 = vmul.f32 %v2879, 0.5
    %v2881 = vadd.f32 %v2880, 0.5
    %v2882 = vmul.f32 %v2876, %v2405
    %v2883 = vmul.f32 %v2872, %v2877
    %v2884 = vadd.f32 %v2882, %v2883
    %v2885 = vtanh.pop %v2884
    %v2886 = vmul.f32 %v2881, %v2885
    %2887 = vmatprep.subr.mxu0 %v576
    %2888 = vmatpush1.msra.mxu0 %v575
    %2889 = vmatprep.subr.mxu0 %v580
    %2890 = vmatpush1.msra.mxu0 %v579
    %2891 = vmatprep.subr.mxu0 %v584
    %2892 = vmatpush1.msra.mxu0 %v583
    %2893 = vmatprep.subr.mxu0 %v588
    %2894 = vmatpush1.msra.mxu0 %v587
    %2895 = vmatprep.subr.mxu0 %v592
    %2896 = vmatpush1.msra.mxu0 %v591
    %2897 = vmatprep.subr.mxu0 %v596
    %2898 = vmatpush1.msra.mxu0 %v595
    %2899 = vmatprep.subr.mxu0 %v600
    %2900 = vmatpush1.msra.mxu0 %v599
    %2901 = vmatprep.subr.mxu0 %v604
    %2902 = vmatpush1.msra.mxu0 %v603
    %2903 = vmatprep.subr.mxu0 %v608
    %2904 = vmatpush1.msra.mxu0 %v607
    %2905 = vmatprep.subr.mxu0 %v612
    %2906 = vmatpush1.msra.mxu0 %v611
    %2907 = vmatprep.subr.mxu0 %v616
    %2908 = vmatpush1.msra.mxu0 %v615
    %2909 = vmatprep.subr.mxu0 %v620
    %2910 = vmatpush1.msra.mxu0 %v619
    %2911 = vmatprep.subr.mxu0 %v624
    %2912 = vmatpush1.msra.mxu0 %v623
    %2913 = vmatprep.subr.mxu0 %v628
    %2914 = vmatpush1.msra.mxu0 %v627
    %2915 = vmatprep.subr.mxu0 %v632
    %2916 = vmatpush1.msra.mxu0 %v631
    %2917 = vmatprep.subr.mxu0 %v636
    %2918 = vmatpush1.msra.mxu0 %v635
    %2919 = vmatprep.subr.mxu0 0.0
    %2920 = vmatpush1.msra.mxu0 0.0
    %2921 = vmatprep.subr.mxu0 0.0
    %2922 = vmatpush1.msra.mxu0 0.0
    %2923 = vmatprep.subr.mxu0 0.0
    %2924 = vmatpush1.msra.mxu0 0.0
    %2925 = vmatprep.subr.mxu0 0.0
    %2926 = vmatpush1.msra.mxu0 0.0
    %2927 = vmatprep.subr.mxu0 0.0
    %2928 = vmatpush1.msra.mxu0 0.0
    %2929 = vmatprep.subr.mxu0 0.0
    %2930 = vmatpush1.msra.mxu0 0.0
    %2931 = vmatprep.subr.mxu0 0.0
    %2932 = vmatpush1.msra.mxu0 0.0
    %2933 = vmatprep.subr.mxu0 0.0
    %2934 = vmatpush1.msra.mxu0 0.0
    %2935 = vmatprep.subr.mxu0 0.0
    %2936 = vmatpush1.msra.mxu0 0.0
    %2937 = vmatprep.subr.mxu0 0.0
    %2938 = vmatpush1.msra.mxu0 0.0
    %2939 = vmatprep.subr.mxu0 0.0
    %2940 = vmatpush1.msra.mxu0 0.0
    %2941 = vmatprep.subr.mxu0 0.0
    %2942 = vmatpush1.msra.mxu0 0.0
    %2943 = vmatprep.subr.mxu0 0.0
    %2944 = vmatpush1.msra.mxu0 0.0
    %2945 = vmatprep.subr.mxu0 0.0
    %2946 = vmatpush1.msra.mxu0 0.0
    %2947 = vmatprep.subr.mxu0 0.0
    %2948 = vmatpush1.msra.mxu0 0.0
    %2949 = vmatprep.subr.mxu0 0.0
    %2950 = vmatpush1.msra.mxu0 0.0
    %2951 = vmatprep.mubr.f32.mxu0 0.0
    %2952 = vmatmul.mubr.f32.gmra.mrb[0].mxu0 %v2886
    %v2953 = vpop.f32.mrb[0].mxu0
    %v2954 = vadd.f32 0.0, %v2953
    %v2955 = vpop.f32.mrb[0].mxu0
    %v2956 = vadd.f32 0.0, %v2955
    %2957 = vdwg.mxu0
    %2958 = vmatprep.subr.mxu0 %v578
    %2959 = vmatpush1.msra.mxu0 %v577
    %2960 = vmatprep.subr.mxu0 %v582
    %2961 = vmatpush1.msra.mxu0 %v581
    %2962 = vmatprep.subr.mxu0 %v586
    %2963 = vmatpush1.msra.mxu0 %v585
    %2964 = vmatprep.subr.mxu0 %v590
    %2965 = vmatpush1.msra.mxu0 %v589
    %2966 = vmatprep.subr.mxu0 %v594
    %2967 = vmatpush1.msra.mxu0 %v593
    %2968 = vmatprep.subr.mxu0 %v598
    %2969 = vmatpush1.msra.mxu0 %v597
    %2970 = vmatprep.subr.mxu0 %v602
    %2971 = vmatpush1.msra.mxu0 %v601
    %2972 = vmatprep.subr.mxu0 %v606
    %2973 = vmatpush1.msra.mxu0 %v605
    %2974 = vmatprep.subr.mxu0 %v610
    %2975 = vmatpush1.msra.mxu0 %v609
    %2976 = vmatprep.subr.mxu0 %v614
    %2977 = vmatpush1.msra.mxu0 %v613
    %2978 = vmatprep.subr.mxu0 %v618
    %2979 = vmatpush1.msra.mxu0 %v617
    %2980 = vmatprep.subr.mxu0 %v622
    %2981 = vmatpush1.msra.mxu0 %v621
    %2982 = vmatprep.subr.mxu0 %v626
    %2983 = vmatpush1.msra.mxu0 %v625
    %2984 = vmatprep.subr.mxu0 %v630
    %2985 = vmatpush1.msra.mxu0 %v629
    %2986 = vmatprep.subr.mxu0 %v634
    %2987 = vmatpush1.msra.mxu0 %v633
    %2988 = vmatprep.subr.mxu0 %v638
    %2989 = vmatpush1.msra.mxu0 %v637
    %2990 = vmatprep.subr.mxu0 0.0
    %2991 = vmatpush1.msra.mxu0 0.0
    %2992 = vmatprep.subr.mxu0 0.0
    %2993 = vmatpush1.msra.mxu0 0.0
    %2994 = vmatprep.subr.mxu0 0.0
    %2995 = vmatpush1.msra.mxu0 0.0
    %2996 = vmatprep.subr.mxu0 0.0
    %2997 = vmatpush1.msra.mxu0 0.0
    %2998 = vmatprep.subr.mxu0 0.0
    %2999 = vmatpush1.msra.mxu0 0.0
    %3000 = vmatprep.subr.mxu0 0.0
    %3001 = vmatpush1.msra.mxu0 0.0
    %3002 = vmatprep.subr.mxu0 0.0
    %3003 = vmatpush1.msra.mxu0 0.0
    %3004 = vmatprep.subr.mxu0 0.0
    %3005 = vmatpush1.msra.mxu0 0.0
    %3006 = vmatprep.subr.mxu0 0.0
    %3007 = vmatpush1.msra.mxu0 0.0
    %3008 = vmatprep.subr.mxu0 0.0
    %3009 = vmatpush1.msra.mxu0 0.0
    %3010 = vmatprep.subr.mxu0 0.0
    %3011 = vmatpush1.msra.mxu0 0.0
    %3012 = vmatprep.subr.mxu0 0.0
    %3013 = vmatpush1.msra.mxu0 0.0
    %3014 = vmatprep.subr.mxu0 0.0
    %3015 = vmatpush1.msra.mxu0 0.0
    %3016 = vmatprep.subr.mxu0 0.0
    %3017 = vmatpush1.msra.mxu0 0.0
    %3018 = vmatprep.subr.mxu0 0.0
    %3019 = vmatpush1.msra.mxu0 0.0
    %3020 = vmatprep.subr.mxu0 0.0
    %3021 = vmatpush1.msra.mxu0 0.0
    %3022 = vmatprep.mubr.f32.mxu0 0.0
    %3023 = vmatmul.mubr.f32.gmra.mrb[0].mxu0 %v2886
    %v3024 = vpop.f32.mrb[0].mxu0
    %v3025 = vadd.f32 0.0, %v3024
    %v3026 = vpop.f32.mrb[0].mxu0
    %v3027 = vadd.f32 0.0, %v3026
    %3028 = vdwg.mxu0
    %3029 = vmatprep.subr.mxu0 %v512
    %3030 = vmatpush1.msra.mxu0 %v511
    %3031 = vmatprep.subr.mxu0 %v516
    %3032 = vmatpush1.msra.mxu0 %v515
    %3033 = vmatprep.subr.mxu0 %v520
    %3034 = vmatpush1.msra.mxu0 %v519
    %3035 = vmatprep.subr.mxu0 %v524
    %3036 = vmatpush1.msra.mxu0 %v523
    %3037 = vmatprep.subr.mxu0 %v528
    %3038 = vmatpush1.msra.mxu0 %v527
    %3039 = vmatprep.subr.mxu0 %v532
    %3040 = vmatpush1.msra.mxu0 %v531
    %3041 = vmatprep.subr.mxu0 %v536
    %3042 = vmatpush1.msra.mxu0 %v535
    %3043 = vmatprep.subr.mxu0 %v540
    %3044 = vmatpush1.msra.mxu0 %v539
    %3045 = vmatprep.subr.mxu0 %v544
    %3046 = vmatpush1.msra.mxu0 %v543
    %3047 = vmatprep.subr.mxu0 %v548
    %3048 = vmatpush1.msra.mxu0 %v547
    %3049 = vmatprep.subr.mxu0 %v552
    %3050 = vmatpush1.msra.mxu0 %v551
    %3051 = vmatprep.subr.mxu0 %v556
    %3052 = vmatpush1.msra.mxu0 %v555
    %3053 = vmatprep.subr.mxu0 %v560
    %3054 = vmatpush1.msra.mxu0 %v559
    %3055 = vmatprep.subr.mxu0 %v564
    %3056 = vmatpush1.msra.mxu0 %v563
    %3057 = vmatprep.subr.mxu0 %v568
    %3058 = vmatpush1.msra.mxu0 %v567
    %3059 = vmatprep.subr.mxu0 %v572
    %3060 = vmatpush1.msra.mxu0 %v571
    %3061 = vmatprep.subr.mxu0 0.0
    %3062 = vmatpush1.msra.mxu0 0.0
    %3063 = vmatprep.subr.mxu0 0.0
    %3064 = vmatpush1.msra.mxu0 0.0
    %3065 = vmatprep.subr.mxu0 0.0
    %3066 = vmatpush1.msra.mxu0 0.0
    %3067 = vmatprep.subr.mxu0 0.0
    %3068 = vmatpush1.msra.mxu0 0.0
    %3069 = vmatprep.subr.mxu0 0.0
    %3070 = vmatpush1.msra.mxu0 0.0
    %3071 = vmatprep.subr.mxu0 0.0
    %3072 = vmatpush1.msra.mxu0 0.0
    %3073 = vmatprep.subr.mxu0 0.0
    %3074 = vmatpush1.msra.mxu0 0.0
    %3075 = vmatprep.subr.mxu0 0.0
    %3076 = vmatpush1.msra.mxu0 0.0
    %3077 = vmatprep.subr.mxu0 0.0
    %3078 = vmatpush1.msra.mxu0 0.0
    %3079 = vmatprep.subr.mxu0 0.0
    %3080 = vmatpush1.msra.mxu0 0.0
    %3081 = vmatprep.subr.mxu0 0.0
    %3082 = vmatpush1.msra.mxu0 0.0
    %3083 = vmatprep.subr.mxu0 0.0
    %3084 = vmatpush1.msra.mxu0 0.0
    %3085 = vmatprep.subr.mxu0 0.0
    %3086 = vmatpush1.msra.mxu0 0.0
    %3087 = vmatprep.subr.mxu0 0.0
    %3088 = vmatpush1.msra.mxu0 0.0
    %3089 = vmatprep.subr.mxu0 0.0
    %3090 = vmatpush1.msra.mxu0 0.0
    %3091 = vmatprep.subr.mxu0 0.0
    %3092 = vmatpush1.msra.mxu0 0.0
    %3093 = vmatprep.mubr.f32.mxu0 0.0
    %3094 = vmatmul.mubr.f32.gmra.mrb[0].mxu0 %v2713
    %v3095 = vpop.f32.mrb[0].mxu0
    %v3096 = vadd.f32 %v2954, %v3095
    %v3097 = vpop.f32.mrb[0].mxu0
    %v3098 = vadd.f32 %v2956, %v3097
    %3099 = vdwg.mxu0
    %3100 = vmatprep.subr.mxu0 %v514
    %3101 = vmatpush1.msra.mxu0 %v513
    %3102 = vmatprep.subr.mxu0 %v518
    %3103 = vmatpush1.msra.mxu0 %v517
    %3104 = vmatprep.subr.mxu0 %v522
    %3105 = vmatpush1.msra.mxu0 %v521
    %3106 = vmatprep.subr.mxu0 %v526
    %3107 = vmatpush1.msra.mxu0 %v525
    %3108 = vmatprep.subr.mxu0 %v530
    %3109 = vmatpush1.msra.mxu0 %v529
    %3110 = vmatprep.subr.mxu0 %v534
    %3111 = vmatpush1.msra.mxu0 %v533
    %3112 = vmatprep.subr.mxu0 %v538
    %3113 = vmatpush1.msra.mxu0 %v537
    %3114 = vmatprep.subr.mxu0 %v542
    %3115 = vmatpush1.msra.mxu0 %v541
    %3116 = vmatprep.subr.mxu0 %v546
    %3117 = vmatpush1.msra.mxu0 %v545
    %3118 = vmatprep.subr.mxu0 %v550
    %3119 = vmatpush1.msra.mxu0 %v549
    %3120 = vmatprep.subr.mxu0 %v554
    %3121 = vmatpush1.msra.mxu0 %v553
    %3122 = vmatprep.subr.mxu0 %v558
    %3123 = vmatpush1.msra.mxu0 %v557
    %3124 = vmatprep.subr.mxu0 %v562
    %3125 = vmatpush1.msra.mxu0 %v561
    %3126 = vmatprep.subr.mxu0 %v566
    %3127 = vmatpush1.msra.mxu0 %v565
    %3128 = vmatprep.subr.mxu0 %v570
    %3129 = vmatpush1.msra.mxu0 %v569
    %3130 = vmatprep.subr.mxu0 %v574
    %3131 = vmatpush1.msra.mxu0 %v573
    %3132 = vmatprep.subr.mxu0 0.0
    %3133 = vmatpush1.msra.mxu0 0.0
    %3134 = vmatprep.subr.mxu0 0.0
    %3135 = vmatpush1.msra.mxu0 0.0
    %3136 = vmatprep.subr.mxu0 0.0
    %3137 = vmatpush1.msra.mxu0 0.0
    %3138 = vmatprep.subr.mxu0 0.0
    %3139 = vmatpush1.msra.mxu0 0.0
    %3140 = vmatprep.subr.mxu0 0.0
    %3141 = vmatpush1.msra.mxu0 0.0
    %3142 = vmatprep.subr.mxu0 0.0
    %3143 = vmatpush1.msra.mxu0 0.0
    %3144 = vmatprep.subr.mxu0 0.0
    %3145 = vmatpush1.msra.mxu0 0.0
    %3146 = vmatprep.subr.mxu0 0.0
    %3147 = vmatpush1.msra.mxu0 0.0
    %3148 = vmatprep.subr.mxu0 0.0
    %3149 = vmatpush1.msra.mxu0 0.0
    %3150 = vmatprep.subr.mxu0 0.0
    %3151 = vmatpush1.msra.mxu0 0.0
    %3152 = vmatprep.subr.mxu0 0.0
    %3153 = vmatpush1.msra.mxu0 0.0
    %3154 = vmatprep.subr.mxu0 0.0
    %3155 = vmatpush1.msra.mxu0 0.0
    %3156 = vmatprep.subr.mxu0 0.0
    %3157 = vmatpush1.msra.mxu0 0.0
    %3158 = vmatprep.subr.mxu0 0.0
    %3159 = vmatpush1.msra.mxu0 0.0
    %3160 = vmatprep.subr.mxu0 0.0
    %3161 = vmatpush1.msra.mxu0 0.0
    %3162 = vmatprep.subr.mxu0 0.0
    %3163 = vmatpush1.msra.mxu0 0.0
    %3164 = vmatprep.mubr.f32.mxu0 0.0
    %3165 = vmatmul.mubr.f32.gmra.mrb[0].mxu0 %v2713
    %v3166 = vpop.f32.mrb[0].mxu0
    %v3167 = vadd.f32 %v3025, %v3166
    %v3168 = vpop.f32.mrb[0].mxu0
    %v3169 = vadd.f32 %v3027, %v3168
    %3170 = vdwg.mxu0
    %v3171 = vadd.f32 %v3096, %v466
    %v3172 = vadd.f32 %v3098, %v470
    %v3173 = vadd.f32 %v3167, %v474
    %v3174 = vadd.f32 %v3169, %v478
    %v3175 = vmul.f32 %v3171, 0.5
    %v3176 = vtanh.pop %v3175
    %v3177 = vmul.f32 %v3176, 0.5
    %v3178 = vadd.f32 %v3177, 0.5
    %v3179 = vmul.f32 %v3172, 0.5
    %v3180 = vtanh.pop %v3179
    %v3181 = vmul.f32 %v3180, 0.5
    %v3182 = vadd.f32 %v3181, 0.5
    %v3183 = vtanh.pop %v3173
    %v3184 = vmul.f32 %v3174, 0.5
    %v3185 = vtanh.pop %v3184
    %v3186 = vmul.f32 %v3185, 0.5
    %v3187 = vadd.f32 %v3186, 0.5
    %v3188 = vmul.f32 %v3182, %v2711
    %v3189 = vmul.f32 %v3178, %v3183
    %v3190 = vadd.f32 %v3188, %v3189
    %v3191 = vtanh.pop %v3190
    %v3192 = vmul.f32 %v3187, %v3191
    %s3193 = scalar_lea.vmem [#allocation3], 40
    %3194 = vst [vmem:[%s3193] sm:$0xff] %v3192
    %s3195 = smul.u32 6, 4
    %s3196 = smul.addr %s3195, 8
    %s3197 = scalar_lea.vmem [#allocation2], %s3196
    %v3198 = vld [vmem:[%s3197] sm:$0xff]
    %v3199 = vld [vmem:[%s3197 + $0x8] sm:$0xff]
    %v3200 = vld [vmem:[%s3197 + $0x10] sm:$0xff]
    %v3201 = vld [vmem:[%s3197 + $0x18] sm:$0xff]
    %3202 = vmatprep.subr.mxu0 %v398
    %3203 = vmatpush1.msra.mxu0 %v397
    %3204 = vmatprep.subr.mxu0 %v402
    %3205 = vmatpush1.msra.mxu0 %v401
    %3206 = vmatprep.subr.mxu0 %v406
    %3207 = vmatpush1.msra.mxu0 %v405
    %3208 = vmatprep.subr.mxu0 %v410
    %3209 = vmatpush1.msra.mxu0 %v409
    %3210 = vmatprep.subr.mxu0 %v414
    %3211 = vmatpush1.msra.mxu0 %v413
    %3212 = vmatprep.subr.mxu0 %v418
    %3213 = vmatpush1.msra.mxu0 %v417
    %3214 = vmatprep.subr.mxu0 %v422
    %3215 = vmatpush1.msra.mxu0 %v421
    %3216 = vmatprep.subr.mxu0 %v426
    %3217 = vmatpush1.msra.mxu0 %v425
    %3218 = vmatprep.subr.mxu0 %v430
    %3219 = vmatpush1.msra.mxu0 %v429
    %3220 = vmatprep.subr.mxu0 %v434
    %3221 = vmatpush1.msra.mxu0 %v433
    %3222 = vmatprep.subr.mxu0 %v438
    %3223 = vmatpush1.msra.mxu0 %v437
    %3224 = vmatprep.subr.mxu0 %v442
    %3225 = vmatpush1.msra.mxu0 %v441
    %3226 = vmatprep.subr.mxu0 %v446
    %3227 = vmatpush1.msra.mxu0 %v445
    %3228 = vmatprep.subr.mxu0 %v450
    %3229 = vmatpush1.msra.mxu0 %v449
    %3230 = vmatprep.subr.mxu0 %v454
    %3231 = vmatpush1.msra.mxu0 %v453
    %3232 = vmatprep.subr.mxu0 %v458
    %3233 = vmatpush1.msra.mxu0 %v457
    %3234 = vmatprep.subr.mxu0 0.0
    %3235 = vmatpush1.msra.mxu0 0.0
    %3236 = vmatprep.subr.mxu0 0.0
    %3237 = vmatpush1.msra.mxu0 0.0
    %3238 = vmatprep.subr.mxu0 0.0
    %3239 = vmatpush1.msra.mxu0 0.0
    %3240 = vmatprep.subr.mxu0 0.0
    %3241 = vmatpush1.msra.mxu0 0.0
    %3242 = vmatprep.subr.mxu0 0.0
    %3243 = vmatpush1.msra.mxu0 0.0
    %3244 = vmatprep.subr.mxu0 0.0
    %3245 = vmatpush1.msra.mxu0 0.0
    %3246 = vmatprep.subr.mxu0 0.0
    %3247 = vmatpush1.msra.mxu0 0.0
    %3248 = vmatprep.subr.mxu0 0.0
    %3249 = vmatpush1.msra.mxu0 0.0
    %3250 = vmatprep.subr.mxu0 0.0
    %3251 = vmatpush1.msra.mxu0 0.0
    %3252 = vmatprep.subr.mxu0 0.0
    %3253 = vmatpush1.msra.mxu0 0.0
    %3254 = vmatprep.subr.mxu0 0.0
    %3255 = vmatpush1.msra.mxu0 0.0
    %3256 = vmatprep.subr.mxu0 0.0
    %3257 = vmatpush1.msra.mxu0 0.0
    %3258 = vmatprep.subr.mxu0 0.0
    %3259 = vmatpush1.msra.mxu0 0.0
    %3260 = vmatprep.subr.mxu0 0.0
    %3261 = vmatpush1.msra.mxu0 0.0
    %3262 = vmatprep.subr.mxu0 0.0
    %3263 = vmatpush1.msra.mxu0 0.0
    %3264 = vmatprep.subr.mxu0 0.0
    %3265 = vmatpush1.msra.mxu0 0.0
    %3266 = vmatprep.mubr.f32.mxu0 0.0
    %3267 = vmatmul.mubr.f32.gmra.mrb[0].mxu0 %v2886
    %v3268 = vpop.f32.mrb[0].mxu0
    %v3269 = vadd.f32 0.0, %v3268
    %v3270 = vpop.f32.mrb[0].mxu0
    %v3271 = vadd.f32 0.0, %v3270
    %3272 = vdwg.mxu0
    %3273 = vmatprep.subr.mxu0 %v400
    %3274 = vmatpush1.msra.mxu0 %v399
    %3275 = vmatprep.subr.mxu0 %v404
    %3276 = vmatpush1.msra.mxu0 %v403
    %3277 = vmatprep.subr.mxu0 %v408
    %3278 = vmatpush1.msra.mxu0 %v407
    %3279 = vmatprep.subr.mxu0 %v412
    %3280 = vmatpush1.msra.mxu0 %v411
    %3281 = vmatprep.subr.mxu0 %v416
    %3282 = vmatpush1.msra.mxu0 %v415
    %3283 = vmatprep.subr.mxu0 %v420
    %3284 = vmatpush1.msra.mxu0 %v419
    %3285 = vmatprep.subr.mxu0 %v424
    %3286 = vmatpush1.msra.mxu0 %v423
    %3287 = vmatprep.subr.mxu0 %v428
    %3288 = vmatpush1.msra.mxu0 %v427
    %3289 = vmatprep.subr.mxu0 %v432
    %3290 = vmatpush1.msra.mxu0 %v431
    %3291 = vmatprep.subr.mxu0 %v436
    %3292 = vmatpush1.msra.mxu0 %v435
    %3293 = vmatprep.subr.mxu0 %v440
    %3294 = vmatpush1.msra.mxu0 %v439
    %3295 = vmatprep.subr.mxu0 %v444
    %3296 = vmatpush1.msra.mxu0 %v443
    %3297 = vmatprep.subr.mxu0 %v448
    %3298 = vmatpush1.msra.mxu0 %v447
    %3299 = vmatprep.subr.mxu0 %v452
    %3300 = vmatpush1.msra.mxu0 %v451
    %3301 = vmatprep.subr.mxu0 %v456
    %3302 = vmatpush1.msra.mxu0 %v455
    %3303 = vmatprep.subr.mxu0 %v460
    %3304 = vmatpush1.msra.mxu0 %v459
    %3305 = vmatprep.subr.mxu0 0.0
    %3306 = vmatpush1.msra.mxu0 0.0
    %3307 = vmatprep.subr.mxu0 0.0
    %3308 = vmatpush1.msra.mxu0 0.0
    %3309 = vmatprep.subr.mxu0 0.0
    %3310 = vmatpush1.msra.mxu0 0.0
    %3311 = vmatprep.subr.mxu0 0.0
    %3312 = vmatpush1.msra.mxu0 0.0
    %3313 = vmatprep.subr.mxu0 0.0
    %3314 = vmatpush1.msra.mxu0 0.0
    %3315 = vmatprep.subr.mxu0 0.0
    %3316 = vmatpush1.msra.mxu0 0.0
    %3317 = vmatprep.subr.mxu0 0.0
    %3318 = vmatpush1.msra.mxu0 0.0
    %3319 = vmatprep.subr.mxu0 0.0
    %3320 = vmatpush1.msra.mxu0 0.0
    %3321 = vmatprep.subr.mxu0 0.0
    %3322 = vmatpush1.msra.mxu0 0.0
    %3323 = vmatprep.subr.mxu0 0.0
    %3324 = vmatpush1.msra.mxu0 0.0
    %3325 = vmatprep.subr.mxu0 0.0
    %3326 = vmatpush1.msra.mxu0 0.0
    %3327 = vmatprep.subr.mxu0 0.0
    %3328 = vmatpush1.msra.mxu0 0.0
    %3329 = vmatprep.subr.mxu0 0.0
    %3330 = vmatpush1.msra.mxu0 0.0
    %3331 = vmatprep.subr.mxu0 0.0
    %3332 = vmatpush1.msra.mxu0 0.0
    %3333 = vmatprep.subr.mxu0 0.0
    %3334 = vmatpush1.msra.mxu0 0.0
    %3335 = vmatprep.subr.mxu0 0.0
    %3336 = vmatpush1.msra.mxu0 0.0
    %3337 = vmatprep.mubr.f32.mxu0 0.0
    %3338 = vmatmul.mubr.f32.gmra.mrb[0].mxu0 %v2886
    %v3339 = vpop.f32.mrb[0].mxu0
    %v3340 = vadd.f32 0.0, %v3339
    %v3341 = vpop.f32.mrb[0].mxu0
    %v3342 = vadd.f32 0.0, %v3341
    %3343 = vdwg.mxu0
    %v3344 = vadd.f32 %v3198, %v3269
    %v3345 = vadd.f32 %v3199, %v3271
    %v3346 = vadd.f32 %v3200, %v3340
    %v3347 = vadd.f32 %v3201, %v3342
    %v3348 = vmul.f32 %v3344, 0.5
    %v3349 = vtanh.pop %v3348
    %v3350 = vmul.f32 %v3349, 0.5
    %v3351 = vadd.f32 %v3350, 0.5
    %v3352 = vmul.f32 %v3345, 0.5
    %v3353 = vtanh.pop %v3352
    %v3354 = vmul.f32 %v3353, 0.5
    %v3355 = vadd.f32 %v3354, 0.5
    %v3356 = vtanh.pop %v3346
    %v3357 = vmul.f32 %v3347, 0.5
    %v3358 = vtanh.pop %v3357
    %v3359 = vmul.f32 %v3358, 0.5
    %v3360 = vadd.f32 %v3359, 0.5
    %v3361 = vmul.f32 %v3355, %v2884
    %v3362 = vmul.f32 %v3351, %v3356
    %v3363 = vadd.f32 %v3361, %v3362
    %v3364 = vtanh.pop %v3363
    %v3365 = vmul.f32 %v3360, %v3364
    %3366 = vmatprep.subr.mxu0 %v576
    %3367 = vmatpush1.msra.mxu0 %v575
    %3368 = vmatprep.subr.mxu0 %v580
    %3369 = vmatpush1.msra.mxu0 %v579
    %3370 = vmatprep.subr.mxu0 %v584
    %3371 = vmatpush1.msra.mxu0 %v583
    %3372 = vmatprep.subr.mxu0 %v588
    %3373 = vmatpush1.msra.mxu0 %v587
    %3374 = vmatprep.subr.mxu0 %v592
    %3375 = vmatpush1.msra.mxu0 %v591
    %3376 = vmatprep.subr.mxu0 %v596
    %3377 = vmatpush1.msra.mxu0 %v595
    %3378 = vmatprep.subr.mxu0 %v600
    %3379 = vmatpush1.msra.mxu0 %v599
    %3380 = vmatprep.subr.mxu0 %v604
    %3381 = vmatpush1.msra.mxu0 %v603
    %3382 = vmatprep.subr.mxu0 %v608
    %3383 = vmatpush1.msra.mxu0 %v607
    %3384 = vmatprep.subr.mxu0 %v612
    %3385 = vmatpush1.msra.mxu0 %v611
    %3386 = vmatprep.subr.mxu0 %v616
    %3387 = vmatpush1.msra.mxu0 %v615
    %3388 = vmatprep.subr.mxu0 %v620
    %3389 = vmatpush1.msra.mxu0 %v619
    %3390 = vmatprep.subr.mxu0 %v624
    %3391 = vmatpush1.msra.mxu0 %v623
    %3392 = vmatprep.subr.mxu0 %v628
    %3393 = vmatpush1.msra.mxu0 %v627
    %3394 = vmatprep.subr.mxu0 %v632
    %3395 = vmatpush1.msra.mxu0 %v631
    %3396 = vmatprep.subr.mxu0 %v636
    %3397 = vmatpush1.msra.mxu0 %v635
    %3398 = vmatprep.subr.mxu0 0.0
    %3399 = vmatpush1.msra.mxu0 0.0
    %3400 = vmatprep.subr.mxu0 0.0
    %3401 = vmatpush1.msra.mxu0 0.0
    %3402 = vmatprep.subr.mxu0 0.0
    %3403 = vmatpush1.msra.mxu0 0.0
    %3404 = vmatprep.subr.mxu0 0.0
    %3405 = vmatpush1.msra.mxu0 0.0
    %3406 = vmatprep.subr.mxu0 0.0
    %3407 = vmatpush1.msra.mxu0 0.0
    %3408 = vmatprep.subr.mxu0 0.0
    %3409 = vmatpush1.msra.mxu0 0.0
    %3410 = vmatprep.subr.mxu0 0.0
    %3411 = vmatpush1.msra.mxu0 0.0
    %3412 = vmatprep.subr.mxu0 0.0
    %3413 = vmatpush1.msra.mxu0 0.0
    %3414 = vmatprep.subr.mxu0 0.0
    %3415 = vmatpush1.msra.mxu0 0.0
    %3416 = vmatprep.subr.mxu0 0.0
    %3417 = vmatpush1.msra.mxu0 0.0
    %3418 = vmatprep.subr.mxu0 0.0
    %3419 = vmatpush1.msra.mxu0 0.0
    %3420 = vmatprep.subr.mxu0 0.0
    %3421 = vmatpush1.msra.mxu0 0.0
    %3422 = vmatprep.subr.mxu0 0.0
    %3423 = vmatpush1.msra.mxu0 0.0
    %3424 = vmatprep.subr.mxu0 0.0
    %3425 = vmatpush1.msra.mxu0 0.0
    %3426 = vmatprep.subr.mxu0 0.0
    %3427 = vmatpush1.msra.mxu0 0.0
    %3428 = vmatprep.subr.mxu0 0.0
    %3429 = vmatpush1.msra.mxu0 0.0
    %3430 = vmatprep.mubr.f32.mxu0 0.0
    %3431 = vmatmul.mubr.f32.gmra.mrb[0].mxu0 %v3365
    %v3432 = vpop.f32.mrb[0].mxu0
    %v3433 = vadd.f32 0.0, %v3432
    %v3434 = vpop.f32.mrb[0].mxu0
    %v3435 = vadd.f32 0.0, %v3434
    %3436 = vdwg.mxu0
    %3437 = vmatprep.subr.mxu0 %v578
    %3438 = vmatpush1.msra.mxu0 %v577
    %3439 = vmatprep.subr.mxu0 %v582
    %3440 = vmatpush1.msra.mxu0 %v581
    %3441 = vmatprep.subr.mxu0 %v586
    %3442 = vmatpush1.msra.mxu0 %v585
    %3443 = vmatprep.subr.mxu0 %v590
    %3444 = vmatpush1.msra.mxu0 %v589
    %3445 = vmatprep.subr.mxu0 %v594
    %3446 = vmatpush1.msra.mxu0 %v593
    %3447 = vmatprep.subr.mxu0 %v598
    %3448 = vmatpush1.msra.mxu0 %v597
    %3449 = vmatprep.subr.mxu0 %v602
    %3450 = vmatpush1.msra.mxu0 %v601
    %3451 = vmatprep.subr.mxu0 %v606
    %3452 = vmatpush1.msra.mxu0 %v605
    %3453 = vmatprep.subr.mxu0 %v610
    %3454 = vmatpush1.msra.mxu0 %v609
    %3455 = vmatprep.subr.mxu0 %v614
    %3456 = vmatpush1.msra.mxu0 %v613
    %3457 = vmatprep.subr.mxu0 %v618
    %3458 = vmatpush1.msra.mxu0 %v617
    %3459 = vmatprep.subr.mxu0 %v622
    %3460 = vmatpush1.msra.mxu0 %v621
    %3461 = vmatprep.subr.mxu0 %v626
    %3462 = vmatpush1.msra.mxu0 %v625
    %3463 = vmatprep.subr.mxu0 %v630
    %3464 = vmatpush1.msra.mxu0 %v629
    %3465 = vmatprep.subr.mxu0 %v634
    %3466 = vmatpush1.msra.mxu0 %v633
    %3467 = vmatprep.subr.mxu0 %v638
    %3468 = vmatpush1.msra.mxu0 %v637
    %3469 = vmatprep.subr.mxu0 0.0
    %3470 = vmatpush1.msra.mxu0 0.0
    %3471 = vmatprep.subr.mxu0 0.0
    %3472 = vmatpush1.msra.mxu0 0.0
    %3473 = vmatprep.subr.mxu0 0.0
    %3474 = vmatpush1.msra.mxu0 0.0
    %3475 = vmatprep.subr.mxu0 0.0
    %3476 = vmatpush1.msra.mxu0 0.0
    %3477 = vmatprep.subr.mxu0 0.0
    %3478 = vmatpush1.msra.mxu0 0.0
    %3479 = vmatprep.subr.mxu0 0.0
    %3480 = vmatpush1.msra.mxu0 0.0
    %3481 = vmatprep.subr.mxu0 0.0
    %3482 = vmatpush1.msra.mxu0 0.0
    %3483 = vmatprep.subr.mxu0 0.0
    %3484 = vmatpush1.msra.mxu0 0.0
    %3485 = vmatprep.subr.mxu0 0.0
    %3486 = vmatpush1.msra.mxu0 0.0
    %3487 = vmatprep.subr.mxu0 0.0
    %3488 = vmatpush1.msra.mxu0 0.0
    %3489 = vmatprep.subr.mxu0 0.0
    %3490 = vmatpush1.msra.mxu0 0.0
    %3491 = vmatprep.subr.mxu0 0.0
    %3492 = vmatpush1.msra.mxu0 0.0
    %3493 = vmatprep.subr.mxu0 0.0
    %3494 = vmatpush1.msra.mxu0 0.0
    %3495 = vmatprep.subr.mxu0 0.0
    %3496 = vmatpush1.msra.mxu0 0.0
    %3497 = vmatprep.subr.mxu0 0.0
    %3498 = vmatpush1.msra.mxu0 0.0
    %3499 = vmatprep.subr.mxu0 0.0
    %3500 = vmatpush1.msra.mxu0 0.0
    %3501 = vmatprep.mubr.f32.mxu0 0.0
    %3502 = vmatmul.mubr.f32.gmra.mrb[0].mxu0 %v3365
    %v3503 = vpop.f32.mrb[0].mxu0
    %v3504 = vadd.f32 0.0, %v3503
    %v3505 = vpop.f32.mrb[0].mxu0
    %v3506 = vadd.f32 0.0, %v3505
    %3507 = vdwg.mxu0
    %3508 = vmatprep.subr.mxu0 %v512
    %3509 = vmatpush1.msra.mxu0 %v511
    %3510 = vmatprep.subr.mxu0 %v516
    %3511 = vmatpush1.msra.mxu0 %v515
    %3512 = vmatprep.subr.mxu0 %v520
    %3513 = vmatpush1.msra.mxu0 %v519
    %3514 = vmatprep.subr.mxu0 %v524
    %3515 = vmatpush1.msra.mxu0 %v523
    %3516 = vmatprep.subr.mxu0 %v528
    %3517 = vmatpush1.msra.mxu0 %v527
    %3518 = vmatprep.subr.mxu0 %v532
    %3519 = vmatpush1.msra.mxu0 %v531
    %3520 = vmatprep.subr.mxu0 %v536
    %3521 = vmatpush1.msra.mxu0 %v535
    %3522 = vmatprep.subr.mxu0 %v540
    %3523 = vmatpush1.msra.mxu0 %v539
    %3524 = vmatprep.subr.mxu0 %v544
    %3525 = vmatpush1.msra.mxu0 %v543
    %3526 = vmatprep.subr.mxu0 %v548
    %3527 = vmatpush1.msra.mxu0 %v547
    %3528 = vmatprep.subr.mxu0 %v552
    %3529 = vmatpush1.msra.mxu0 %v551
    %3530 = vmatprep.subr.mxu0 %v556
    %3531 = vmatpush1.msra.mxu0 %v555
    %3532 = vmatprep.subr.mxu0 %v560
    %3533 = vmatpush1.msra.mxu0 %v559
    %3534 = vmatprep.subr.mxu0 %v564
    %3535 = vmatpush1.msra.mxu0 %v563
    %3536 = vmatprep.subr.mxu0 %v568
    %3537 = vmatpush1.msra.mxu0 %v567
    %3538 = vmatprep.subr.mxu0 %v572
    %3539 = vmatpush1.msra.mxu0 %v571
    %3540 = vmatprep.subr.mxu0 0.0
    %3541 = vmatpush1.msra.mxu0 0.0
    %3542 = vmatprep.subr.mxu0 0.0
    %3543 = vmatpush1.msra.mxu0 0.0
    %3544 = vmatprep.subr.mxu0 0.0
    %3545 = vmatpush1.msra.mxu0 0.0
    %3546 = vmatprep.subr.mxu0 0.0
    %3547 = vmatpush1.msra.mxu0 0.0
    %3548 = vmatprep.subr.mxu0 0.0
    %3549 = vmatpush1.msra.mxu0 0.0
    %3550 = vmatprep.subr.mxu0 0.0
    %3551 = vmatpush1.msra.mxu0 0.0
    %3552 = vmatprep.subr.mxu0 0.0
    %3553 = vmatpush1.msra.mxu0 0.0
    %3554 = vmatprep.subr.mxu0 0.0
    %3555 = vmatpush1.msra.mxu0 0.0
    %3556 = vmatprep.subr.mxu0 0.0
    %3557 = vmatpush1.msra.mxu0 0.0
    %3558 = vmatprep.subr.mxu0 0.0
    %3559 = vmatpush1.msra.mxu0 0.0
    %3560 = vmatprep.subr.mxu0 0.0
    %3561 = vmatpush1.msra.mxu0 0.0
    %3562 = vmatprep.subr.mxu0 0.0
    %3563 = vmatpush1.msra.mxu0 0.0
    %3564 = vmatprep.subr.mxu0 0.0
    %3565 = vmatpush1.msra.mxu0 0.0
    %3566 = vmatprep.subr.mxu0 0.0
    %3567 = vmatpush1.msra.mxu0 0.0
    %3568 = vmatprep.subr.mxu0 0.0
    %3569 = vmatpush1.msra.mxu0 0.0
    %3570 = vmatprep.subr.mxu0 0.0
    %3571 = vmatpush1.msra.mxu0 0.0
    %3572 = vmatprep.mubr.f32.mxu0 0.0
    %3573 = vmatmul.mubr.f32.gmra.mrb[0].mxu0 %v3192
    %v3574 = vpop.f32.mrb[0].mxu0
    %v3575 = vadd.f32 %v3433, %v3574
    %v3576 = vpop.f32.mrb[0].mxu0
    %v3577 = vadd.f32 %v3435, %v3576
    %3578 = vdwg.mxu0
    %3579 = vmatprep.subr.mxu0 %v514
    %3580 = vmatpush1.msra.mxu0 %v513
    %3581 = vmatprep.subr.mxu0 %v518
    %3582 = vmatpush1.msra.mxu0 %v517
    %3583 = vmatprep.subr.mxu0 %v522
    %3584 = vmatpush1.msra.mxu0 %v521
    %3585 = vmatprep.subr.mxu0 %v526
    %3586 = vmatpush1.msra.mxu0 %v525
    %3587 = vmatprep.subr.mxu0 %v530
    %3588 = vmatpush1.msra.mxu0 %v529
    %3589 = vmatprep.subr.mxu0 %v534
    %3590 = vmatpush1.msra.mxu0 %v533
    %3591 = vmatprep.subr.mxu0 %v538
    %3592 = vmatpush1.msra.mxu0 %v537
    %3593 = vmatprep.subr.mxu0 %v542
    %3594 = vmatpush1.msra.mxu0 %v541
    %3595 = vmatprep.subr.mxu0 %v546
    %3596 = vmatpush1.msra.mxu0 %v545
    %3597 = vmatprep.subr.mxu0 %v550
    %3598 = vmatpush1.msra.mxu0 %v549
    %3599 = vmatprep.subr.mxu0 %v554
    %3600 = vmatpush1.msra.mxu0 %v553
    %3601 = vmatprep.subr.mxu0 %v558
    %3602 = vmatpush1.msra.mxu0 %v557
    %3603 = vmatprep.subr.mxu0 %v562
    %3604 = vmatpush1.msra.mxu0 %v561
    %3605 = vmatprep.subr.mxu0 %v566
    %3606 = vmatpush1.msra.mxu0 %v565
    %3607 = vmatprep.subr.mxu0 %v570
    %3608 = vmatpush1.msra.mxu0 %v569
    %3609 = vmatprep.subr.mxu0 %v574
    %3610 = vmatpush1.msra.mxu0 %v573
    %3611 = vmatprep.subr.mxu0 0.0
    %3612 = vmatpush1.msra.mxu0 0.0
    %3613 = vmatprep.subr.mxu0 0.0
    %3614 = vmatpush1.msra.mxu0 0.0
    %3615 = vmatprep.subr.mxu0 0.0
    %3616 = vmatpush1.msra.mxu0 0.0
    %3617 = vmatprep.subr.mxu0 0.0
    %3618 = vmatpush1.msra.mxu0 0.0
    %3619 = vmatprep.subr.mxu0 0.0
    %3620 = vmatpush1.msra.mxu0 0.0
    %3621 = vmatprep.subr.mxu0 0.0
    %3622 = vmatpush1.msra.mxu0 0.0
    %3623 = vmatprep.subr.mxu0 0.0
    %3624 = vmatpush1.msra.mxu0 0.0
    %3625 = vmatprep.subr.mxu0 0.0
    %3626 = vmatpush1.msra.mxu0 0.0
    %3627 = vmatprep.subr.mxu0 0.0
    %3628 = vmatpush1.msra.mxu0 0.0
    %3629 = vmatprep.subr.mxu0 0.0
    %3630 = vmatpush1.msra.mxu0 0.0
    %3631 = vmatprep.subr.mxu0 0.0
    %3632 = vmatpush1.msra.mxu0 0.0
    %3633 = vmatprep.subr.mxu0 0.0
    %3634 = vmatpush1.msra.mxu0 0.0
    %3635 = vmatprep.subr.mxu0 0.0
    %3636 = vmatpush1.msra.mxu0 0.0
    %3637 = vmatprep.subr.mxu0 0.0
    %3638 = vmatpush1.msra.mxu0 0.0
    %3639 = vmatprep.subr.mxu0 0.0
    %3640 = vmatpush1.msra.mxu0 0.0
    %3641 = vmatprep.subr.mxu0 0.0
    %3642 = vmatpush1.msra.mxu0 0.0
    %3643 = vmatprep.mubr.f32.mxu0 0.0
    %3644 = vmatmul.mubr.f32.gmra.mrb[0].mxu0 %v3192
    %v3645 = vpop.f32.mrb[0].mxu0
    %v3646 = vadd.f32 %v3504, %v3645
    %v3647 = vpop.f32.mrb[0].mxu0
    %v3648 = vadd.f32 %v3506, %v3647
    %3649 = vdwg.mxu0
    %v3650 = vadd.f32 %v3575, %v466
    %v3651 = vadd.f32 %v3577, %v470
    %v3652 = vadd.f32 %v3646, %v474
    %v3653 = vadd.f32 %v3648, %v478
    %v3654 = vmul.f32 %v3650, 0.5
    %v3655 = vtanh.pop %v3654
    %v3656 = vmul.f32 %v3655, 0.5
    %v3657 = vadd.f32 %v3656, 0.5
    %v3658 = vmul.f32 %v3651, 0.5
    %v3659 = vtanh.pop %v3658
    %v3660 = vmul.f32 %v3659, 0.5
    %v3661 = vadd.f32 %v3660, 0.5
    %v3662 = vtanh.pop %v3652
    %v3663 = vmul.f32 %v3653, 0.5
    %v3664 = vtanh.pop %v3663
    %v3665 = vmul.f32 %v3664, 0.5
    %v3666 = vadd.f32 %v3665, 0.5
    %v3667 = vmul.f32 %v3661, %v3190
    %v3668 = vmul.f32 %v3657, %v3662
    %v3669 = vadd.f32 %v3667, %v3668
    %v3670 = vtanh.pop %v3669
    %v3671 = vmul.f32 %v3666, %v3670
    %s3672 = scalar_lea.vmem [#allocation3], 48
    %3673 = vst [vmem:[%s3672] sm:$0xff] %v3671
    %s3674 = smul.u32 7, 4
    %s3675 = smul.addr %s3674, 8
    %s3676 = scalar_lea.vmem [#allocation2], %s3675
    %v3677 = vld [vmem:[%s3676] sm:$0xff]
    %v3678 = vld [vmem:[%s3676 + $0x8] sm:$0xff]
    %v3679 = vld [vmem:[%s3676 + $0x10] sm:$0xff]
    %v3680 = vld [vmem:[%s3676 + $0x18] sm:$0xff]
    %3681 = vmatprep.subr.mxu0 %v398
    %3682 = vmatpush1.msra.mxu0 %v397
    %3683 = vmatprep.subr.mxu0 %v402
    %3684 = vmatpush1.msra.mxu0 %v401
    %3685 = vmatprep.subr.mxu0 %v406
    %3686 = vmatpush1.msra.mxu0 %v405
    %3687 = vmatprep.subr.mxu0 %v410
    %3688 = vmatpush1.msra.mxu0 %v409
    %3689 = vmatprep.subr.mxu0 %v414
    %3690 = vmatpush1.msra.mxu0 %v413
    %3691 = vmatprep.subr.mxu0 %v418
    %3692 = vmatpush1.msra.mxu0 %v417
    %3693 = vmatprep.subr.mxu0 %v422
    %3694 = vmatpush1.msra.mxu0 %v421
    %3695 = vmatprep.subr.mxu0 %v426
    %3696 = vmatpush1.msra.mxu0 %v425
    %3697 = vmatprep.subr.mxu0 %v430
    %3698 = vmatpush1.msra.mxu0 %v429
    %3699 = vmatprep.subr.mxu0 %v434
    %3700 = vmatpush1.msra.mxu0 %v433
    %3701 = vmatprep.subr.mxu0 %v438
    %3702 = vmatpush1.msra.mxu0 %v437
    %3703 = vmatprep.subr.mxu0 %v442
    %3704 = vmatpush1.msra.mxu0 %v441
    %3705 = vmatprep.subr.mxu0 %v446
    %3706 = vmatpush1.msra.mxu0 %v445
    %3707 = vmatprep.subr.mxu0 %v450
    %3708 = vmatpush1.msra.mxu0 %v449
    %3709 = vmatprep.subr.mxu0 %v454
    %3710 = vmatpush1.msra.mxu0 %v453
    %3711 = vmatprep.subr.mxu0 %v458
    %3712 = vmatpush1.msra.mxu0 %v457
    %3713 = vmatprep.subr.mxu0 0.0
    %3714 = vmatpush1.msra.mxu0 0.0
    %3715 = vmatprep.subr.mxu0 0.0
    %3716 = vmatpush1.msra.mxu0 0.0
    %3717 = vmatprep.subr.mxu0 0.0
    %3718 = vmatpush1.msra.mxu0 0.0
    %3719 = vmatprep.subr.mxu0 0.0
    %3720 = vmatpush1.msra.mxu0 0.0
    %3721 = vmatprep.subr.mxu0 0.0
    %3722 = vmatpush1.msra.mxu0 0.0
    %3723 = vmatprep.subr.mxu0 0.0
    %3724 = vmatpush1.msra.mxu0 0.0
    %3725 = vmatprep.subr.mxu0 0.0
    %3726 = vmatpush1.msra.mxu0 0.0
    %3727 = vmatprep.subr.mxu0 0.0
    %3728 = vmatpush1.msra.mxu0 0.0
    %3729 = vmatprep.subr.mxu0 0.0
    %3730 = vmatpush1.msra.mxu0 0.0
    %3731 = vmatprep.subr.mxu0 0.0
    %3732 = vmatpush1.msra.mxu0 0.0
    %3733 = vmatprep.subr.mxu0 0.0
    %3734 = vmatpush1.msra.mxu0 0.0
    %3735 = vmatprep.subr.mxu0 0.0
    %3736 = vmatpush1.msra.mxu0 0.0
    %3737 = vmatprep.subr.mxu0 0.0
    %3738 = vmatpush1.msra.mxu0 0.0
    %3739 = vmatprep.subr.mxu0 0.0
    %3740 = vmatpush1.msra.mxu0 0.0
    %3741 = vmatprep.subr.mxu0 0.0
    %3742 = vmatpush1.msra.mxu0 0.0
    %3743 = vmatprep.subr.mxu0 0.0
    %3744 = vmatpush1.msra.mxu0 0.0
    %3745 = vmatprep.mubr.f32.mxu0 0.0
    %3746 = vmatmul.mubr.f32.gmra.mrb[0].mxu0 %v3365
    %v3747 = vpop.f32.mrb[0].mxu0
    %v3748 = vadd.f32 0.0, %v3747
    %v3749 = vpop.f32.mrb[0].mxu0
    %v3750 = vadd.f32 0.0, %v3749
    %3751 = vdwg.mxu0
    %3752 = vmatprep.subr.mxu0 %v400
    %3753 = vmatpush1.msra.mxu0 %v399
    %3754 = vmatprep.subr.mxu0 %v404
    %3755 = vmatpush1.msra.mxu0 %v403
    %3756 = vmatprep.subr.mxu0 %v408
    %3757 = vmatpush1.msra.mxu0 %v407
    %3758 = vmatprep.subr.mxu0 %v412
    %3759 = vmatpush1.msra.mxu0 %v411
    %3760 = vmatprep.subr.mxu0 %v416
    %3761 = vmatpush1.msra.mxu0 %v415
    %3762 = vmatprep.subr.mxu0 %v420
    %3763 = vmatpush1.msra.mxu0 %v419
    %3764 = vmatprep.subr.mxu0 %v424
    %3765 = vmatpush1.msra.mxu0 %v423
    %3766 = vmatprep.subr.mxu0 %v428
    %3767 = vmatpush1.msra.mxu0 %v427
    %3768 = vmatprep.subr.mxu0 %v432
    %3769 = vmatpush1.msra.mxu0 %v431
    %3770 = vmatprep.subr.mxu0 %v436
    %3771 = vmatpush1.msra.mxu0 %v435
    %3772 = vmatprep.subr.mxu0 %v440
    %3773 = vmatpush1.msra.mxu0 %v439
    %3774 = vmatprep.subr.mxu0 %v444
    %3775 = vmatpush1.msra.mxu0 %v443
    %3776 = vmatprep.subr.mxu0 %v448
    %3777 = vmatpush1.msra.mxu0 %v447
    %3778 = vmatprep.subr.mxu0 %v452
    %3779 = vmatpush1.msra.mxu0 %v451
    %3780 = vmatprep.subr.mxu0 %v456
    %3781 = vmatpush1.msra.mxu0 %v455
    %3782 = vmatprep.subr.mxu0 %v460
    %3783 = vmatpush1.msra.mxu0 %v459
    %3784 = vmatprep.subr.mxu0 0.0
    %3785 = vmatpush1.msra.mxu0 0.0
    %3786 = vmatprep.subr.mxu0 0.0
    %3787 = vmatpush1.msra.mxu0 0.0
    %3788 = vmatprep.subr.mxu0 0.0
    %3789 = vmatpush1.msra.mxu0 0.0
    %3790 = vmatprep.subr.mxu0 0.0
    %3791 = vmatpush1.msra.mxu0 0.0
    %3792 = vmatprep.subr.mxu0 0.0
    %3793 = vmatpush1.msra.mxu0 0.0
    %3794 = vmatprep.subr.mxu0 0.0
    %3795 = vmatpush1.msra.mxu0 0.0
    %3796 = vmatprep.subr.mxu0 0.0
    %3797 = vmatpush1.msra.mxu0 0.0
    %3798 = vmatprep.subr.mxu0 0.0
    %3799 = vmatpush1.msra.mxu0 0.0
    %3800 = vmatprep.subr.mxu0 0.0
    %3801 = vmatpush1.msra.mxu0 0.0
    %3802 = vmatprep.subr.mxu0 0.0
    %3803 = vmatpush1.msra.mxu0 0.0
    %3804 = vmatprep.subr.mxu0 0.0
    %3805 = vmatpush1.msra.mxu0 0.0
    %3806 = vmatprep.subr.mxu0 0.0
    %3807 = vmatpush1.msra.mxu0 0.0
    %3808 = vmatprep.subr.mxu0 0.0
    %3809 = vmatpush1.msra.mxu0 0.0
    %3810 = vmatprep.subr.mxu0 0.0
    %3811 = vmatpush1.msra.mxu0 0.0
    %3812 = vmatprep.subr.mxu0 0.0
    %3813 = vmatpush1.msra.mxu0 0.0
    %3814 = vmatprep.subr.mxu0 0.0
    %3815 = vmatpush1.msra.mxu0 0.0
    %3816 = vmatprep.mubr.f32.mxu0 0.0
    %3817 = vmatmul.mubr.f32.gmra.mrb[0].mxu0 %v3365
    %v3818 = vpop.f32.mrb[0].mxu0
    %v3819 = vadd.f32 0.0, %v3818
    %v3820 = vpop.f32.mrb[0].mxu0
    %v3821 = vadd.f32 0.0, %v3820
    %3822 = vdwg.mxu0
    %v3823 = vadd.f32 %v3677, %v3748
    %v3824 = vadd.f32 %v3678, %v3750
    %v3825 = vadd.f32 %v3679, %v3819
    %v3826 = vadd.f32 %v3680, %v3821
    %v3827 = vmul.f32 %v3823, 0.5
    %v3828 = vtanh.pop %v3827
    %v3829 = vmul.f32 %v3828, 0.5
    %v3830 = vadd.f32 %v3829, 0.5
    %v3831 = vmul.f32 %v3824, 0.5
    %v3832 = vtanh.pop %v3831
    %v3833 = vmul.f32 %v3832, 0.5
    %v3834 = vadd.f32 %v3833, 0.5
    %v3835 = vtanh.pop %v3825
    %v3836 = vmul.f32 %v3826, 0.5
    %v3837 = vtanh.pop %v3836
    %v3838 = vmul.f32 %v3837, 0.5
    %v3839 = vadd.f32 %v3838, 0.5
    %v3840 = vmul.f32 %v3834, %v3363
    %v3841 = vmul.f32 %v3830, %v3835
    %v3842 = vadd.f32 %v3840, %v3841
    %v3843 = vtanh.pop %v3842
    %v3844 = vmul.f32 %v3839, %v3843
    %3845 = vmatprep.subr.mxu0 %v576
    %3846 = vmatpush1.msra.mxu0 %v575
    %3847 = vmatprep.subr.mxu0 %v580
    %3848 = vmatpush1.msra.mxu0 %v579
    %3849 = vmatprep.subr.mxu0 %v584
    %3850 = vmatpush1.msra.mxu0 %v583
    %3851 = vmatprep.subr.mxu0 %v588
    %3852 = vmatpush1.msra.mxu0 %v587
    %3853 = vmatprep.subr.mxu0 %v592
    %3854 = vmatpush1.msra.mxu0 %v591
    %3855 = vmatprep.subr.mxu0 %v596
    %3856 = vmatpush1.msra.mxu0 %v595
    %3857 = vmatprep.subr.mxu0 %v600
    %3858 = vmatpush1.msra.mxu0 %v599
    %3859 = vmatprep.subr.mxu0 %v604
    %3860 = vmatpush1.msra.mxu0 %v603
    %3861 = vmatprep.subr.mxu0 %v608
    %3862 = vmatpush1.msra.mxu0 %v607
    %3863 = vmatprep.subr.mxu0 %v612
    %3864 = vmatpush1.msra.mxu0 %v611
    %3865 = vmatprep.subr.mxu0 %v616
    %3866 = vmatpush1.msra.mxu0 %v615
    %3867 = vmatprep.subr.mxu0 %v620
    %3868 = vmatpush1.msra.mxu0 %v619
    %3869 = vmatprep.subr.mxu0 %v624
    %3870 = vmatpush1.msra.mxu0 %v623
    %3871 = vmatprep.subr.mxu0 %v628
    %3872 = vmatpush1.msra.mxu0 %v627
    %3873 = vmatprep.subr.mxu0 %v632
    %3874 = vmatpush1.msra.mxu0 %v631
    %3875 = vmatprep.subr.mxu0 %v636
    %3876 = vmatpush1.msra.mxu0 %v635
    %3877 = vmatprep.subr.mxu0 0.0
    %3878 = vmatpush1.msra.mxu0 0.0
    %3879 = vmatprep.subr.mxu0 0.0
    %3880 = vmatpush1.msra.mxu0 0.0
    %3881 = vmatprep.subr.mxu0 0.0
    %3882 = vmatpush1.msra.mxu0 0.0
    %3883 = vmatprep.subr.mxu0 0.0
    %3884 = vmatpush1.msra.mxu0 0.0
    %3885 = vmatprep.subr.mxu0 0.0
    %3886 = vmatpush1.msra.mxu0 0.0
    %3887 = vmatprep.subr.mxu0 0.0
    %3888 = vmatpush1.msra.mxu0 0.0
    %3889 = vmatprep.subr.mxu0 0.0
    %3890 = vmatpush1.msra.mxu0 0.0
    %3891 = vmatprep.subr.mxu0 0.0
    %3892 = vmatpush1.msra.mxu0 0.0
    %3893 = vmatprep.subr.mxu0 0.0
    %3894 = vmatpush1.msra.mxu0 0.0
    %3895 = vmatprep.subr.mxu0 0.0
    %3896 = vmatpush1.msra.mxu0 0.0
    %3897 = vmatprep.subr.mxu0 0.0
    %3898 = vmatpush1.msra.mxu0 0.0
    %3899 = vmatprep.subr.mxu0 0.0
    %3900 = vmatpush1.msra.mxu0 0.0
    %3901 = vmatprep.subr.mxu0 0.0
    %3902 = vmatpush1.msra.mxu0 0.0
    %3903 = vmatprep.subr.mxu0 0.0
    %3904 = vmatpush1.msra.mxu0 0.0
    %3905 = vmatprep.subr.mxu0 0.0
    %3906 = vmatpush1.msra.mxu0 0.0
    %3907 = vmatprep.subr.mxu0 0.0
    %3908 = vmatpush1.msra.mxu0 0.0
    %3909 = vmatprep.mubr.f32.mxu0 0.0
    %3910 = vmatmul.mubr.f32.gmra.mrb[0].mxu0 %v3844
    %v3911 = vpop.f32.mrb[0].mxu0
    %v3912 = vadd.f32 0.0, %v3911
    %v3913 = vpop.f32.mrb[0].mxu0
    %v3914 = vadd.f32 0.0, %v3913
    %3915 = vdwg.mxu0
    %3916 = vmatprep.subr.mxu0 %v578
    %3917 = vmatpush1.msra.mxu0 %v577
    %3918 = vmatprep.subr.mxu0 %v582
    %3919 = vmatpush1.msra.mxu0 %v581
    %3920 = vmatprep.subr.mxu0 %v586
    %3921 = vmatpush1.msra.mxu0 %v585
    %3922 = vmatprep.subr.mxu0 %v590
    %3923 = vmatpush1.msra.mxu0 %v589
    %3924 = vmatprep.subr.mxu0 %v594
    %3925 = vmatpush1.msra.mxu0 %v593
    %3926 = vmatprep.subr.mxu0 %v598
    %3927 = vmatpush1.msra.mxu0 %v597
    %3928 = vmatprep.subr.mxu0 %v602
    %3929 = vmatpush1.msra.mxu0 %v601
    %3930 = vmatprep.subr.mxu0 %v606
    %3931 = vmatpush1.msra.mxu0 %v605
    %3932 = vmatprep.subr.mxu0 %v610
    %3933 = vmatpush1.msra.mxu0 %v609
    %3934 = vmatprep.subr.mxu0 %v614
    %3935 = vmatpush1.msra.mxu0 %v613
    %3936 = vmatprep.subr.mxu0 %v618
    %3937 = vmatpush1.msra.mxu0 %v617
    %3938 = vmatprep.subr.mxu0 %v622
    %3939 = vmatpush1.msra.mxu0 %v621
    %3940 = vmatprep.subr.mxu0 %v626
    %3941 = vmatpush1.msra.mxu0 %v625
    %3942 = vmatprep.subr.mxu0 %v630
    %3943 = vmatpush1.msra.mxu0 %v629
    %3944 = vmatprep.subr.mxu0 %v634
    %3945 = vmatpush1.msra.mxu0 %v633
    %3946 = vmatprep.subr.mxu0 %v638
    %3947 = vmatpush1.msra.mxu0 %v637
    %3948 = vmatprep.subr.mxu0 0.0
    %3949 = vmatpush1.msra.mxu0 0.0
    %3950 = vmatprep.subr.mxu0 0.0
    %3951 = vmatpush1.msra.mxu0 0.0
    %3952 = vmatprep.subr.mxu0 0.0
    %3953 = vmatpush1.msra.mxu0 0.0
    %3954 = vmatprep.subr.mxu0 0.0
    %3955 = vmatpush1.msra.mxu0 0.0
    %3956 = vmatprep.subr.mxu0 0.0
    %3957 = vmatpush1.msra.mxu0 0.0
    %3958 = vmatprep.subr.mxu0 0.0
    %3959 = vmatpush1.msra.mxu0 0.0
    %3960 = vmatprep.subr.mxu0 0.0
    %3961 = vmatpush1.msra.mxu0 0.0
    %3962 = vmatprep.subr.mxu0 0.0
    %3963 = vmatpush1.msra.mxu0 0.0
    %3964 = vmatprep.subr.mxu0 0.0
    %3965 = vmatpush1.msra.mxu0 0.0
    %3966 = vmatprep.subr.mxu0 0.0
    %3967 = vmatpush1.msra.mxu0 0.0
    %3968 = vmatprep.subr.mxu0 0.0
    %3969 = vmatpush1.msra.mxu0 0.0
    %3970 = vmatprep.subr.mxu0 0.0
    %3971 = vmatpush1.msra.mxu0 0.0
    %3972 = vmatprep.subr.mxu0 0.0
    %3973 = vmatpush1.msra.mxu0 0.0
    %3974 = vmatprep.subr.mxu0 0.0
    %3975 = vmatpush1.msra.mxu0 0.0
    %3976 = vmatprep.subr.mxu0 0.0
    %3977 = vmatpush1.msra.mxu0 0.0
    %3978 = vmatprep.subr.mxu0 0.0
    %3979 = vmatpush1.msra.mxu0 0.0
    %3980 = vmatprep.mubr.f32.mxu0 0.0
    %3981 = vmatmul.mubr.f32.gmra.mrb[0].mxu0 %v3844
    %v3982 = vpop.f32.mrb[0].mxu0
    %v3983 = vadd.f32 0.0, %v3982
    %v3984 = vpop.f32.mrb[0].mxu0
    %v3985 = vadd.f32 0.0, %v3984
    %3986 = vdwg.mxu0
    %3987 = vmatprep.subr.mxu0 %v512
    %3988 = vmatpush1.msra.mxu0 %v511
    %3989 = vmatprep.subr.mxu0 %v516
    %3990 = vmatpush1.msra.mxu0 %v515
    %3991 = vmatprep.subr.mxu0 %v520
    %3992 = vmatpush1.msra.mxu0 %v519
    %3993 = vmatprep.subr.mxu0 %v524
    %3994 = vmatpush1.msra.mxu0 %v523
    %3995 = vmatprep.subr.mxu0 %v528
    %3996 = vmatpush1.msra.mxu0 %v527
    %3997 = vmatprep.subr.mxu0 %v532
    %3998 = vmatpush1.msra.mxu0 %v531
    %3999 = vmatprep.subr.mxu0 %v536
    %4000 = vmatpush1.msra.mxu0 %v535
    %4001 = vmatprep.subr.mxu0 %v540
    %4002 = vmatpush1.msra.mxu0 %v539
    %4003 = vmatprep.subr.mxu0 %v544
    %4004 = vmatpush1.msra.mxu0 %v543
    %4005 = vmatprep.subr.mxu0 %v548
    %4006 = vmatpush1.msra.mxu0 %v547
    %4007 = vmatprep.subr.mxu0 %v552
    %4008 = vmatpush1.msra.mxu0 %v551
    %4009 = vmatprep.subr.mxu0 %v556
    %4010 = vmatpush1.msra.mxu0 %v555
    %4011 = vmatprep.subr.mxu0 %v560
    %4012 = vmatpush1.msra.mxu0 %v559
    %4013 = vmatprep.subr.mxu0 %v564
    %4014 = vmatpush1.msra.mxu0 %v563
    %4015 = vmatprep.subr.mxu0 %v568
    %4016 = vmatpush1.msra.mxu0 %v567
    %4017 = vmatprep.subr.mxu0 %v572
    %4018 = vmatpush1.msra.mxu0 %v571
    %4019 = vmatprep.subr.mxu0 0.0
    %4020 = vmatpush1.msra.mxu0 0.0
    %4021 = vmatprep.subr.mxu0 0.0
    %4022 = vmatpush1.msra.mxu0 0.0
    %4023 = vmatprep.subr.mxu0 0.0
    %4024 = vmatpush1.msra.mxu0 0.0
    %4025 = vmatprep.subr.mxu0 0.0
    %4026 = vmatpush1.msra.mxu0 0.0
    %4027 = vmatprep.subr.mxu0 0.0
    %4028 = vmatpush1.msra.mxu0 0.0
    %4029 = vmatprep.subr.mxu0 0.0
    %4030 = vmatpush1.msra.mxu0 0.0
    %4031 = vmatprep.subr.mxu0 0.0
    %4032 = vmatpush1.msra.mxu0 0.0
    %4033 = vmatprep.subr.mxu0 0.0
    %4034 = vmatpush1.msra.mxu0 0.0
    %4035 = vmatprep.subr.mxu0 0.0
    %4036 = vmatpush1.msra.mxu0 0.0
    %4037 = vmatprep.subr.mxu0 0.0
    %4038 = vmatpush1.msra.mxu0 0.0
    %4039 = vmatprep.subr.mxu0 0.0
    %4040 = vmatpush1.msra.mxu0 0.0
    %4041 = vmatprep.subr.mxu0 0.0
    %4042 = vmatpush1.msra.mxu0 0.0
    %4043 = vmatprep.subr.mxu0 0.0
    %4044 = vmatpush1.msra.mxu0 0.0
    %4045 = vmatprep.subr.mxu0 0.0
    %4046 = vmatpush1.msra.mxu0 0.0
    %4047 = vmatprep.subr.mxu0 0.0
    %4048 = vmatpush1.msra.mxu0 0.0
    %4049 = vmatprep.subr.mxu0 0.0
    %4050 = vmatpush1.msra.mxu0 0.0
    %4051 = vmatprep.mubr.f32.mxu0 0.0
    %4052 = vmatmul.mubr.f32.gmra.mrb[0].mxu0 %v3671
    %v4053 = vpop.f32.mrb[0].mxu0
    %v4054 = vadd.f32 %v3912, %v4053
    %v4055 = vpop.f32.mrb[0].mxu0
    %v4056 = vadd.f32 %v3914, %v4055
    %4057 = vdwg.mxu0
    %4058 = vmatprep.subr.mxu0 %v514
    %4059 = vmatpush1.msra.mxu0 %v513
    %4060 = vmatprep.subr.mxu0 %v518
    %4061 = vmatpush1.msra.mxu0 %v517
    %4062 = vmatprep.subr.mxu0 %v522
    %4063 = vmatpush1.msra.mxu0 %v521
    %4064 = vmatprep.subr.mxu0 %v526
    %4065 = vmatpush1.msra.mxu0 %v525
    %4066 = vmatprep.subr.mxu0 %v530
    %4067 = vmatpush1.msra.mxu0 %v529
    %4068 = vmatprep.subr.mxu0 %v534
    %4069 = vmatpush1.msra.mxu0 %v533
    %4070 = vmatprep.subr.mxu0 %v538
    %4071 = vmatpush1.msra.mxu0 %v537
    %4072 = vmatprep.subr.mxu0 %v542
    %4073 = vmatpush1.msra.mxu0 %v541
    %4074 = vmatprep.subr.mxu0 %v546
    %4075 = vmatpush1.msra.mxu0 %v545
    %4076 = vmatprep.subr.mxu0 %v550
    %4077 = vmatpush1.msra.mxu0 %v549
    %4078 = vmatprep.subr.mxu0 %v554
    %4079 = vmatpush1.msra.mxu0 %v553
    %4080 = vmatprep.subr.mxu0 %v558
    %4081 = vmatpush1.msra.mxu0 %v557
    %4082 = vmatprep.subr.mxu0 %v562
    %4083 = vmatpush1.msra.mxu0 %v561
    %4084 = vmatprep.subr.mxu0 %v566
    %4085 = vmatpush1.msra.mxu0 %v565
    %4086 = vmatprep.subr.mxu0 %v570
    %4087 = vmatpush1.msra.mxu0 %v569
    %4088 = vmatprep.subr.mxu0 %v574
    %4089 = vmatpush1.msra.mxu0 %v573
    %4090 = vmatprep.subr.mxu0 0.0
    %4091 = vmatpush1.msra.mxu0 0.0
    %4092 = vmatprep.subr.mxu0 0.0
    %4093 = vmatpush1.msra.mxu0 0.0
    %4094 = vmatprep.subr.mxu0 0.0
    %4095 = vmatpush1.msra.mxu0 0.0
    %4096 = vmatprep.subr.mxu0 0.0
    %4097 = vmatpush1.msra.mxu0 0.0
    %4098 = vmatprep.subr.mxu0 0.0
    %4099 = vmatpush1.msra.mxu0 0.0
    %4100 = vmatprep.subr.mxu0 0.0
    %4101 = vmatpush1.msra.mxu0 0.0
    %4102 = vmatprep.subr.mxu0 0.0
    %4103 = vmatpush1.msra.mxu0 0.0
    %4104 = vmatprep.subr.mxu0 0.0
    %4105 = vmatpush1.msra.mxu0 0.0
    %4106 = vmatprep.subr.mxu0 0.0
    %4107 = vmatpush1.msra.mxu0 0.0
    %4108 = vmatprep.subr.mxu0 0.0
    %4109 = vmatpush1.msra.mxu0 0.0
    %4110 = vmatprep.subr.mxu0 0.0
    %4111 = vmatpush1.msra.mxu0 0.0
    %4112 = vmatprep.subr.mxu0 0.0
    %4113 = vmatpush1.msra.mxu0 0.0
    %4114 = vmatprep.subr.mxu0 0.0
    %4115 = vmatpush1.msra.mxu0 0.0
    %4116 = vmatprep.subr.mxu0 0.0
    %4117 = vmatpush1.msra.mxu0 0.0
    %4118 = vmatprep.subr.mxu0 0.0
    %4119 = vmatpush1.msra.mxu0 0.0
    %4120 = vmatprep.subr.mxu0 0.0
    %4121 = vmatpush1.msra.mxu0 0.0
    %4122 = vmatprep.mubr.f32.mxu0 0.0
    %4123 = vmatmul.mubr.f32.gmra.mrb[0].mxu0 %v3671
    %v4124 = vpop.f32.mrb[0].mxu0
    %v4125 = vadd.f32 %v3983, %v4124
    %v4126 = vpop.f32.mrb[0].mxu0
    %v4127 = vadd.f32 %v3985, %v4126
    %4128 = vdwg.mxu0
    %v4129 = vadd.f32 %v4054, %v466
    %v4130 = vadd.f32 %v4056, %v470
    %v4131 = vadd.f32 %v4125, %v474
    %v4132 = vadd.f32 %v4127, %v478
    %v4133 = vmul.f32 %v4129, 0.5
    %v4134 = vtanh.pop %v4133
    %v4135 = vmul.f32 %v4134, 0.5
    %v4136 = vadd.f32 %v4135, 0.5
    %v4137 = vmul.f32 %v4130, 0.5
    %v4138 = vtanh.pop %v4137
    %v4139 = vmul.f32 %v4138, 0.5
    %v4140 = vadd.f32 %v4139, 0.5
    %v4141 = vtanh.pop %v4131
    %v4142 = vmul.f32 %v4132, 0.5
    %v4143 = vtanh.pop %v4142
    %v4144 = vmul.f32 %v4143, 0.5
    %v4145 = vadd.f32 %v4144, 0.5
    %v4146 = vmul.f32 %v4140, %v3669
    %v4147 = vmul.f32 %v4136, %v4141
    %v4148 = vadd.f32 %v4146, %v4147
    %v4149 = vtanh.pop %v4148
    %v4150 = vmul.f32 %v4145, %v4149
    %s4151 = scalar_lea.vmem [#allocation3], 56
    %4152 = vst [vmem:[%s4151] sm:$0xff] %v4150
    %v4153 = vld [vmem:[#allocation3] sm:$0xff]
    %v4154 = vld [vmem:[#allocation3 + $0x8] sm:$0xff]
    %v4155 = vld [vmem:[#allocation3 + $0x10] sm:$0xff]
    %v4156 = vld [vmem:[#allocation3 + $0x18] sm:$0xff]
    %v4157 = vld [vmem:[#allocation3 + $0x20] sm:$0xff]
    %v4158 = vld [vmem:[#allocation3 + $0x28] sm:$0xff]
    %v4159 = vld [vmem:[#allocation3 + $0x30] sm:$0xff]
    %v4160 = vld [vmem:[#allocation3 + $0x38] sm:$0xff]
    %v4161 = vld [vmem:[%s7] sm:$0xff]
    %v4162 = vld [vmem:[%s7 + $0x8] sm:$0xff]
    %v4163 = vld [vmem:[%s7 + $0x10] sm:$0xff]
    %v4164 = vld [vmem:[%s7 + $0x18] sm:$0xff]
    %v4165 = vld [vmem:[%s7 + $0x20] sm:$0xff]
    %v4166 = vld [vmem:[%s7 + $0x28] sm:$0xff]
    %v4167 = vld [vmem:[%s7 + $0x30] sm:$0xff]
    %v4168 = vld [vmem:[%s7 + $0x38] sm:$0xff]
    %v4169 = vld [vmem:[%s7 + $0x40] sm:$0xff]
    %v4170 = vld [vmem:[%s7 + $0x48] sm:$0xff]
    %v4171 = vld [vmem:[%s7 + $0x50] sm:$0xff]
    %v4172 = vld [vmem:[%s7 + $0x58] sm:$0xff]
    %v4173 = vld [vmem:[%s7 + $0x60] sm:$0xff]
    %v4174 = vld [vmem:[%s7 + $0x68] sm:$0xff]
    %v4175 = vld [vmem:[%s7 + $0x70] sm:$0xff]
    %v4176 = vld [vmem:[%s7 + $0x78] sm:$0xff]
    %v4177 = vld [vmem:[#allocation7] sm:$0x1]
    %v4179 = vlaneseq
    %v4180 = vshrl.u32 %v4179, 7
    %v4181 = vsub.s32 0, %v4180
    %v4182 = vrot.slane %v4177, %v4181
    %4184 = vmatprep.subr.mxu0 0.0
    %4185 = vmatpush1.msra.mxu0 %v4161
    %4186 = vmatprep.subr.mxu0 0.0
    %4187 = vmatpush1.msra.mxu0 %v4162
    %4188 = vmatprep.subr.mxu0 0.0
    %4189 = vmatpush1.msra.mxu0 %v4163
    %4190 = vmatprep.subr.mxu0 0.0
    %4191 = vmatpush1.msra.mxu0 %v4164
    %4192 = vmatprep.subr.mxu0 0.0
    %4193 = vmatpush1.msra.mxu0 %v4165
    %4194 = vmatprep.subr.mxu0 0.0
    %4195 = vmatpush1.msra.mxu0 %v4166
    %4196 = vmatprep.subr.mxu0 0.0
    %4197 = vmatpush1.msra.mxu0 %v4167
    %4198 = vmatprep.subr.mxu0 0.0
    %4199 = vmatpush1.msra.mxu0 %v4168
    %4200 = vmatprep.subr.mxu0 0.0
    %4201 = vmatpush1.msra.mxu0 %v4169
    %4202 = vmatprep.subr.mxu0 0.0
    %4203 = vmatpush1.msra.mxu0 %v4170
    %4204 = vmatprep.subr.mxu0 0.0
    %4205 = vmatpush1.msra.mxu0 %v4171
    %4206 = vmatprep.subr.mxu0 0.0
    %4207 = vmatpush1.msra.mxu0 %v4172
    %4208 = vmatprep.subr.mxu0 0.0
    %4209 = vmatpush1.msra.mxu0 %v4173
    %4210 = vmatprep.subr.mxu0 0.0
    %4211 = vmatpush1.msra.mxu0 %v4174
    %4212 = vmatprep.subr.mxu0 0.0
    %4213 = vmatpush1.msra.mxu0 %v4175
    %4214 = vmatprep.subr.mxu0 0.0
    %4215 = vmatpush1.msra.mxu0 %v4176
    %4216 = vmatprep.subr.mxu0 0.0
    %4217 = vmatpush1.msra.mxu0 0.0
    %4218 = vmatprep.subr.mxu0 0.0
    %4219 = vmatpush1.msra.mxu0 0.0
    %4220 = vmatprep.subr.mxu0 0.0
    %4221 = vmatpush1.msra.mxu0 0.0
    %4222 = vmatprep.subr.mxu0 0.0
    %4223 = vmatpush1.msra.mxu0 0.0
    %4224 = vmatprep.subr.mxu0 0.0
    %4225 = vmatpush1.msra.mxu0 0.0
    %4226 = vmatprep.subr.mxu0 0.0
    %4227 = vmatpush1.msra.mxu0 0.0
    %4228 = vmatprep.subr.mxu0 0.0
    %4229 = vmatpush1.msra.mxu0 0.0
    %4230 = vmatprep.subr.mxu0 0.0
    %4231 = vmatpush1.msra.mxu0 0.0
    %4232 = vmatprep.subr.mxu0 0.0
    %4233 = vmatpush1.msra.mxu0 0.0
    %4234 = vmatprep.subr.mxu0 0.0
    %4235 = vmatpush1.msra.mxu0 0.0
    %4236 = vmatprep.subr.mxu0 0.0
    %4237 = vmatpush1.msra.mxu0 0.0
    %4238 = vmatprep.subr.mxu0 0.0
    %4239 = vmatpush1.msra.mxu0 0.0
    %4240 = vmatprep.subr.mxu0 0.0
    %4241 = vmatpush1.msra.mxu0 0.0
    %4242 = vmatprep.subr.mxu0 0.0
    %4243 = vmatpush1.msra.mxu0 0.0
    %4244 = vmatprep.subr.mxu0 0.0
    %4245 = vmatpush1.msra.mxu0 0.0
    %4246 = vmatprep.subr.mxu0 0.0
    %4247 = vmatpush1.msra.mxu0 0.0
    %4248 = vmatprep.mubr.f32.mxu0 0.0
    %4249 = vmatmul.mubr.f32.gmra.mrb[0].mxu0 %v4153
    %v4250 = vpop.f32.mrb[0].mxu0
    %v4251 = vadd.f32 %v4182, %v4250
    %v4252 = vpop.f32.mrb[0].mxu0
    %4253 = vmatprep.mubr.f32.mxu0 0.0
    %4254 = vmatmul.mubr.f32.gmra.mrb[0].mxu0 %v4154
    %v4255 = vpop.f32.mrb[0].mxu0
    %v4256 = vadd.f32 %v4182, %v4255
    %v4257 = vpop.f32.mrb[0].mxu0
    %4258 = vmatprep.mubr.f32.mxu0 0.0
    %4259 = vmatmul.mubr.f32.gmra.mrb[0].mxu0 %v4155
    %v4260 = vpop.f32.mrb[0].mxu0
    %v4261 = vadd.f32 %v4182, %v4260
    %v4262 = vpop.f32.mrb[0].mxu0
    %4263 = vmatprep.mubr.f32.mxu0 0.0
    %4264 = vmatmul.mubr.f32.gmra.mrb[0].mxu0 %v4156
    %v4265 = vpop.f32.mrb[0].mxu0
    %v4266 = vadd.f32 %v4182, %v4265
    %v4267 = vpop.f32.mrb[0].mxu0
    %4268 = vmatprep.mubr.f32.mxu0 0.0
    %4269 = vmatmul.mubr.f32.gmra.mrb[0].mxu0 %v4157
    %v4270 = vpop.f32.mrb[0].mxu0
    %v4271 = vadd.f32 %v4182, %v4270
    %v4272 = vpop.f32.mrb[0].mxu0
    %4273 = vmatprep.mubr.f32.mxu0 0.0
    %4274 = vmatmul.mubr.f32.gmra.mrb[0].mxu0 %v4158
    %v4275 = vpop.f32.mrb[0].mxu0
    %v4276 = vadd.f32 %v4182, %v4275
    %v4277 = vpop.f32.mrb[0].mxu0
    %4278 = vmatprep.mubr.f32.mxu0 0.0
    %4279 = vmatmul.mubr.f32.gmra.mrb[0].mxu0 %v4159
    %v4280 = vpop.f32.mrb[0].mxu0
    %v4281 = vadd.f32 %v4182, %v4280
    %v4282 = vpop.f32.mrb[0].mxu0
    %4283 = vmatprep.mubr.f32.mxu0 0.0
    %4284 = vmatmul.mubr.f32.gmra.mrb[0].mxu0 %v4160
    %v4285 = vpop.f32.mrb[0].mxu0
    %v4286 = vadd.f32 %v4182, %v4285
    %v4287 = vpop.f32.mrb[0].mxu0
    %4288 = vdwg.mxu0
    %vm4289 = vcmask 7168
    %4290 = vst.msk [vmem:[%s9] sm:$0xff] %vm4289, %v4251
    %4291 = vst.msk [vmem:[%s9 + $0x8] sm:$0xff] %vm4289, %v4256
    %4292 = vst.msk [vmem:[%s9 + $0x10] sm:$0xff] %vm4289, %v4261
    %4293 = vst.msk [vmem:[%s9 + $0x18] sm:$0xff] %vm4289, %v4266
    %4294 = vst.msk [vmem:[%s9 + $0x20] sm:$0xff] %vm4289, %v4271
    %4295 = vst.msk [vmem:[%s9 + $0x28] sm:$0xff] %vm4289, %v4276
    %4296 = vst.msk [vmem:[%s9 + $0x30] sm:$0xff] %vm4289, %v4281
    %4297 = vst.msk [vmem:[%s9 + $0x38] sm:$0xff] %vm4289, %v4286
    // Predicated region
    $region42: #{tpu_custom_call.1} parent=1 // pred_check
      _
    $region43: #{tpu_custom_call.1} parent=1 // pred_check_branch
      %4299 = sbr.rel (0) target = $region45
    $region44: #{tpu_custom_call.1} parent=1 // pred_region
      _
    $region45: #{tpu_custom_call.1} parent=1 // pred_fallthru
      _
    // Predicated region
    $region46: #{tpu_custom_call.1} parent=1 // pred_check
      _
    $region47: #{tpu_custom_call.1} parent=1 // pred_check_branch
      %4301 = sbr.rel (0) target = $region49
    $region48: #{tpu_custom_call.1} parent=1 // pred_region
      _
    $region49: #{tpu_custom_call.1} parent=1 // pred_fallthru
      _
    %4302 = vsyncpa [#allocation9], 1
  %4303 = vsyncmov [#allocation6]
  %s4304 = vpop.sfrf %4303
  %p4305 = scmp.eq.s32.totalorder %s4304, 0
  %p4306 = pneg %p4305
  %4308 = shalt.err (%p4306)
  %s4309 = scalar_lea.sflag [#allocation6], 1
  %4310 = vsyncmov %s4309
  %s4311 = vpop.sfrf %4310
  %p4312 = scmp.eq.s32.totalorder %s4311, 0
  %p4313 = pneg %p4312
  %4315 = shalt.err (%p4313)

</llo_original>
